<compile_context>
chip_gen: v5e
topology: v5e:2x2
jax: 0.10.0
libtpu: 0.0.40
codegen_flags: <defaults>
</compile_context>

<pallas_src>
import functools

import jax
import jax.numpy as jnp
from jax.experimental import pallas as pl
from jax.experimental.pallas import tpu as pltpu


def _transformer_block_kernel(x_ref, wqkv_ref, wproj_ref, w1_ref, w2_ref,
                              bias_ref, o_ref, attn_scratch,
                              *, num_heads, head_dim, d_ff, seq_valid, eps):
    x = x_ref[0].astype(jnp.float32)                       # (S, E) f32
    S = x.shape[0]
    E = num_heads * head_dim
    scale = head_dim ** -0.5

    # Packed bias slab: row 0 = folded-LN1 qkv bias, 1 = out_proj bias,
    #                   row 2 = folded-LN2 w1 bias,  3 = w2 bias.
    bqkv = bias_ref[0:1, :3 * E]                           # (1, 3E)
    bproj = bias_ref[1:2, :E]                              # (1, E)
    b1 = bias_ref[2:3, :d_ff]                              # (1, F)
    b2 = bias_ref[3:4, :E]                                 # (1, E)

    def layernorm_no_affine(v):                            # affine folded into next Linear
        mu = jnp.mean(v, axis=-1, keepdims=True)
        vc = v - mu
        var = jnp.mean(vc * vc, axis=-1, keepdims=True)
        return vc * jax.lax.rsqrt(var + eps)

    # ---------------- attention branch ----------------
    xn = layernorm_no_affine(x)
    qkv = jnp.dot(xn.astype(jnp.bfloat16), wqkv_ref[...],
                  preferred_element_type=jnp.float32) + bqkv           # (S, 3E) f32
    qkv_b = qkv.astype(jnp.bfloat16)                       # single cast; bf16 MXU operands

    # Mask padded key positions (only traced when S was padded on the host).
    if seq_valid < S:
        key_idx = jax.lax.broadcasted_iota(jnp.int32, (S, S), 1)
        key_mask = key_idx < seq_valid
    else:
        key_mask = None

    for h in range(num_heads):                             # static unroll (small num_heads)
        lo = h * head_dim
        q_h = qkv_b[:, lo:lo + head_dim]                   # (S, D) bf16
        k_h = qkv_b[:, E + lo:E + lo + head_dim]           # (S, D) bf16
        v_h = qkv_b[:, 2 * E + lo:2 * E + lo + head_dim]   # (S, D) bf16
        # scores = q k^T * scale (transposed-RHS contraction, no materialized k^T)
        s_h = jax.lax.dot_general(q_h, k_h, (((1,), (1,)), ((), ())),
                                  preferred_element_type=jnp.float32) * scale
        if key_mask is not None:
            s_h = jnp.where(key_mask, s_h, -1e30)
        m = jnp.max(s_h, axis=-1, keepdims=True)           # softmax stats in f32
        p = jnp.exp(s_h - m)
        denom = jnp.sum(p, axis=-1, keepdims=True)
        p = p * pl.reciprocal(denom, approx=True)          # EUP slot
        o_h = jnp.dot(p.astype(jnp.bfloat16), v_h,
                      preferred_element_type=jnp.float32)  # (S, D) f32
        # Head-concat via static-lane-offset stores into an (S, E) bf16 scratch.
        attn_scratch[:, lo:lo + head_dim] = o_h.astype(jnp.bfloat16)

    # Single K=E out_proj matmul on the concatenated heads.
    proj = jnp.dot(attn_scratch[...], wproj_ref[...],
                   preferred_element_type=jnp.float32)     # (S, E) f32
    x1 = x + proj + bproj                                  # residual 1 (+ out_proj bias)

    # ---------------- MLP branch ----------------
    xn2 = layernorm_no_affine(x1)
    h1 = jnp.dot(xn2.astype(jnp.bfloat16), w1_ref[...],
                 preferred_element_type=jnp.float32) + b1              # (S, F) f32
    h1 = jnp.maximum(h1, 0.0)                              # ReLU
    mlp = jnp.dot(h1.astype(jnp.bfloat16), w2_ref[...],
                  preferred_element_type=jnp.float32) + b2             # (S, E) f32

    o_ref[0] = (x1 + mlp).astype(o_ref.dtype)              # residual 2


def transformer_block_forward(x, params, *, num_heads, eps=1e-6):
    """
    x: (B, S, E) f32.  params use PyTorch layouts:
      ln1_w, ln1_b: (E,)            attn_norm
      qkv_w:        (3E, E)         attn.qkv (no bias)
      proj_w, proj_b: (E, E), (E,)  attn.out_proj
      ln2_w, ln2_b: (E,)            mlp_norm
      w1_w, w1_b:   (F, E), (F,)    mlp.w_1
      w2_w, w2_b:   (E, F), (E,)    mlp.w_2
    """
    B, S, E = x.shape
    head_dim = E // num_heads
    d_ff = params["w1_w"].shape[0]
    f32 = jnp.float32
    bf16 = jnp.bfloat16

    # ---- host-side one-time prep (weights are static in a real module) ----
    #  - pre-transpose Linear weights to (in, out), cast to bf16 (MXU-native)
    #  - fold LayerNorm gamma/beta into the following Linear's weight/bias
    #  - biases kept in f32 and packed into one (4, W) slab (single DMA stream)
    wqkv = (params["ln1_w"][:, None] * params["qkv_w"].T).astype(bf16)     # (E, 3E)
    bqkv = (params["ln1_b"] @ params["qkv_w"].T).astype(f32)               # (3E,)
    wproj = params["proj_w"].T.astype(bf16)                                # (E, E)
    bproj = params["proj_b"].astype(f32)                                   # (E,)
    w1 = (params["ln2_w"][:, None] * params["w1_w"].T).astype(bf16)        # (E, F)
    b1 = (params["ln2_b"] @ params["w1_w"].T + params["w1_b"]).astype(f32) # (F,)
    w2 = params["w2_w"].T.astype(bf16)                                     # (F, E)
    b2 = params["w2_b"].astype(f32)                                        # (E,)

    w_bias = max(3 * E, d_ff)
    biases = jnp.zeros((4, w_bias), f32)
    biases = biases.at[0, :3 * E].set(bqkv)
    biases = biases.at[1, :E].set(bproj)
    biases = biases.at[2, :d_ff].set(b1)
    biases = biases.at[3, :E].set(b2)

    # Pad S up to a sublane multiple; padded keys are masked inside the kernel.
    s_pad = -(-S // 8) * 8
    x_in = jnp.pad(x, ((0, 0), (0, s_pad - S), (0, 0))) if s_pad != S else x

    # ---- explicit VMEM budget from the working set (double-buffer estimate) ----
    MiB = 1024 * 1024
    weight_ws = 2 * 2 * (E * 3 * E + E * E + 2 * E * d_ff)            # bf16 weights x2 bufs
    bias_ws = 2 * 4 * 4 * w_bias                                      # f32 bias slab x2 bufs
    io_ws = 2 * 2 * 4 * s_pad * E                                     # x in + out, x2 bufs
    inter_ws = (4 * (s_pad * 3 * E + 2 * s_pad * s_pad + s_pad * d_ff + 4 * s_pad * E)
                + 2 * (s_pad * 3 * E + s_pad * d_ff + 2 * s_pad * E))  # f32 + bf16 temps
    try:
        phys_vmem = pltpu.get_tpu_info().vmem_capacity_bytes
    except Exception:
        phys_vmem = 128 * MiB
    vmem_limit = int(min(min(phys_vmem, 128 * MiB),
                         max(32 * MiB, 2 * (weight_ws + bias_ws + io_ws + inter_ws))))

    kernel = functools.partial(_transformer_block_kernel,
                               num_heads=num_heads, head_dim=head_dim,
                               d_ff=d_ff, seq_valid=S, eps=eps)

    def _shared(b):
        return (0, 0)

    def _call(weight_pipeline_mode):
        def wspec(shape):
            if weight_pipeline_mode is None:
                return pl.BlockSpec(shape, _shared)
            # Grid-invariant weights: single-buffer to halve their VMEM footprint.
            return pl.BlockSpec(shape, _shared, pipeline_mode=weight_pipeline_mode)

        return pl.pallas_call(
            kernel,
            out_shape=jax.ShapeDtypeStruct((B, s_pad, E), x.dtype),
            grid_spec=pltpu.PrefetchScalarGridSpec(
                num_scalar_prefetch=0,
                grid=(B,),
                in_specs=[
                    pl.BlockSpec((1, s_pad, E), lambda b: (b, 0, 0)),  # per-batch activations
                    wspec((E, 3 * E)),                                 # fused QKV weight (bf16)
                    wspec((E, E)),                                     # out_proj weight (bf16)
                    wspec((E, d_ff)),                                  # MLP w1 (bf16, LN2 folded)
                    wspec((d_ff, E)),                                  # MLP w2 (bf16)
                    pl.BlockSpec((4, w_bias), _shared),                # packed bias slab (f32)
                ],
                out_specs=pl.BlockSpec((1, s_pad, E), lambda b: (b, 0, 0)),
                scratch_shapes=[pltpu.VMEM((s_pad, E), bf16)],         # head-concat scratch
            ),
            compiler_params=pltpu.CompilerParams(
                dimension_semantics=("parallel",),
                vmem_limit_bytes=vmem_limit),
        )(x_in, wqkv, wproj, w1, w2, biases)

    try:
        out = _call(pl.Buffered(1))
    except Exception:
        # Fallback for JAX/Mosaic versions that reject single-buffered BlockSpecs.
        out = _call(None)

    if s_pad != S:
        out = out[:, :S, :]
    return out


if __name__ == "__main__":
    # Small shapes consistent with the module: batch=2, seq=8, embed_dim=32,
    # num_heads=4 (head_dim=8); d_ff=2048 is hard-coded in the PyTorch module.
    B, S, E = 2, 8, 32
    num_heads = 4
    d_ff = 2048
    eps = 1e-6

    key = jax.random.PRNGKey(0)
    ks = jax.random.split(key, 12)

    x = jax.random.normal(ks[0], (B, S, E), dtype=jnp.float32)
    params = dict(
        ln1_w=1.0 + 0.1 * jax.random.normal(ks[1], (E,), dtype=jnp.float32),
        ln1_b=0.1 * jax.random.normal(ks[2], (E,), dtype=jnp.float32),
        qkv_w=0.05 * jax.random.normal(ks[3], (3 * E, E), dtype=jnp.float32),
        proj_w=0.05 * jax.random.normal(ks[4], (E, E), dtype=jnp.float32),
        proj_b=0.05 * jax.random.normal(ks[5], (E,), dtype=jnp.float32),
        ln2_w=1.0 + 0.1 * jax.random.normal(ks[6], (E,), dtype=jnp.float32),
        ln2_b=0.1 * jax.random.normal(ks[7], (E,), dtype=jnp.float32),
        w1_w=0.05 * jax.random.normal(ks[8], (d_ff, E), dtype=jnp.float32),
        w1_b=0.05 * jax.random.normal(ks[9], (d_ff,), dtype=jnp.float32),
        w2_w=0.02 * jax.random.normal(ks[10], (E, d_ff), dtype=jnp.float32),
        w2_b=0.05 * jax.random.normal(ks[11], (E,), dtype=jnp.float32),
    )

    out = transformer_block_forward(x, params, num_heads=num_heads, eps=eps)
    out = jax.block_until_ready(out)

    # ---- pure-JAX f32 reference replicating the PyTorch forward ----
    def layer_norm(v, g, b):
        mu = v.mean(-1, keepdims=True)
        var = ((v - mu) ** 2).mean(-1, keepdims=True)
        return (v - mu) / jnp.sqrt(var + eps) * g + b

    D = E // num_heads
    h = layer_norm(x, params["ln1_w"], params["ln1_b"])
    qkv = h @ params["qkv_w"].T                                          # (B, S, 3E)
    qkv = qkv.reshape(B, S, 3, num_heads, D).transpose(2, 0, 3, 1, 4)    # (3, B, H, S, D)
    q, k, v = qkv[0], qkv[1], qkv[2]
    att = jnp.einsum("bhxd,bhyd->bhxy", q, k) * D ** -0.5
    att = jax.nn.softmax(att, axis=-1)
    o = jnp.einsum("bhxy,bhyd->bhxd", att, v)
    o = o.transpose(0, 2, 1, 3).reshape(B, S, E)
    x1 = x + o @ params["proj_w"].T + params["proj_b"]
    h2 = layer_norm(x1, params["ln2_w"], params["ln2_b"])
    m = jnp.maximum(h2 @ params["w1_w"].T + params["w1_b"], 0.0)
    ref = x1 + m @ params["w2_w"].T + params["w2_b"]

    assert out.shape == (B, S, E)
    # bf16 matmul operands with f32 accumulation -> loosened tolerance vs f32 ref.
    assert jnp.allclose(out, ref, atol=2e-2, rtol=2e-2), float(jnp.max(jnp.abs(out - ref)))

    print("KERNEL_OK")
</pallas_src>

<mosaic_0001>
module attributes {stable_mosaic.version = 11 : i64} {
  func.func @_transformer_block_kernel(%arg0: i32, %arg1: memref<1x8x32xf32, #tpu.memory_space<vmem>>, %arg2: memref<32x96xbf16, #tpu.memory_space<vmem>>, %arg3: memref<32x32xbf16, #tpu.memory_space<vmem>>, %arg4: memref<32x2048xbf16, #tpu.memory_space<vmem>>, %arg5: memref<2048x32xbf16, #tpu.memory_space<vmem>>, %arg6: memref<4x2048xf32, #tpu.memory_space<vmem>>, %arg7: memref<1x8x32xf32, #tpu.memory_space<vmem>>, %arg8: memref<8x32xbf16, #tpu.memory_space<vmem>>) attributes {dimension_semantics = [#tpu.dimension_semantics<parallel>], iteration_bounds = array<i64: 2>, scalar_prefetch = 0 : i64, scratch_operands = 1 : i64, tpu.core_type = #tpu.core_type<tc>, window_params = [{transform_indices = @transform_0, window_bounds = array<i64: 1, 8, 32>}, {pipeline_mode = #tpu.pipeline_mode<synchronous>, transform_indices = @transform_1, window_bounds = array<i64: 32, 96>}, {pipeline_mode = #tpu.pipeline_mode<synchronous>, transform_indices = @transform_2, window_bounds = array<i64: 32, 32>}, {pipeline_mode = #tpu.pipeline_mode<synchronous>, transform_indices = @transform_3, window_bounds = array<i64: 32, 2048>}, {pipeline_mode = #tpu.pipeline_mode<synchronous>, transform_indices = @transform_4, window_bounds = array<i64: 2048, 32>}, {pipeline_mode = #tpu.pipeline_mode<synchronous>, transform_indices = @transform_5, window_bounds = array<i64: 4, 2048>}, {transform_indices = @transform_6, window_bounds = array<i64: 1, 8, 32>}]} {
    %c0 = arith.constant 0 : index
    %c0_0 = arith.constant 0 : index
    %c0_1 = arith.constant 0 : index
    %0 = vector.load %arg1[%c0, %c0_0, %c0_1] : memref<1x8x32xf32, #tpu.memory_space<vmem>>, vector<1x8x32xf32>
    %1 = vector.shape_cast %0 : vector<1x8x32xf32> to vector<8x32xf32>
    %c0_2 = arith.constant 0 : index
    %c0_3 = arith.constant 0 : index
    %2 = vector.load %arg6[%c0_2, %c0_3] : memref<4x2048xf32, #tpu.memory_space<vmem>>, vector<1x96xf32>
    %c1 = arith.constant 1 : index
    %c0_4 = arith.constant 0 : index
    %3 = vector.load %arg6[%c1, %c0_4] : memref<4x2048xf32, #tpu.memory_space<vmem>>, vector<1x32xf32>
    %c2 = arith.constant 2 : index
    %c0_5 = arith.constant 0 : index
    %4 = vector.load %arg6[%c2, %c0_5] : memref<4x2048xf32, #tpu.memory_space<vmem>>, vector<1x2048xf32>
    %c3 = arith.constant 3 : index
    %c0_6 = arith.constant 0 : index
    %5 = vector.load %arg6[%c3, %c0_6] : memref<4x2048xf32, #tpu.memory_space<vmem>>, vector<1x32xf32>
    %cst = arith.constant dense<0.000000e+00> : vector<8xf32>
    %6 = vector.multi_reduction <add>, %1, %cst [1] : vector<8x32xf32> to vector<8xf32>
    %7 = vector.shape_cast %6 : vector<8xf32> to vector<8x1xf32>
    %cst_7 = arith.constant 3.200000e+01 : f32
    %8 = vector.broadcast %cst_7 : f32 to vector<8x1xf32>
    %9 = arith.divf %7, %8 : vector<8x1xf32>
    %10 = vector.broadcast %9 : vector<8x1xf32> to vector<8x32xf32>
    %11 = arith.subf %1, %10 : vector<8x32xf32>
    %12 = arith.mulf %11, %11 : vector<8x32xf32>
    %cst_8 = arith.constant dense<0.000000e+00> : vector<8xf32>
    %13 = vector.multi_reduction <add>, %12, %cst_8 [1] : vector<8x32xf32> to vector<8xf32>
    %14 = vector.shape_cast %13 : vector<8xf32> to vector<8x1xf32>
    %cst_9 = arith.constant 3.200000e+01 : f32
    %15 = vector.broadcast %cst_9 : f32 to vector<8x1xf32>
    %16 = arith.divf %14, %15 : vector<8x1xf32>
    %cst_10 = arith.constant 9.99999997E-7 : f32
    %17 = vector.broadcast %cst_10 : f32 to vector<8x1xf32>
    %18 = arith.addf %16, %17 : vector<8x1xf32>
    %19 = math.rsqrt %18 : vector<8x1xf32>
    %20 = vector.broadcast %19 : vector<8x1xf32> to vector<8x32xf32>
    %21 = arith.mulf %11, %20 : vector<8x32xf32>
    %22 = arith.truncf %21 : vector<8x32xf32> to vector<8x32xbf16>
    %c0_11 = arith.constant 0 : index
    %c0_12 = arith.constant 0 : index
    %23 = vector.load %arg2[%c0_11, %c0_12] : memref<32x96xbf16, #tpu.memory_space<vmem>>, vector<32x96xbf16>
    %cst_13 = arith.constant dense<0.000000e+00> : vector<8x96xf32>
    %24 = tpu.matmul %22, %23, %cst_13 {dimension_numbers = #tpu.dot_dimension_numbers<[1], [0], [0], [1], [0, 0, 1, 1], [], []>} : vector<8x32xbf16>, vector<32x96xbf16>, vector<8x96xf32> -> vector<8x96xf32>
    %25 = vector.broadcast %2 : vector<1x96xf32> to vector<8x96xf32>
    %26 = arith.addf %24, %25 : vector<8x96xf32>
    %27 = arith.truncf %26 : vector<8x96xf32> to vector<8x96xbf16>
    %28 = vector.extract_strided_slice %27 {offsets = [0, 0], sizes = [8, 8], strides = [1, 1]} : vector<8x96xbf16> to vector<8x8xbf16>
    %29 = vector.extract_strided_slice %27 {offsets = [0, 32], sizes = [8, 8], strides = [1, 1]} : vector<8x96xbf16> to vector<8x8xbf16>
    %30 = vector.extract_strided_slice %27 {offsets = [0, 64], sizes = [8, 8], strides = [1, 1]} : vector<8x96xbf16> to vector<8x8xbf16>
    %cst_14 = arith.constant dense<0.000000e+00> : vector<8x8xf32>
    %31 = tpu.matmul %28, %29, %cst_14 {dimension_numbers = #tpu.dot_dimension_numbers<[1], [1], [0], [0], [0, 0, 1, 0], [], []>} : vector<8x8xbf16>, vector<8x8xbf16>, vector<8x8xf32> -> vector<8x8xf32>
    %cst_15 = arith.constant 0.353553385 : f32
    %32 = vector.broadcast %cst_15 : f32 to vector<8x8xf32>
    %33 = arith.mulf %31, %32 : vector<8x8xf32>
    %cst_16 = arith.constant dense<0xFF800000> : vector<8xf32>
    %34 = vector.multi_reduction <maximumf>, %33, %cst_16 [1] : vector<8x8xf32> to vector<8xf32>
    %35 = vector.shape_cast %34 : vector<8xf32> to vector<8x1xf32>
    %36 = vector.broadcast %35 : vector<8x1xf32> to vector<8x8xf32>
    %37 = arith.subf %33, %36 : vector<8x8xf32>
    %38 = math.exp %37 : vector<8x8xf32>
    %cst_17 = arith.constant dense<0.000000e+00> : vector<8xf32>
    %39 = vector.multi_reduction <add>, %38, %cst_17 [1] : vector<8x8xf32> to vector<8xf32>
    %40 = vector.shape_cast %39 : vector<8xf32> to vector<8x1xf32>
    %41 = tpu.reciprocal %40 {approx = true} : vector<8x1xf32> -> vector<8x1xf32>
    %42 = vector.broadcast %41 : vector<8x1xf32> to vector<8x8xf32>
    %43 = arith.mulf %38, %42 : vector<8x8xf32>
    %44 = arith.truncf %43 : vector<8x8xf32> to vector<8x8xbf16>
    %cst_18 = arith.constant dense<0.000000e+00> : vector<8x8xf32>
    %45 = tpu.matmul %44, %30, %cst_18 {dimension_numbers = #tpu.dot_dimension_numbers<[1], [0], [0], [1], [0, 0, 1, 1], [], []>} : vector<8x8xbf16>, vector<8x8xbf16>, vector<8x8xf32> -> vector<8x8xf32>
    %46 = arith.truncf %45 : vector<8x8xf32> to vector<8x8xbf16>
    %c0_19 = arith.constant 0 : index
    %c0_20 = arith.constant 0 : index
    %47 = vector.load %arg8[%c0_19, %c0_20] : memref<8x32xbf16, #tpu.memory_space<vmem>>, vector<8x8xbf16>
    tpu.vector_store %arg8[%c0_19, %c0_20], %46 {strides = array<i32>} : memref<8x32xbf16, #tpu.memory_space<vmem>>, vector<8x8xbf16>,
    %48 = vector.extract_strided_slice %27 {offsets = [0, 8], sizes = [8, 8], strides = [1, 1]} : vector<8x96xbf16> to vector<8x8xbf16>
    %49 = vector.extract_strided_slice %27 {offsets = [0, 40], sizes = [8, 8], strides = [1, 1]} : vector<8x96xbf16> to vector<8x8xbf16>
    %50 = vector.extract_strided_slice %27 {offsets = [0, 72], sizes = [8, 8], strides = [1, 1]} : vector<8x96xbf16> to vector<8x8xbf16>
    %cst_21 = arith.constant dense<0.000000e+00> : vector<8x8xf32>
    %51 = tpu.matmul %48, %49, %cst_21 {dimension_numbers = #tpu.dot_dimension_numbers<[1], [1], [0], [0], [0, 0, 1, 0], [], []>} : vector<8x8xbf16>, vector<8x8xbf16>, vector<8x8xf32> -> vector<8x8xf32>
    %cst_22 = arith.constant 0.353553385 : f32
    %52 = vector.broadcast %cst_22 : f32 to vector<8x8xf32>
    %53 = arith.mulf %51, %52 : vector<8x8xf32>
    %cst_23 = arith.constant dense<0xFF800000> : vector<8xf32>
    %54 = vector.multi_reduction <maximumf>, %53, %cst_23 [1] : vector<8x8xf32> to vector<8xf32>
    %55 = vector.shape_cast %54 : vector<8xf32> to vector<8x1xf32>
    %56 = vector.broadcast %55 : vector<8x1xf32> to vector<8x8xf32>
    %57 = arith.subf %53, %56 : vector<8x8xf32>
    %58 = math.exp %57 : vector<8x8xf32>
    %cst_24 = arith.constant dense<0.000000e+00> : vector<8xf32>
    %59 = vector.multi_reduction <add>, %58, %cst_24 [1] : vector<8x8xf32> to vector<8xf32>
    %60 = vector.shape_cast %59 : vector<8xf32> to vector<8x1xf32>
    %61 = tpu.reciprocal %60 {approx = true} : vector<8x1xf32> -> vector<8x1xf32>
    %62 = vector.broadcast %61 : vector<8x1xf32> to vector<8x8xf32>
    %63 = arith.mulf %58, %62 : vector<8x8xf32>
    %64 = arith.truncf %63 : vector<8x8xf32> to vector<8x8xbf16>
    %cst_25 = arith.constant dense<0.000000e+00> : vector<8x8xf32>
    %65 = tpu.matmul %64, %50, %cst_25 {dimension_numbers = #tpu.dot_dimension_numbers<[1], [0], [0], [1], [0, 0, 1, 1], [], []>} : vector<8x8xbf16>, vector<8x8xbf16>, vector<8x8xf32> -> vector<8x8xf32>
    %66 = arith.truncf %65 : vector<8x8xf32> to vector<8x8xbf16>
    %c0_26 = arith.constant 0 : index
    %c8 = arith.constant 8 : index
    %67 = vector.load %arg8[%c0_26, %c8] : memref<8x32xbf16, #tpu.memory_space<vmem>>, vector<8x8xbf16>
    tpu.vector_store %arg8[%c0_26, %c8], %66 {strides = array<i32>} : memref<8x32xbf16, #tpu.memory_space<vmem>>, vector<8x8xbf16>,
    %68 = vector.extract_strided_slice %27 {offsets = [0, 16], sizes = [8, 8], strides = [1, 1]} : vector<8x96xbf16> to vector<8x8xbf16>
    %69 = vector.extract_strided_slice %27 {offsets = [0, 48], sizes = [8, 8], strides = [1, 1]} : vector<8x96xbf16> to vector<8x8xbf16>
    %70 = vector.extract_strided_slice %27 {offsets = [0, 80], sizes = [8, 8], strides = [1, 1]} : vector<8x96xbf16> to vector<8x8xbf16>
    %cst_27 = arith.constant dense<0.000000e+00> : vector<8x8xf32>
    %71 = tpu.matmul %68, %69, %cst_27 {dimension_numbers = #tpu.dot_dimension_numbers<[1], [1], [0], [0], [0, 0, 1, 0], [], []>} : vector<8x8xbf16>, vector<8x8xbf16>, vector<8x8xf32> -> vector<8x8xf32>
    %cst_28 = arith.constant 0.353553385 : f32
    %72 = vector.broadcast %cst_28 : f32 to vector<8x8xf32>
    %73 = arith.mulf %71, %72 : vector<8x8xf32>
    %cst_29 = arith.constant dense<0xFF800000> : vector<8xf32>
    %74 = vector.multi_reduction <maximumf>, %73, %cst_29 [1] : vector<8x8xf32> to vector<8xf32>
    %75 = vector.shape_cast %74 : vector<8xf32> to vector<8x1xf32>
    %76 = vector.broadcast %75 : vector<8x1xf32> to vector<8x8xf32>
    %77 = arith.subf %73, %76 : vector<8x8xf32>
    %78 = math.exp %77 : vector<8x8xf32>
    %cst_30 = arith.constant dense<0.000000e+00> : vector<8xf32>
    %79 = vector.multi_reduction <add>, %78, %cst_30 [1] : vector<8x8xf32> to vector<8xf32>
    %80 = vector.shape_cast %79 : vector<8xf32> to vector<8x1xf32>
    %81 = tpu.reciprocal %80 {approx = true} : vector<8x1xf32> -> vector<8x1xf32>
    %82 = vector.broadcast %81 : vector<8x1xf32> to vector<8x8xf32>
    %83 = arith.mulf %78, %82 : vector<8x8xf32>
    %84 = arith.truncf %83 : vector<8x8xf32> to vector<8x8xbf16>
    %cst_31 = arith.constant dense<0.000000e+00> : vector<8x8xf32>
    %85 = tpu.matmul %84, %70, %cst_31 {dimension_numbers = #tpu.dot_dimension_numbers<[1], [0], [0], [1], [0, 0, 1, 1], [], []>} : vector<8x8xbf16>, vector<8x8xbf16>, vector<8x8xf32> -> vector<8x8xf32>
    %86 = arith.truncf %85 : vector<8x8xf32> to vector<8x8xbf16>
    %c0_32 = arith.constant 0 : index
    %c16 = arith.constant 16 : index
    %87 = vector.load %arg8[%c0_32, %c16] : memref<8x32xbf16, #tpu.memory_space<vmem>>, vector<8x8xbf16>
    tpu.vector_store %arg8[%c0_32, %c16], %86 {strides = array<i32>} : memref<8x32xbf16, #tpu.memory_space<vmem>>, vector<8x8xbf16>,
    %88 = vector.extract_strided_slice %27 {offsets = [0, 24], sizes = [8, 8], strides = [1, 1]} : vector<8x96xbf16> to vector<8x8xbf16>
    %89 = vector.extract_strided_slice %27 {offsets = [0, 56], sizes = [8, 8], strides = [1, 1]} : vector<8x96xbf16> to vector<8x8xbf16>
    %90 = vector.extract_strided_slice %27 {offsets = [0, 88], sizes = [8, 8], strides = [1, 1]} : vector<8x96xbf16> to vector<8x8xbf16>
    %cst_33 = arith.constant dense<0.000000e+00> : vector<8x8xf32>
    %91 = tpu.matmul %88, %89, %cst_33 {dimension_numbers = #tpu.dot_dimension_numbers<[1], [1], [0], [0], [0, 0, 1, 0], [], []>} : vector<8x8xbf16>, vector<8x8xbf16>, vector<8x8xf32> -> vector<8x8xf32>
    %cst_34 = arith.constant 0.353553385 : f32
    %92 = vector.broadcast %cst_34 : f32 to vector<8x8xf32>
    %93 = arith.mulf %91, %92 : vector<8x8xf32>
    %cst_35 = arith.constant dense<0xFF800000> : vector<8xf32>
    %94 = vector.multi_reduction <maximumf>, %93, %cst_35 [1] : vector<8x8xf32> to vector<8xf32>
    %95 = vector.shape_cast %94 : vector<8xf32> to vector<8x1xf32>
    %96 = vector.broadcast %95 : vector<8x1xf32> to vector<8x8xf32>
    %97 = arith.subf %93, %96 : vector<8x8xf32>
    %98 = math.exp %97 : vector<8x8xf32>
    %cst_36 = arith.constant dense<0.000000e+00> : vector<8xf32>
    %99 = vector.multi_reduction <add>, %98, %cst_36 [1] : vector<8x8xf32> to vector<8xf32>
    %100 = vector.shape_cast %99 : vector<8xf32> to vector<8x1xf32>
    %101 = tpu.reciprocal %100 {approx = true} : vector<8x1xf32> -> vector<8x1xf32>
    %102 = vector.broadcast %101 : vector<8x1xf32> to vector<8x8xf32>
    %103 = arith.mulf %98, %102 : vector<8x8xf32>
    %104 = arith.truncf %103 : vector<8x8xf32> to vector<8x8xbf16>
    %cst_37 = arith.constant dense<0.000000e+00> : vector<8x8xf32>
    %105 = tpu.matmul %104, %90, %cst_37 {dimension_numbers = #tpu.dot_dimension_numbers<[1], [0], [0], [1], [0, 0, 1, 1], [], []>} : vector<8x8xbf16>, vector<8x8xbf16>, vector<8x8xf32> -> vector<8x8xf32>
    %106 = arith.truncf %105 : vector<8x8xf32> to vector<8x8xbf16>
    %c0_38 = arith.constant 0 : index
    %c24 = arith.constant 24 : index
    %107 = vector.load %arg8[%c0_38, %c24] : memref<8x32xbf16, #tpu.memory_space<vmem>>, vector<8x8xbf16>
    tpu.vector_store %arg8[%c0_38, %c24], %106 {strides = array<i32>} : memref<8x32xbf16, #tpu.memory_space<vmem>>, vector<8x8xbf16>,
    %c0_39 = arith.constant 0 : index
    %c0_40 = arith.constant 0 : index
    %108 = vector.load %arg8[%c0_39, %c0_40] : memref<8x32xbf16, #tpu.memory_space<vmem>>, vector<8x32xbf16>
    %c0_41 = arith.constant 0 : index
    %c0_42 = arith.constant 0 : index
    %109 = vector.load %arg3[%c0_41, %c0_42] : memref<32x32xbf16, #tpu.memory_space<vmem>>, vector<32x32xbf16>
    %cst_43 = arith.constant dense<0.000000e+00> : vector<8x32xf32>
    %110 = tpu.matmul %108, %109, %cst_43 {dimension_numbers = #tpu.dot_dimension_numbers<[1], [0], [0], [1], [0, 0, 1, 1], [], []>} : vector<8x32xbf16>, vector<32x32xbf16>, vector<8x32xf32> -> vector<8x32xf32>
    %111 = arith.addf %1, %110 : vector<8x32xf32>
    %112 = vector.broadcast %3 : vector<1x32xf32> to vector<8x32xf32>
    %113 = arith.addf %111, %112 : vector<8x32xf32>
    %cst_44 = arith.constant dense<0.000000e+00> : vector<8xf32>
    %114 = vector.multi_reduction <add>, %113, %cst_44 [1] : vector<8x32xf32> to vector<8xf32>
    %115 = vector.shape_cast %114 : vector<8xf32> to vector<8x1xf32>
    %cst_45 = arith.constant 3.200000e+01 : f32
    %116 = vector.broadcast %cst_45 : f32 to vector<8x1xf32>
    %117 = arith.divf %115, %116 : vector<8x1xf32>
    %118 = vector.broadcast %117 : vector<8x1xf32> to vector<8x32xf32>
    %119 = arith.subf %113, %118 : vector<8x32xf32>
    %120 = arith.mulf %119, %119 : vector<8x32xf32>
    %cst_46 = arith.constant dense<0.000000e+00> : vector<8xf32>
    %121 = vector.multi_reduction <add>, %120, %cst_46 [1] : vector<8x32xf32> to vector<8xf32>
    %122 = vector.shape_cast %121 : vector<8xf32> to vector<8x1xf32>
    %cst_47 = arith.constant 3.200000e+01 : f32
    %123 = vector.broadcast %cst_47 : f32 to vector<8x1xf32>
    %124 = arith.divf %122, %123 : vector<8x1xf32>
    %cst_48 = arith.constant 9.99999997E-7 : f32
    %125 = vector.broadcast %cst_48 : f32 to vector<8x1xf32>
    %126 = arith.addf %124, %125 : vector<8x1xf32>
    %127 = math.rsqrt %126 : vector<8x1xf32>
    %128 = vector.broadcast %127 : vector<8x1xf32> to vector<8x32xf32>
    %129 = arith.mulf %119, %128 : vector<8x32xf32>
    %130 = arith.truncf %129 : vector<8x32xf32> to vector<8x32xbf16>
    %c0_49 = arith.constant 0 : index
    %c0_50 = arith.constant 0 : index
    %131 = vector.load %arg4[%c0_49, %c0_50] : memref<32x2048xbf16, #tpu.memory_space<vmem>>, vector<32x2048xbf16>
    %cst_51 = arith.constant dense<0.000000e+00> : vector<8x2048xf32>
    %132 = tpu.matmul %130, %131, %cst_51 {dimension_numbers = #tpu.dot_dimension_numbers<[1], [0], [0], [1], [0, 0, 1, 1], [], []>} : vector<8x32xbf16>, vector<32x2048xbf16>, vector<8x2048xf32> -> vector<8x2048xf32>
    %133 = vector.broadcast %4 : vector<1x2048xf32> to vector<8x2048xf32>
    %134 = arith.addf %132, %133 : vector<8x2048xf32>
    %cst_52 = arith.constant 0.000000e+00 : f32
    %135 = vector.broadcast %cst_52 : f32 to vector<8x2048xf32>
    %136 = arith.maximumf %134, %135 : vector<8x2048xf32>
    %137 = arith.truncf %136 : vector<8x2048xf32> to vector<8x2048xbf16>
    %c0_53 = arith.constant 0 : index
    %c0_54 = arith.constant 0 : index
    %138 = vector.load %arg5[%c0_53, %c0_54] : memref<2048x32xbf16, #tpu.memory_space<vmem>>, vector<2048x32xbf16>
    %cst_55 = arith.constant dense<0.000000e+00> : vector<8x32xf32>
    %139 = tpu.matmul %137, %138, %cst_55 {dimension_numbers = #tpu.dot_dimension_numbers<[1], [0], [0], [1], [0, 0, 1, 1], [], []>} : vector<8x2048xbf16>, vector<2048x32xbf16>, vector<8x32xf32> -> vector<8x32xf32>
    %140 = vector.broadcast %5 : vector<1x32xf32> to vector<8x32xf32>
    %141 = arith.addf %139, %140 : vector<8x32xf32>
    %142 = arith.addf %113, %141 : vector<8x32xf32>
    %c0_56 = arith.constant 0 : index
    %c0_57 = arith.constant 0 : index
    %c0_58 = arith.constant 0 : index
    %143 = vector.load %arg7[%c0_56, %c0_57, %c0_58] : memref<1x8x32xf32, #tpu.memory_space<vmem>>, vector<1x8x32xf32>
    %144 = vector.shape_cast %143 : vector<1x8x32xf32> to vector<8x32xf32>
    %145 = vector.shape_cast %142 : vector<8x32xf32> to vector<1x8x32xf32>
    tpu.vector_store %arg7[%c0_56, %c0_57, %c0_58], %145 {strides = array<i32>} : memref<1x8x32xf32, #tpu.memory_space<vmem>>, vector<1x8x32xf32>,
    return
  }
  func.func @transform_0(%arg0: i32) -> (i32, i32, i32) {
    %c0_i32 = arith.constant 0 : i32
    %c0_i32_0 = arith.constant 0 : i32
    %c0_i32_1 = arith.constant 0 : i32
    return %arg0, %c0_i32, %c0_i32_0 : i32, i32, i32
  }
  func.func @transform_1(%arg0: i32) -> (i32, i32) {
    %c0_i32 = arith.constant 0 : i32
    %c0_i32_0 = arith.constant 0 : i32
    %c0_i32_1 = arith.constant 0 : i32
    return %c0_i32, %c0_i32_0 : i32, i32
  }
  func.func @transform_2(%arg0: i32) -> (i32, i32) {
    %c0_i32 = arith.constant 0 : i32
    %c0_i32_0 = arith.constant 0 : i32
    %c0_i32_1 = arith.constant 0 : i32
    return %c0_i32, %c0_i32_0 : i32, i32
  }
  func.func @transform_3(%arg0: i32) -> (i32, i32) {
    %c0_i32 = arith.constant 0 : i32
    %c0_i32_0 = arith.constant 0 : i32
    %c0_i32_1 = arith.constant 0 : i32
    return %c0_i32, %c0_i32_0 : i32, i32
  }
  func.func @transform_4(%arg0: i32) -> (i32, i32) {
    %c0_i32 = arith.constant 0 : i32
    %c0_i32_0 = arith.constant 0 : i32
    %c0_i32_1 = arith.constant 0 : i32
    return %c0_i32, %c0_i32_0 : i32, i32
  }
  func.func @transform_5(%arg0: i32) -> (i32, i32) {
    %c0_i32 = arith.constant 0 : i32
    %c0_i32_0 = arith.constant 0 : i32
    %c0_i32_1 = arith.constant 0 : i32
    return %c0_i32, %c0_i32_0 : i32, i32
  }
  func.func @transform_6(%arg0: i32) -> (i32, i32, i32) {
    %c0_i32 = arith.constant 0 : i32
    %c0_i32_0 = arith.constant 0 : i32
    %c0_i32_1 = arith.constant 0 : i32
    return %arg0, %c0_i32, %c0_i32_0 : i32, i32, i32
  }
}

module attributes {stable_mosaic.version = 11 : i64} {
  func.func @_transformer_block_kernel(%arg0: i32, %arg1: memref<1x8x32xf32, #tpu.memory_space<vmem>>, %arg2: memref<32x96xbf16, #tpu.memory_space<vmem>>, %arg3: memref<32x32xbf16, #tpu.memory_space<vmem>>, %arg4: memref<32x2048xbf16, #tpu.memory_space<vmem>>, %arg5: memref<2048x32xbf16, #tpu.memory_space<vmem>>, %arg6: memref<4x2048xf32, #tpu.memory_space<vmem>>, %arg7: memref<1x8x32xf32, #tpu.memory_space<vmem>>, %arg8: memref<8x32xbf16, #tpu.memory_space<vmem>>) attributes {dimension_semantics = [#tpu.dimension_semantics<parallel>], iteration_bounds = array<i64: 2>, scalar_prefetch = 0 : i64, scratch_operands = 1 : i64, tpu.core_type = #tpu.core_type<tc>, window_params = [{transform_indices = @transform_0, window_bounds = array<i64: 1, 8, 32>}, {pipeline_mode = #tpu.pipeline_mode<synchronous>, transform_indices = @transform_1, window_bounds = array<i64: 32, 96>}, {pipeline_mode = #tpu.pipeline_mode<synchronous>, transform_indices = @transform_2, window_bounds = array<i64: 32, 32>}, {pipeline_mode = #tpu.pipeline_mode<synchronous>, transform_indices = @transform_3, window_bounds = array<i64: 32, 2048>}, {pipeline_mode = #tpu.pipeline_mode<synchronous>, transform_indices = @transform_4, window_bounds = array<i64: 2048, 32>}, {pipeline_mode = #tpu.pipeline_mode<synchronous>, transform_indices = @transform_5, window_bounds = array<i64: 4, 2048>}, {transform_indices = @transform_6, window_bounds = array<i64: 1, 8, 32>}]} {
    %c0 = arith.constant 0 : index
    %c0_0 = arith.constant 0 : index
    %c0_1 = arith.constant 0 : index
    %0 = vector.load %arg1[%c0, %c0_0, %c0_1] : memref<1x8x32xf32, #tpu.memory_space<vmem>>, vector<1x8x32xf32>
    %1 = vector.shape_cast %0 : vector<1x8x32xf32> to vector<8x32xf32>
    %c0_2 = arith.constant 0 : index
    %c0_3 = arith.constant 0 : index
    %2 = vector.load %arg6[%c0_2, %c0_3] : memref<4x2048xf32, #tpu.memory_space<vmem>>, vector<1x96xf32>
    %c1 = arith.constant 1 : index
    %c0_4 = arith.constant 0 : index
    %3 = vector.load %arg6[%c1, %c0_4] : memref<4x2048xf32, #tpu.memory_space<vmem>>, vector<1x32xf32>
    %c2 = arith.constant 2 : index
    %c0_5 = arith.constant 0 : index
    %4 = vector.load %arg6[%c2, %c0_5] : memref<4x2048xf32, #tpu.memory_space<vmem>>, vector<1x2048xf32>
    %c3 = arith.constant 3 : index
    %c0_6 = arith.constant 0 : index
    %5 = vector.load %arg6[%c3, %c0_6] : memref<4x2048xf32, #tpu.memory_space<vmem>>, vector<1x32xf32>
    %cst = arith.constant dense<0.000000e+00> : vector<8xf32>
    %6 = vector.multi_reduction <add>, %1, %cst [1] : vector<8x32xf32> to vector<8xf32>
    %7 = vector.shape_cast %6 : vector<8xf32> to vector<8x1xf32>
    %cst_7 = arith.constant 3.200000e+01 : f32
    %8 = vector.broadcast %cst_7 : f32 to vector<8x1xf32>
    %9 = arith.divf %7, %8 : vector<8x1xf32>
    %10 = vector.broadcast %9 : vector<8x1xf32> to vector<8x32xf32>
    %11 = arith.subf %1, %10 : vector<8x32xf32>
    %12 = arith.mulf %11, %11 : vector<8x32xf32>
    %cst_8 = arith.constant dense<0.000000e+00> : vector<8xf32>
    %13 = vector.multi_reduction <add>, %12, %cst_8 [1] : vector<8x32xf32> to vector<8xf32>
    %14 = vector.shape_cast %13 : vector<8xf32> to vector<8x1xf32>
    %cst_9 = arith.constant 3.200000e+01 : f32
    %15 = vector.broadcast %cst_9 : f32 to vector<8x1xf32>
    %16 = arith.divf %14, %15 : vector<8x1xf32>
    %cst_10 = arith.constant 9.99999997E-7 : f32
    %17 = vector.broadcast %cst_10 : f32 to vector<8x1xf32>
    %18 = arith.addf %16, %17 : vector<8x1xf32>
    %19 = math.rsqrt %18 : vector<8x1xf32>
    %20 = vector.broadcast %19 : vector<8x1xf32> to vector<8x32xf32>
    %21 = arith.mulf %11, %20 : vector<8x32xf32>
    %22 = arith.truncf %21 : vector<8x32xf32> to vector<8x32xbf16>
    %c0_11 = arith.constant 0 : index
    %c0_12 = arith.constant 0 : index
    %23 = vector.load %arg2[%c0_11, %c0_12] : memref<32x96xbf16, #tpu.memory_space<vmem>>, vector<32x96xbf16>
    %cst_13 = arith.constant dense<0.000000e+00> : vector<8x96xf32>
    %24 = tpu.matmul %22, %23, %cst_13 {dimension_numbers = #tpu.dot_dimension_numbers<[1], [0], [0], [1], [0, 0, 1, 1], [], []>} : vector<8x32xbf16>, vector<32x96xbf16>, vector<8x96xf32> -> vector<8x96xf32>
    %25 = vector.broadcast %2 : vector<1x96xf32> to vector<8x96xf32>
    %26 = arith.addf %24, %25 : vector<8x96xf32>
    %27 = arith.truncf %26 : vector<8x96xf32> to vector<8x96xbf16>
    %28 = vector.extract_strided_slice %27 {offsets = [0, 0], sizes = [8, 8], strides = [1, 1]} : vector<8x96xbf16> to vector<8x8xbf16>
    %29 = vector.extract_strided_slice %27 {offsets = [0, 32], sizes = [8, 8], strides = [1, 1]} : vector<8x96xbf16> to vector<8x8xbf16>
    %30 = vector.extract_strided_slice %27 {offsets = [0, 64], sizes = [8, 8], strides = [1, 1]} : vector<8x96xbf16> to vector<8x8xbf16>
    %cst_14 = arith.constant dense<0.000000e+00> : vector<8x8xf32>
    %31 = tpu.matmul %28, %29, %cst_14 {dimension_numbers = #tpu.dot_dimension_numbers<[1], [1], [0], [0], [0, 0, 1, 0], [], []>} : vector<8x8xbf16>, vector<8x8xbf16>, vector<8x8xf32> -> vector<8x8xf32>
    %cst_15 = arith.constant 0.353553385 : f32
    %32 = vector.broadcast %cst_15 : f32 to vector<8x8xf32>
    %33 = arith.mulf %31, %32 : vector<8x8xf32>
    %cst_16 = arith.constant dense<0xFF800000> : vector<8xf32>
    %34 = vector.multi_reduction <maximumf>, %33, %cst_16 [1] : vector<8x8xf32> to vector<8xf32>
    %35 = vector.shape_cast %34 : vector<8xf32> to vector<8x1xf32>
    %36 = vector.broadcast %35 : vector<8x1xf32> to vector<8x8xf32>
    %37 = arith.subf %33, %36 : vector<8x8xf32>
    %38 = math.exp %37 : vector<8x8xf32>
    %cst_17 = arith.constant dense<0.000000e+00> : vector<8xf32>
    %39 = vector.multi_reduction <add>, %38, %cst_17 [1] : vector<8x8xf32> to vector<8xf32>
    %40 = vector.shape_cast %39 : vector<8xf32> to vector<8x1xf32>
    %41 = tpu.reciprocal %40 {approx = true} : vector<8x1xf32> -> vector<8x1xf32>
    %42 = vector.broadcast %41 : vector<8x1xf32> to vector<8x8xf32>
    %43 = arith.mulf %38, %42 : vector<8x8xf32>
    %44 = arith.truncf %43 : vector<8x8xf32> to vector<8x8xbf16>
    %cst_18 = arith.constant dense<0.000000e+00> : vector<8x8xf32>
    %45 = tpu.matmul %44, %30, %cst_18 {dimension_numbers = #tpu.dot_dimension_numbers<[1], [0], [0], [1], [0, 0, 1, 1], [], []>} : vector<8x8xbf16>, vector<8x8xbf16>, vector<8x8xf32> -> vector<8x8xf32>
    %46 = arith.truncf %45 : vector<8x8xf32> to vector<8x8xbf16>
    %c0_19 = arith.constant 0 : index
    %c0_20 = arith.constant 0 : index
    %47 = vector.load %arg8[%c0_19, %c0_20] : memref<8x32xbf16, #tpu.memory_space<vmem>>, vector<8x8xbf16>
    tpu.vector_store %arg8[%c0_19, %c0_20], %46 {strides = array<i32>} : memref<8x32xbf16, #tpu.memory_space<vmem>>, vector<8x8xbf16>,
    %48 = vector.extract_strided_slice %27 {offsets = [0, 8], sizes = [8, 8], strides = [1, 1]} : vector<8x96xbf16> to vector<8x8xbf16>
    %49 = vector.extract_strided_slice %27 {offsets = [0, 40], sizes = [8, 8], strides = [1, 1]} : vector<8x96xbf16> to vector<8x8xbf16>
    %50 = vector.extract_strided_slice %27 {offsets = [0, 72], sizes = [8, 8], strides = [1, 1]} : vector<8x96xbf16> to vector<8x8xbf16>
    %cst_21 = arith.constant dense<0.000000e+00> : vector<8x8xf32>
    %51 = tpu.matmul %48, %49, %cst_21 {dimension_numbers = #tpu.dot_dimension_numbers<[1], [1], [0], [0], [0, 0, 1, 0], [], []>} : vector<8x8xbf16>, vector<8x8xbf16>, vector<8x8xf32> -> vector<8x8xf32>
    %cst_22 = arith.constant 0.353553385 : f32
    %52 = vector.broadcast %cst_22 : f32 to vector<8x8xf32>
    %53 = arith.mulf %51, %52 : vector<8x8xf32>
    %cst_23 = arith.constant dense<0xFF800000> : vector<8xf32>
    %54 = vector.multi_reduction <maximumf>, %53, %cst_23 [1] : vector<8x8xf32> to vector<8xf32>
    %55 = vector.shape_cast %54 : vector<8xf32> to vector<8x1xf32>
    %56 = vector.broadcast %55 : vector<8x1xf32> to vector<8x8xf32>
    %57 = arith.subf %53, %56 : vector<8x8xf32>
    %58 = math.exp %57 : vector<8x8xf32>
    %cst_24 = arith.constant dense<0.000000e+00> : vector<8xf32>
    %59 = vector.multi_reduction <add>, %58, %cst_24 [1] : vector<8x8xf32> to vector<8xf32>
    %60 = vector.shape_cast %59 : vector<8xf32> to vector<8x1xf32>
    %61 = tpu.reciprocal %60 {approx = true} : vector<8x1xf32> -> vector<8x1xf32>
    %62 = vector.broadcast %61 : vector<8x1xf32> to vector<8x8xf32>
    %63 = arith.mulf %58, %62 : vector<8x8xf32>
    %64 = arith.truncf %63 : vector<8x8xf32> to vector<8x8xbf16>
    %cst_25 = arith.constant dense<0.000000e+00> : vector<8x8xf32>
    %65 = tpu.matmul %64, %50, %cst_25 {dimension_numbers = #tpu.dot_dimension_numbers<[1], [0], [0], [1], [0, 0, 1, 1], [], []>} : vector<8x8xbf16>, vector<8x8xbf16>, vector<8x8xf32> -> vector<8x8xf32>
    %66 = arith.truncf %65 : vector<8x8xf32> to vector<8x8xbf16>
    %c0_26 = arith.constant 0 : index
    %c8 = arith.constant 8 : index
    %67 = vector.load %arg8[%c0_26, %c8] : memref<8x32xbf16, #tpu.memory_space<vmem>>, vector<8x8xbf16>
    tpu.vector_store %arg8[%c0_26, %c8], %66 {strides = array<i32>} : memref<8x32xbf16, #tpu.memory_space<vmem>>, vector<8x8xbf16>,
    %68 = vector.extract_strided_slice %27 {offsets = [0, 16], sizes = [8, 8], strides = [1, 1]} : vector<8x96xbf16> to vector<8x8xbf16>
    %69 = vector.extract_strided_slice %27 {offsets = [0, 48], sizes = [8, 8], strides = [1, 1]} : vector<8x96xbf16> to vector<8x8xbf16>
    %70 = vector.extract_strided_slice %27 {offsets = [0, 80], sizes = [8, 8], strides = [1, 1]} : vector<8x96xbf16> to vector<8x8xbf16>
    %cst_27 = arith.constant dense<0.000000e+00> : vector<8x8xf32>
    %71 = tpu.matmul %68, %69, %cst_27 {dimension_numbers = #tpu.dot_dimension_numbers<[1], [1], [0], [0], [0, 0, 1, 0], [], []>} : vector<8x8xbf16>, vector<8x8xbf16>, vector<8x8xf32> -> vector<8x8xf32>
    %cst_28 = arith.constant 0.353553385 : f32
    %72 = vector.broadcast %cst_28 : f32 to vector<8x8xf32>
    %73 = arith.mulf %71, %72 : vector<8x8xf32>
    %cst_29 = arith.constant dense<0xFF800000> : vector<8xf32>
    %74 = vector.multi_reduction <maximumf>, %73, %cst_29 [1] : vector<8x8xf32> to vector<8xf32>
    %75 = vector.shape_cast %74 : vector<8xf32> to vector<8x1xf32>
    %76 = vector.broadcast %75 : vector<8x1xf32> to vector<8x8xf32>
    %77 = arith.subf %73, %76 : vector<8x8xf32>
    %78 = math.exp %77 : vector<8x8xf32>
    %cst_30 = arith.constant dense<0.000000e+00> : vector<8xf32>
    %79 = vector.multi_reduction <add>, %78, %cst_30 [1] : vector<8x8xf32> to vector<8xf32>
    %80 = vector.shape_cast %79 : vector<8xf32> to vector<8x1xf32>
    %81 = tpu.reciprocal %80 {approx = true} : vector<8x1xf32> -> vector<8x1xf32>
    %82 = vector.broadcast %81 : vector<8x1xf32> to vector<8x8xf32>
    %83 = arith.mulf %78, %82 : vector<8x8xf32>
    %84 = arith.truncf %83 : vector<8x8xf32> to vector<8x8xbf16>
    %cst_31 = arith.constant dense<0.000000e+00> : vector<8x8xf32>
    %85 = tpu.matmul %84, %70, %cst_31 {dimension_numbers = #tpu.dot_dimension_numbers<[1], [0], [0], [1], [0, 0, 1, 1], [], []>} : vector<8x8xbf16>, vector<8x8xbf16>, vector<8x8xf32> -> vector<8x8xf32>
    %86 = arith.truncf %85 : vector<8x8xf32> to vector<8x8xbf16>
    %c0_32 = arith.constant 0 : index
    %c16 = arith.constant 16 : index
    %87 = vector.load %arg8[%c0_32, %c16] : memref<8x32xbf16, #tpu.memory_space<vmem>>, vector<8x8xbf16>
    tpu.vector_store %arg8[%c0_32, %c16], %86 {strides = array<i32>} : memref<8x32xbf16, #tpu.memory_space<vmem>>, vector<8x8xbf16>,
    %88 = vector.extract_strided_slice %27 {offsets = [0, 24], sizes = [8, 8], strides = [1, 1]} : vector<8x96xbf16> to vector<8x8xbf16>
    %89 = vector.extract_strided_slice %27 {offsets = [0, 56], sizes = [8, 8], strides = [1, 1]} : vector<8x96xbf16> to vector<8x8xbf16>
    %90 = vector.extract_strided_slice %27 {offsets = [0, 88], sizes = [8, 8], strides = [1, 1]} : vector<8x96xbf16> to vector<8x8xbf16>
    %cst_33 = arith.constant dense<0.000000e+00> : vector<8x8xf32>
    %91 = tpu.matmul %88, %89, %cst_33 {dimension_numbers = #tpu.dot_dimension_numbers<[1], [1], [0], [0], [0, 0, 1, 0], [], []>} : vector<8x8xbf16>, vector<8x8xbf16>, vector<8x8xf32> -> vector<8x8xf32>
    %cst_34 = arith.constant 0.353553385 : f32
    %92 = vector.broadcast %cst_34 : f32 to vector<8x8xf32>
    %93 = arith.mulf %91, %92 : vector<8x8xf32>
    %cst_35 = arith.constant dense<0xFF800000> : vector<8xf32>
    %94 = vector.multi_reduction <maximumf>, %93, %cst_35 [1] : vector<8x8xf32> to vector<8xf32>
    %95 = vector.shape_cast %94 : vector<8xf32> to vector<8x1xf32>
    %96 = vector.broadcast %95 : vector<8x1xf32> to vector<8x8xf32>
    %97 = arith.subf %93, %96 : vector<8x8xf32>
    %98 = math.exp %97 : vector<8x8xf32>
    %cst_36 = arith.constant dense<0.000000e+00> : vector<8xf32>
    %99 = vector.multi_reduction <add>, %98, %cst_36 [1] : vector<8x8xf32> to vector<8xf32>
    %100 = vector.shape_cast %99 : vector<8xf32> to vector<8x1xf32>
    %101 = tpu.reciprocal %100 {approx = true} : vector<8x1xf32> -> vector<8x1xf32>
    %102 = vector.broadcast %101 : vector<8x1xf32> to vector<8x8xf32>
    %103 = arith.mulf %98, %102 : vector<8x8xf32>
    %104 = arith.truncf %103 : vector<8x8xf32> to vector<8x8xbf16>
    %cst_37 = arith.constant dense<0.000000e+00> : vector<8x8xf32>
    %105 = tpu.matmul %104, %90, %cst_37 {dimension_numbers = #tpu.dot_dimension_numbers<[1], [0], [0], [1], [0, 0, 1, 1], [], []>} : vector<8x8xbf16>, vector<8x8xbf16>, vector<8x8xf32> -> vector<8x8xf32>
    %106 = arith.truncf %105 : vector<8x8xf32> to vector<8x8xbf16>
    %c0_38 = arith.constant 0 : index
    %c24 = arith.constant 24 : index
    %107 = vector.load %arg8[%c0_38, %c24] : memref<8x32xbf16, #tpu.memory_space<vmem>>, vector<8x8xbf16>
    tpu.vector_store %arg8[%c0_38, %c24], %106 {strides = array<i32>} : memref<8x32xbf16, #tpu.memory_space<vmem>>, vector<8x8xbf16>,
    %c0_39 = arith.constant 0 : index
    %c0_40 = arith.constant 0 : index
    %108 = vector.load %arg8[%c0_39, %c0_40] : memref<8x32xbf16, #tpu.memory_space<vmem>>, vector<8x32xbf16>
    %c0_41 = arith.constant 0 : index
    %c0_42 = arith.constant 0 : index
    %109 = vector.load %arg3[%c0_41, %c0_42] : memref<32x32xbf16, #tpu.memory_space<vmem>>, vector<32x32xbf16>
    %cst_43 = arith.constant dense<0.000000e+00> : vector<8x32xf32>
    %110 = tpu.matmul %108, %109, %cst_43 {dimension_numbers = #tpu.dot_dimension_numbers<[1], [0], [0], [1], [0, 0, 1, 1], [], []>} : vector<8x32xbf16>, vector<32x32xbf16>, vector<8x32xf32> -> vector<8x32xf32>
    %111 = arith.addf %1, %110 : vector<8x32xf32>
    %112 = vector.broadcast %3 : vector<1x32xf32> to vector<8x32xf32>
    %113 = arith.addf %111, %112 : vector<8x32xf32>
    %cst_44 = arith.constant dense<0.000000e+00> : vector<8xf32>
    %114 = vector.multi_reduction <add>, %113, %cst_44 [1] : vector<8x32xf32> to vector<8xf32>
    %115 = vector.shape_cast %114 : vector<8xf32> to vector<8x1xf32>
    %cst_45 = arith.constant 3.200000e+01 : f32
    %116 = vector.broadcast %cst_45 : f32 to vector<8x1xf32>
    %117 = arith.divf %115, %116 : vector<8x1xf32>
    %118 = vector.broadcast %117 : vector<8x1xf32> to vector<8x32xf32>
    %119 = arith.subf %113, %118 : vector<8x32xf32>
    %120 = arith.mulf %119, %119 : vector<8x32xf32>
    %cst_46 = arith.constant dense<0.000000e+00> : vector<8xf32>
    %121 = vector.multi_reduction <add>, %120, %cst_46 [1] : vector<8x32xf32> to vector<8xf32>
    %122 = vector.shape_cast %121 : vector<8xf32> to vector<8x1xf32>
    %cst_47 = arith.constant 3.200000e+01 : f32
    %123 = vector.broadcast %cst_47 : f32 to vector<8x1xf32>
    %124 = arith.divf %122, %123 : vector<8x1xf32>
    %cst_48 = arith.constant 9.99999997E-7 : f32
    %125 = vector.broadcast %cst_48 : f32 to vector<8x1xf32>
    %126 = arith.addf %124, %125 : vector<8x1xf32>
    %127 = math.rsqrt %126 : vector<8x1xf32>
    %128 = vector.broadcast %127 : vector<8x1xf32> to vector<8x32xf32>
    %129 = arith.mulf %119, %128 : vector<8x32xf32>
    %130 = arith.truncf %129 : vector<8x32xf32> to vector<8x32xbf16>
    %c0_49 = arith.constant 0 : index
    %c0_50 = arith.constant 0 : index
    %131 = vector.load %arg4[%c0_49, %c0_50] : memref<32x2048xbf16, #tpu.memory_space<vmem>>, vector<32x2048xbf16>
    %cst_51 = arith.constant dense<0.000000e+00> : vector<8x2048xf32>
    %132 = tpu.matmul %130, %131, %cst_51 {dimension_numbers = #tpu.dot_dimension_numbers<[1], [0], [0], [1], [0, 0, 1, 1], [], []>} : vector<8x32xbf16>, vector<32x2048xbf16>, vector<8x2048xf32> -> vector<8x2048xf32>
    %133 = vector.broadcast %4 : vector<1x2048xf32> to vector<8x2048xf32>
    %134 = arith.addf %132, %133 : vector<8x2048xf32>
    %cst_52 = arith.constant 0.000000e+00 : f32
    %135 = vector.broadcast %cst_52 : f32 to vector<8x2048xf32>
    %136 = arith.maximumf %134, %135 : vector<8x2048xf32>
    %137 = arith.truncf %136 : vector<8x2048xf32> to vector<8x2048xbf16>
    %c0_53 = arith.constant 0 : index
    %c0_54 = arith.constant 0 : index
    %138 = vector.load %arg5[%c0_53, %c0_54] : memref<2048x32xbf16, #tpu.memory_space<vmem>>, vector<2048x32xbf16>
    %cst_55 = arith.constant dense<0.000000e+00> : vector<8x32xf32>
    %139 = tpu.matmul %137, %138, %cst_55 {dimension_numbers = #tpu.dot_dimension_numbers<[1], [0], [0], [1], [0, 0, 1, 1], [], []>} : vector<8x2048xbf16>, vector<2048x32xbf16>, vector<8x32xf32> -> vector<8x32xf32>
    %140 = vector.broadcast %5 : vector<1x32xf32> to vector<8x32xf32>
    %141 = arith.addf %139, %140 : vector<8x32xf32>
    %142 = arith.addf %113, %141 : vector<8x32xf32>
    %c0_56 = arith.constant 0 : index
    %c0_57 = arith.constant 0 : index
    %c0_58 = arith.constant 0 : index
    %143 = vector.load %arg7[%c0_56, %c0_57, %c0_58] : memref<1x8x32xf32, #tpu.memory_space<vmem>>, vector<1x8x32xf32>
    %144 = vector.shape_cast %143 : vector<1x8x32xf32> to vector<8x32xf32>
    %145 = vector.shape_cast %142 : vector<8x32xf32> to vector<1x8x32xf32>
    tpu.vector_store %arg7[%c0_56, %c0_57, %c0_58], %145 {strides = array<i32>} : memref<1x8x32xf32, #tpu.memory_space<vmem>>, vector<1x8x32xf32>,
    return
  }
  func.func @transform_0(%arg0: i32) -> (i32, i32, i32) {
    %c0_i32 = arith.constant 0 : i32
    %c0_i32_0 = arith.constant 0 : i32
    %c0_i32_1 = arith.constant 0 : i32
    return %arg0, %c0_i32, %c0_i32_0 : i32, i32, i32
  }
  func.func @transform_1(%arg0: i32) -> (i32, i32) {
    %c0_i32 = arith.constant 0 : i32
    %c0_i32_0 = arith.constant 0 : i32
    %c0_i32_1 = arith.constant 0 : i32
    return %c0_i32, %c0_i32_0 : i32, i32
  }
  func.func @transform_2(%arg0: i32) -> (i32, i32) {
    %c0_i32 = arith.constant 0 : i32
    %c0_i32_0 = arith.constant 0 : i32
    %c0_i32_1 = arith.constant 0 : i32
    return %c0_i32, %c0_i32_0 : i32, i32
  }
  func.func @transform_3(%arg0: i32) -> (i32, i32) {
    %c0_i32 = arith.constant 0 : i32
    %c0_i32_0 = arith.constant 0 : i32
    %c0_i32_1 = arith.constant 0 : i32
    return %c0_i32, %c0_i32_0 : i32, i32
  }
  func.func @transform_4(%arg0: i32) -> (i32, i32) {
    %c0_i32 = arith.constant 0 : i32
    %c0_i32_0 = arith.constant 0 : i32
    %c0_i32_1 = arith.constant 0 : i32
    return %c0_i32, %c0_i32_0 : i32, i32
  }
  func.func @transform_5(%arg0: i32) -> (i32, i32) {
    %c0_i32 = arith.constant 0 : i32
    %c0_i32_0 = arith.constant 0 : i32
    %c0_i32_1 = arith.constant 0 : i32
    return %c0_i32, %c0_i32_0 : i32, i32
  }
  func.func @transform_6(%arg0: i32) -> (i32, i32, i32) {
    %c0_i32 = arith.constant 0 : i32
    %c0_i32_0 = arith.constant 0 : i32
    %c0_i32_1 = arith.constant 0 : i32
    return %arg0, %c0_i32, %c0_i32_0 : i32, i32, i32
  }
}

</mosaic_0001>

<llo_original>
// kernel: tpu_custom_call.1
$region0: #{tpu_custom_call.1}
  #allocation0 [shape = 'u32[]', space=smem, size = 0x4, offset = 0x4, fixed_abs, tag = 'smem constant byte address 0x4 - core index']
  #allocation1 [shape = 'u32[72,128]{1,0:T(1,128)}', space=vmem, size = 0x9000, scoped, tag = 'internal scratch']
  #allocation2 [shape = 'bf16[8,32]{1,0:T(8,128)(2,1)}', space=vmem, size = 0x800, scoped, tag = 'scratch operand']
  %s0 = inlined_call_operand.vmem [shape: f32[2,8,32], index: 0, kind: input, shape index: {}]
  %s1 = inlined_call_operand.vmem [shape: bf16[32,96], index: 1, kind: input, shape index: {}]
  %s2 = inlined_call_operand.vmem [shape: bf16[32,32], index: 2, kind: input, shape index: {}]
  %s3 = inlined_call_operand.vmem [shape: bf16[32,2048], index: 3, kind: input, shape index: {}]
  %s4 = inlined_call_operand.vmem [shape: bf16[2048,32], index: 4, kind: input, shape index: {}]
  %s5 = inlined_call_operand.vmem [shape: f32[4,2048], index: 5, kind: input, shape index: {}]
  %s6 = inlined_call_operand.hbm [shape: f32[2,8,32], index: 6, kind: output, shape index: {}]
  %s7 = sld [smem:[#allocation0]]
  $region57: #{tpu_custom_call.1} parent=0
    _
  %s9 = ssub.s32 1, %s7
  %s10 = scalar_select 0, %s9, %s7
  $region1: #{tpu_custom_call.1} parent=0
    #allocation3 [shape = 'u8[8192]{0}', space=vmem, size = 0x2000, scoped, tag = 'output window, operand 0']
    #allocation4 [shape = 's32[2]{0}', space=sflag, size = 0x8, scoped, tag = 'scoped memory for tpu_custom_call.1']
    %11 = vsyncpa [#allocation4], 0
    %s12 = scalar_lea.sflag [#allocation4], 1
    %13 = vsyncpa %s12, 0
    loop: start=0, step=1, limit=4
    $region2: #{tpu_custom_call.1} parent=1 // loop_pre_header
      _
    $region3: #{tpu_custom_call.1} parent=1 // loop_header
      %s15 = sphi 0, %s19
      %p16 = scmp.ge.s32.totalorder %s15, 4
      %s25 = sphi 0, %s27
      %s28 = sphi 0, %s25
      %s29 = sphi 0, %s28
      %s45 = sphi 0, %s29
      %s49 = sphi 0, %s49
      %s51 = sphi 0, %s49
      %s52 = sphi 0, %s51
      %s66 = sphi 0, %s52
      %s70 = sphi 0, %s70
      %s72 = sphi 0, %s70
      %s73 = sphi 0, %s72
      %s87 = sphi 0, %s73
      %s91 = sphi 0, %s91
      %s93 = sphi 0, %s91
      %s94 = sphi 0, %s93
      %s108 = sphi 0, %s94
      %s112 = sphi 0, %s112
      %s114 = sphi 0, %s112
      %s115 = sphi 0, %s114
      %s129 = sphi 0, %s115
      %s133 = sphi 0, %s133
      %s135 = sphi 0, %s133
      %s136 = sphi 0, %s135
      %s150 = sphi 0, %s136
      %s156 = sphi 0, %s158
      %s159 = sphi 0, %s156
      %s160 = sphi 0, %s159
      %s176 = sphi 0, %s160
    $region4: #{tpu_custom_call.1} parent=1 // loop_header_branch
      %18 = sbr.rel (%p16) target = $region8
    $region5: #{tpu_custom_call.1} parent=1 // loop_body
      %s20 = ssub.s32 %s15, 1
      %s21 = ssub.s32 %s15, 2
      %s22 = sadd.s32 %s15, 1
      %s23 = ssub.s32 %s15, %s22
      %p24 = scmp.eq.s32.totalorder %s23, 0
      %s26 = sadd.s32 %s25, 1
      %s27 = scalar_select %p24, %s25, %s26
      %p30 = pneg %p24
      %p31 = scmp.eq.s32.totalorder %s15, 1
      %p32 = por %p30, %p31
      %p33 = scmp.ne.s32.totalorder %s25, %s28
      %p34 = scmp.eq.s32.totalorder %s15, 0
      %p35 = por %p33, %p34
      %p36 = scmp.ne.s32.totalorder %s25, %s28
      %p37 = scmp.eq.s32.totalorder %s20, 1
      %p38 = por %p36, %p37
      %p39 = scmp.ne.s32.totalorder %s28, %s29
      %p40 = scmp.eq.s32.totalorder %s20, 0
      %p41 = por %p39, %p40
      %p42 = scmp.ne.s32.totalorder %s28, %s29
      %p43 = scmp.eq.s32.totalorder %s21, 1
      %p44 = por %p42, %p43
      %p46 = scmp.ne.s32.totalorder %s29, %s45
      %p47 = scmp.eq.s32.totalorder %s21, 0
      %p48 = por %p46, %p47
      %s50 = sadd.s32 %s49, 1
      %p53 = scmp.eq.s32.totalorder %s15, 1
      %p54 = scmp.ne.s32.totalorder %s49, %s51
      %p55 = scmp.eq.s32.totalorder %s15, 0
      %p56 = por %p54, %p55
      %p57 = scmp.ne.s32.totalorder %s49, %s51
      %p58 = scmp.eq.s32.totalorder %s20, 1
      %p59 = por %p57, %p58
      %p60 = scmp.ne.s32.totalorder %s51, %s52
      %p61 = scmp.eq.s32.totalorder %s20, 0
      %p62 = por %p60, %p61
      %p63 = scmp.ne.s32.totalorder %s51, %s52
      %p64 = scmp.eq.s32.totalorder %s21, 1
      %p65 = por %p63, %p64
      %p67 = scmp.ne.s32.totalorder %s52, %s66
      %p68 = scmp.eq.s32.totalorder %s21, 0
      %p69 = por %p67, %p68
      %s71 = sadd.s32 %s70, 1
      %p74 = scmp.eq.s32.totalorder %s15, 1
      %p75 = scmp.ne.s32.totalorder %s70, %s72
      %p76 = scmp.eq.s32.totalorder %s15, 0
      %p77 = por %p75, %p76
      %p78 = scmp.ne.s32.totalorder %s70, %s72
      %p79 = scmp.eq.s32.totalorder %s20, 1
      %p80 = por %p78, %p79
      %p81 = scmp.ne.s32.totalorder %s72, %s73
      %p82 = scmp.eq.s32.totalorder %s20, 0
      %p83 = por %p81, %p82
      %p84 = scmp.ne.s32.totalorder %s72, %s73
      %p85 = scmp.eq.s32.totalorder %s21, 1
      %p86 = por %p84, %p85
      %p88 = scmp.ne.s32.totalorder %s73, %s87
      %p89 = scmp.eq.s32.totalorder %s21, 0
      %p90 = por %p88, %p89
      %s92 = sadd.s32 %s91, 1
      %p95 = scmp.eq.s32.totalorder %s15, 1
      %p96 = scmp.ne.s32.totalorder %s91, %s93
      %p97 = scmp.eq.s32.totalorder %s15, 0
      %p98 = por %p96, %p97
      %p99 = scmp.ne.s32.totalorder %s91, %s93
      %p100 = scmp.eq.s32.totalorder %s20, 1
      %p101 = por %p99, %p100
      %p102 = scmp.ne.s32.totalorder %s93, %s94
      %p103 = scmp.eq.s32.totalorder %s20, 0
      %p104 = por %p102, %p103
      %p105 = scmp.ne.s32.totalorder %s93, %s94
      %p106 = scmp.eq.s32.totalorder %s21, 1
      %p107 = por %p105, %p106
      %p109 = scmp.ne.s32.totalorder %s94, %s108
      %p110 = scmp.eq.s32.totalorder %s21, 0
      %p111 = por %p109, %p110
      %s113 = sadd.s32 %s112, 1
      %p116 = scmp.eq.s32.totalorder %s15, 1
      %p117 = scmp.ne.s32.totalorder %s112, %s114
      %p118 = scmp.eq.s32.totalorder %s15, 0
      %p119 = por %p117, %p118
      %p120 = scmp.ne.s32.totalorder %s112, %s114
      %p121 = scmp.eq.s32.totalorder %s20, 1
      %p122 = por %p120, %p121
      %p123 = scmp.ne.s32.totalorder %s114, %s115
      %p124 = scmp.eq.s32.totalorder %s20, 0
      %p125 = por %p123, %p124
      %p126 = scmp.ne.s32.totalorder %s114, %s115
      %p127 = scmp.eq.s32.totalorder %s21, 1
      %p128 = por %p126, %p127
      %p130 = scmp.ne.s32.totalorder %s115, %s129
      %p131 = scmp.eq.s32.totalorder %s21, 0
      %p132 = por %p130, %p131
      %s134 = sadd.s32 %s133, 1
      %p137 = scmp.eq.s32.totalorder %s15, 1
      %p138 = scmp.ne.s32.totalorder %s133, %s135
      %p139 = scmp.eq.s32.totalorder %s15, 0
      %p140 = por %p138, %p139
      %p141 = scmp.ne.s32.totalorder %s133, %s135
      %p142 = scmp.eq.s32.totalorder %s20, 1
      %p143 = por %p141, %p142
      %p144 = scmp.ne.s32.totalorder %s135, %s136
      %p145 = scmp.eq.s32.totalorder %s20, 0
      %p146 = por %p144, %p145
      %p147 = scmp.ne.s32.totalorder %s135, %s136
      %p148 = scmp.eq.s32.totalorder %s21, 1
      %p149 = por %p147, %p148
      %p151 = scmp.ne.s32.totalorder %s136, %s150
      %p152 = scmp.eq.s32.totalorder %s21, 0
      %p153 = por %p151, %p152
      %s154 = ssub.s32 %s15, %s22
      %p155 = scmp.eq.s32.totalorder %s154, 0
      %s157 = sadd.s32 %s156, 1
      %s158 = scalar_select %p155, %s156, %s157
      %p161 = pneg %p155
      %p162 = scmp.eq.s32.totalorder %s15, 1
      %p163 = por %p161, %p162
      %p164 = scmp.ne.s32.totalorder %s156, %s159
      %p165 = scmp.eq.s32.totalorder %s15, 0
      %p166 = por %p164, %p165
      %p167 = scmp.ne.s32.totalorder %s156, %s159
      %p168 = scmp.eq.s32.totalorder %s20, 1
      %p169 = por %p167, %p168
      %p170 = scmp.ne.s32.totalorder %s159, %s160
      %p171 = scmp.eq.s32.totalorder %s20, 0
      %p172 = por %p170, %p171
      %p173 = scmp.ne.s32.totalorder %s159, %s160
      %p174 = scmp.eq.s32.totalorder %s21, 1
      %p175 = por %p173, %p174
      %p177 = scmp.ne.s32.totalorder %s160, %s176
      %p178 = scmp.eq.s32.totalorder %s21, 0
      %p179 = por %p177, %p178
      %p180 = scmp.le.s32.totalorder 1, %s15
      %p181 = scmp.lt.s32.totalorder %s15, 3
      %p182 = pnand %p180, %p181
      %p183 = pneg %p182
      // Predicated region
      $region9: #{tpu_custom_call.1} parent=5 // pred_check
        _
      $region10: #{tpu_custom_call.1} parent=5 // pred_check_branch
        %185 = sbr.rel (%p182) target = $region12
      $region11: #{tpu_custom_call.1} parent=5 // pred_region
        %s186 = ssub.s32 %s15, 1
        // Predicated region
        $region13: #{tpu_custom_call.1} parent=11 // pred_check
          %p187 = pneg %p62
        $region14: #{tpu_custom_call.1} parent=11 // pred_check_branch
          %189 = sbr.rel (%p187) target = $region16
        $region15: #{tpu_custom_call.1} parent=11 // pred_region
          _
        $region16: #{tpu_custom_call.1} parent=11 // pred_fallthru
          _
        // Predicated region
        $region17: #{tpu_custom_call.1} parent=11 // pred_check
          %p190 = pneg %p83
        $region18: #{tpu_custom_call.1} parent=11 // pred_check_branch
          %192 = sbr.rel (%p190) target = $region20
        $region19: #{tpu_custom_call.1} parent=11 // pred_region
          _
        $region20: #{tpu_custom_call.1} parent=11 // pred_fallthru
          _
        // Predicated region
        $region21: #{tpu_custom_call.1} parent=11 // pred_check
          %p193 = pneg %p104
        $region22: #{tpu_custom_call.1} parent=11 // pred_check_branch
          %195 = sbr.rel (%p193) target = $region24
        $region23: #{tpu_custom_call.1} parent=11 // pred_region
          _
        $region24: #{tpu_custom_call.1} parent=11 // pred_fallthru
          _
        // Predicated region
        $region25: #{tpu_custom_call.1} parent=11 // pred_check
          %p196 = pneg %p125
        $region26: #{tpu_custom_call.1} parent=11 // pred_check_branch
          %198 = sbr.rel (%p196) target = $region28
        $region27: #{tpu_custom_call.1} parent=11 // pred_region
          _
        $region28: #{tpu_custom_call.1} parent=11 // pred_fallthru
          _
        // Predicated region
        $region29: #{tpu_custom_call.1} parent=11 // pred_check
          %p199 = pneg %p146
        $region30: #{tpu_custom_call.1} parent=11 // pred_check_branch
          %201 = sbr.rel (%p199) target = $region32
        $region31: #{tpu_custom_call.1} parent=11 // pred_region
          _
        $region32: #{tpu_custom_call.1} parent=11 // pred_fallthru
          _
      $region12: #{tpu_custom_call.1} parent=5 // pred_fallthru
        _
      %p202 = scmp.lt.s32.totalorder %s15, 2
      // Predicated region
      $region33: #{tpu_custom_call.1} parent=5 // pred_check
        %p203 = pneg %p202
      $region34: #{tpu_custom_call.1} parent=5 // pred_check_branch
        %205 = sbr.rel (%p203) target = $region36
      $region35: #{tpu_custom_call.1} parent=5 // pred_region
        // Predicated region
        $region37: #{tpu_custom_call.1} parent=35 // pred_check
          %p206 = pneg %p35
        $region38: #{tpu_custom_call.1} parent=35 // pred_check_branch
          %208 = sbr.rel (%p206) target = $region40
        $region39: #{tpu_custom_call.1} parent=35 // pred_region
          %p209 = scmp.lt.s32.totalorder %s15, 1
          %s210 = scalar_select %p209, %s15, 1
          %s211 = smul.addr %s210, 8
          %s212 = scalar_lea.vmem %s0, %s211
        $region40: #{tpu_custom_call.1} parent=35 // pred_fallthru
          _
      $region36: #{tpu_custom_call.1} parent=5 // pred_fallthru
        _
      %p213 = scmp.le.s32.totalorder 1, %s15
      %p214 = scmp.lt.s32.totalorder %s15, 3
      %p215 = pnand %p213, %p214
      %p216 = pneg %p215
      // Predicated region
      $region41: #{tpu_custom_call.1} parent=5 // pred_check
        _
      $region42: #{tpu_custom_call.1} parent=5 // pred_check_branch
        %218 = sbr.rel (%p215) target = $region44
      $region43: #{tpu_custom_call.1} parent=5 // pred_region
        %s219 = ssub.s32 %s15, 1
        %p220 = scmp.lt.s32.totalorder %s20, 1
        %s221 = scalar_select %p220, %s20, 1
        %s222 = smul.addr %s221, 8
        %s223 = scalar_lea.vmem %s0, %s222
        %p224 = pneg %p41
        %p225 = pneg %p38
        %p226 = pneg %p62
        %p227 = pneg %p59
        %p228 = pneg %p83
        %p229 = pneg %p80
        %p230 = pneg %p104
        %p231 = pneg %p101
        %p232 = pneg %p125
        %p233 = pneg %p122
        %p234 = pneg %p146
        %p235 = pneg %p143
        %p236 = pneg %p172
        %p237 = pneg %p169
        %s238 = sand.u32 %s159, 1
        %s239 = scalar_lea.sflag [#allocation4], %s238
        %s240 = sand.u32 %s159, 1
        %s241 = smul.addr %s240, 8
        %s242 = scalar_lea.vmem [#allocation3], %s241
        %p243 = scmp.lt.s32.totalorder %s20, 1
        %s244 = scalar_select %p243, %s20, 1
        %s245 = smul.addr %s244, 8
        %s246 = scalar_lea.vmem %s0, %s245
        %v248 = vld [vmem:[%s246] sm:$0xff]
        %v249 = vld [vmem:[%s5] sm:$0x1]
        %v250 = vld [vmem:[%s5 + $0x1] sm:$0x1]
        %s251 = scalar_lea.vmem %s5, 2
        %v252 = vld [vmem:[%s251] ss:$4 sm:$0xff]
        %s253 = scalar_lea.vmem %s5, 34
        %v254 = vld [vmem:[%s253] ss:$4 sm:$0xff]
        %v255 = vld [vmem:[%s5 + $0x3] sm:$0x1]
        %vm256 = vcmask 261120
        %v257 = vsel %vm256, %v248, 0.0
        %258 = vadd.xlane.f32.xlu0 %v257
        %v259 = vpop.xlane.xlu0 %258
        %v260 = vrcp.pop 32.0
        %v261 = vmul.f32 32.0, %v260
        %v262 = vsub.f32 1.0, %v261
        %v263 = vmul.f32 %v260, %v262
        %v264 = vadd.f32 %v260, %v263
        %vm265 = vweird.f32 %v260
        %v266 = vsel %vm265, %v260, %v264
        %v267 = vmul.f32 %v259, %v266
        %v268 = vsub.f32 %v248, %v267
        %v269 = vmul.f32 %v268, %v268
        %v270 = vsel %vm256, %v269, 0.0
        %271 = vadd.xlane.f32.xlu0 %v270
        %v272 = vpop.xlane.xlu0 %271
        %v273 = vmul.f32 %v272, %v266
        %v274 = vadd.f32 %v273, 1e-06
        %v275 = vrsqrt.pop %v274
        %v276 = vmul.f32 %v275, %v274
        %v277 = vmul.f32 %v276, %v275
        %v278 = vmul.f32 0.5, %v277
        %v279 = vsub.f32 1.5, %v278
        %v280 = vmul.f32 %v275, %v279
        %vm281 = vweird.f32 %v274
        %vm282 = vweird.f32 %v275
        %vm283 = vmor %vm281, %vm282
        %v284 = vsel %vm283, %v275, %v280
        %v285 = vmul.f32 %v268, %v284
        %v286 = vpack.c.bf16 %v285, %v285
        %v287 = vld [vmem:[%s1] sm:$0xf]
        %v288 = vld [vmem:[%s1 + $0x4] sm:$0xf]
        %v289 = vld [vmem:[%s1 + $0x8] sm:$0xf]
        %v290 = vld [vmem:[%s1 + $0xc] sm:$0xf]
        %v291 = vperm.slane %v249, 0
        %v296 = vunpack.c.l.b16 %v287
        %v297 = vunpack.c.l.b16 %v288
        %v298 = vunpack.c.l.b16 %v289
        %v299 = vunpack.c.l.b16 %v290
        %v300 = vpack.c.b16 %v297, %v296
        %v301 = vpack.c.b16 %v299, %v298
        %v305 = vsel %vm256, %v286, 0
        %307 = vmatpush.bf16.msra.mxu0 0
        %308 = vmatpush.bf16.msra.mxu0 0
        %309 = vmatpush.bf16.msra.mxu0 0
        %310 = vmatpush.bf16.msra.mxu0 0
        %311 = vmatpush.bf16.msra.mxu0 0
        %312 = vmatpush.bf16.msra.mxu0 0
        %313 = vmatpush.bf16.msra.mxu0 %v301
        %314 = vmatpush.bf16.msra.mxu0 %v300
        %315 = vmatmul.bf16.gmra.mxu0 %v305
        %v316 = vpop.f32.mrf.mxu0
        %v317 = vadd.f32 %v291, %v316
        %v318 = vpop.f32.mrf.mxu0
        %319 = vdwg.mxu0
        %v320 = vpack.c.bf16 %v317, %v317
        %v322 = vunpack.c.l.b16 %v320
        %v323 = vpack.c.b16 %v322, %v322
        %324 = vrot.lane.b32.xlu0 %v323, 96
        %v325 = vpop.permute.xlu0 %324
        %vm326 = vcmask 64512
        %v328 = vsel %vm326, %v320, 0
        %v331 = vsel %vm326, %v325, 0
        %333 = vmatpush.bf16.xpose.msra.mxu0 0
        %334 = vmatpush.bf16.xpose.msra.mxu0 0
        %335 = vmatpush.bf16.xpose.msra.mxu0 0
        %336 = vmatpush.bf16.xpose.msra.mxu0 0
        %337 = vmatpush.bf16.xpose.msra.mxu0 0
        %338 = vmatpush.bf16.xpose.msra.mxu0 0
        %339 = vmatpush.bf16.xpose.msra.mxu0 0
        %340 = vmatpush.bf16.xpose.msra.mxu0 %v331
        %341 = vmatmul.bf16.gmra.mxu0 %v328
        %v342 = vpop.f32.mrf.mxu0
        %v343 = vadd.f32 0.0, %v342
        %v344 = vpop.f32.mrf.mxu0
        %345 = vdwg.mxu0
        %v346 = vmul.f32 %v343, 0.35355338
        %v347 = vsel %vm326, %v346, -inf
        %348 = vmax.xlane.f32.xlu0 %v347
        %v349 = vpop.xlane.xlu0 %348
        %v350 = vsub.f32 %v346, %v349
        %v351 = vmul.f32 %v350, 1.442695
        %v352 = vpow.pop %v351
        %v353 = vsel %vm326, %v352, 0.0
        %354 = vadd.xlane.f32.xlu0 %v353
        %v355 = vpop.xlane.xlu0 %354
        %v356 = vrcp.pop %v355
        %v357 = vmul.f32 %v352, %v356
        %v358 = vpack.c.bf16 %v357, %v357
        %359 = vrot.lane.b32.xlu0 %v323, 64
        %v360 = vpop.permute.xlu0 %359
        %v362 = vsel %vm326, %v358, 0
        %vm364 = vcmask 1043456
        %v366 = vsel %vm364, %v360, 0
        %368 = vmatpush.bf16.msra.mxu0 0
        %369 = vmatpush.bf16.msra.mxu0 0
        %370 = vmatpush.bf16.msra.mxu0 0
        %371 = vmatpush.bf16.msra.mxu0 0
        %372 = vmatpush.bf16.msra.mxu0 0
        %373 = vmatpush.bf16.msra.mxu0 0
        %374 = vmatpush.bf16.msra.mxu0 0
        %375 = vmatpush.bf16.msra.mxu0 %v366
        %376 = vmatmul.bf16.gmra.mxu0 %v362
        %v377 = vpop.f32.mrf.mxu0
        %v378 = vadd.f32 0.0, %v377
        %v379 = vpop.f32.mrf.mxu0
        %380 = vdwg.mxu0
        %v381 = vpack.c.bf16 %v378, %v378
        %vm382 = vcmask 60416
        %383 = vst.msk [vmem:[#allocation2] sm:$0xf] %vm382, %v381
        %384 = vrot.lane.b32.xlu0 %v323, 120
        %v385 = vpop.permute.xlu0 %384
        %386 = vrot.lane.b32.xlu0 %v323, 88
        %v387 = vpop.permute.xlu0 %386
        %v389 = vsel %vm326, %v385, 0
        %v392 = vsel %vm326, %v387, 0
        %394 = vmatpush.bf16.xpose.msra.mxu0 0
        %395 = vmatpush.bf16.xpose.msra.mxu0 0
        %396 = vmatpush.bf16.xpose.msra.mxu0 0
        %397 = vmatpush.bf16.xpose.msra.mxu0 0
        %398 = vmatpush.bf16.xpose.msra.mxu0 0
        %399 = vmatpush.bf16.xpose.msra.mxu0 0
        %400 = vmatpush.bf16.xpose.msra.mxu0 0
        %401 = vmatpush.bf16.xpose.msra.mxu0 %v392
        %402 = vmatmul.bf16.gmra.mxu0 %v389
        %v403 = vpop.f32.mrf.mxu0
        %v404 = vadd.f32 0.0, %v403
        %v405 = vpop.f32.mrf.mxu0
        %406 = vdwg.mxu0
        %v407 = vmul.f32 %v404, 0.35355338
        %v408 = vsel %vm326, %v407, -inf
        %409 = vmax.xlane.f32.xlu0 %v408
        %v410 = vpop.xlane.xlu0 %409
        %v411 = vsub.f32 %v407, %v410
        %v412 = vmul.f32 %v411, 1.442695
        %v413 = vpow.pop %v412
        %v414 = vsel %vm326, %v413, 0.0
        %415 = vadd.xlane.f32.xlu0 %v414
        %v416 = vpop.xlane.xlu0 %415
        %v417 = vrcp.pop %v416
        %v418 = vmul.f32 %v413, %v417
        %v419 = vpack.c.bf16 %v418, %v418
        %420 = vrot.lane.b32.xlu0 %v323, 56
        %v421 = vpop.permute.xlu0 %420
        %v423 = vsel %vm326, %v419, 0
        %v426 = vsel %vm364, %v421, 0
        %428 = vmatpush.bf16.msra.mxu0 0
        %429 = vmatpush.bf16.msra.mxu0 0
        %430 = vmatpush.bf16.msra.mxu0 0
        %431 = vmatpush.bf16.msra.mxu0 0
        %432 = vmatpush.bf16.msra.mxu0 0
        %433 = vmatpush.bf16.msra.mxu0 0
        %434 = vmatpush.bf16.msra.mxu0 0
        %435 = vmatpush.bf16.msra.mxu0 %v426
        %436 = vmatmul.bf16.gmra.mxu0 %v423
        %v437 = vpop.f32.mrf.mxu0
        %v438 = vadd.f32 0.0, %v437
        %v439 = vpop.f32.mrf.mxu0
        %440 = vdwg.mxu0
        %v441 = vpack.c.bf16 %v438, %v438
        %443 = vrot.lane.b32.xlu0 %v441, 8
        %v444 = vpop.permute.xlu0 %443
        %vm446 = vcmask 126016
        %447 = vst.msk [vmem:[#allocation2] sm:$0xf] %vm446, %v444
        %448 = vrot.lane.b32.xlu0 %v323, 112
        %v449 = vpop.permute.xlu0 %448
        %450 = vrot.lane.b32.xlu0 %v323, 80
        %v451 = vpop.permute.xlu0 %450
        %v453 = vsel %vm326, %v449, 0
        %v456 = vsel %vm326, %v451, 0
        %458 = vmatpush.bf16.xpose.msra.mxu0 0
        %459 = vmatpush.bf16.xpose.msra.mxu0 0
        %460 = vmatpush.bf16.xpose.msra.mxu0 0
        %461 = vmatpush.bf16.xpose.msra.mxu0 0
        %462 = vmatpush.bf16.xpose.msra.mxu0 0
        %463 = vmatpush.bf16.xpose.msra.mxu0 0
        %464 = vmatpush.bf16.xpose.msra.mxu0 0
        %465 = vmatpush.bf16.xpose.msra.mxu0 %v456
        %466 = vmatmul.bf16.gmra.mxu0 %v453
        %v467 = vpop.f32.mrf.mxu0
        %v468 = vadd.f32 0.0, %v467
        %v469 = vpop.f32.mrf.mxu0
        %470 = vdwg.mxu0
        %v471 = vmul.f32 %v468, 0.35355338
        %v472 = vsel %vm326, %v471, -inf
        %473 = vmax.xlane.f32.xlu0 %v472
        %v474 = vpop.xlane.xlu0 %473
        %v475 = vsub.f32 %v471, %v474
        %v476 = vmul.f32 %v475, 1.442695
        %v477 = vpow.pop %v476
        %v478 = vsel %vm326, %v477, 0.0
        %479 = vadd.xlane.f32.xlu0 %v478
        %v480 = vpop.xlane.xlu0 %479
        %v481 = vrcp.pop %v480
        %v482 = vmul.f32 %v477, %v481
        %v483 = vpack.c.bf16 %v482, %v482
        %484 = vrot.lane.b32.xlu0 %v323, 48
        %v485 = vpop.permute.xlu0 %484
        %v487 = vsel %vm326, %v483, 0
        %v490 = vsel %vm364, %v485, 0
        %492 = vmatpush.bf16.msra.mxu0 0
        %493 = vmatpush.bf16.msra.mxu0 0
        %494 = vmatpush.bf16.msra.mxu0 0
        %495 = vmatpush.bf16.msra.mxu0 0
        %496 = vmatpush.bf16.msra.mxu0 0
        %497 = vmatpush.bf16.msra.mxu0 0
        %498 = vmatpush.bf16.msra.mxu0 0
        %499 = vmatpush.bf16.msra.mxu0 %v490
        %500 = vmatmul.bf16.gmra.mxu0 %v487
        %v501 = vpop.f32.mrf.mxu0
        %v502 = vadd.f32 0.0, %v501
        %v503 = vpop.f32.mrf.mxu0
        %504 = vdwg.mxu0
        %v505 = vpack.c.bf16 %v502, %v502
        %507 = vrot.lane.b32.xlu0 %v505, 16
        %v508 = vpop.permute.xlu0 %507
        %vm510 = vcmask 191616
        %511 = vst.msk [vmem:[#allocation2] sm:$0xf] %vm510, %v508
        %512 = vrot.lane.b32.xlu0 %v323, 104
        %v513 = vpop.permute.xlu0 %512
        %514 = vrot.lane.b32.xlu0 %v323, 72
        %v515 = vpop.permute.xlu0 %514
        %v517 = vsel %vm326, %v513, 0
        %v520 = vsel %vm326, %v515, 0
        %522 = vmatpush.bf16.xpose.msra.mxu0 0
        %523 = vmatpush.bf16.xpose.msra.mxu0 0
        %524 = vmatpush.bf16.xpose.msra.mxu0 0
        %525 = vmatpush.bf16.xpose.msra.mxu0 0
        %526 = vmatpush.bf16.xpose.msra.mxu0 0
        %527 = vmatpush.bf16.xpose.msra.mxu0 0
        %528 = vmatpush.bf16.xpose.msra.mxu0 0
        %529 = vmatpush.bf16.xpose.msra.mxu0 %v520
        %530 = vmatmul.bf16.gmra.mxu0 %v517
        %v531 = vpop.f32.mrf.mxu0
        %v532 = vadd.f32 0.0, %v531
        %v533 = vpop.f32.mrf.mxu0
        %534 = vdwg.mxu0
        %v535 = vmul.f32 %v532, 0.35355338
        %v536 = vsel %vm326, %v535, -inf
        %537 = vmax.xlane.f32.xlu0 %v536
        %v538 = vpop.xlane.xlu0 %537
        %v539 = vsub.f32 %v535, %v538
        %v540 = vmul.f32 %v539, 1.442695
        %v541 = vpow.pop %v540
        %v542 = vsel %vm326, %v541, 0.0
        %543 = vadd.xlane.f32.xlu0 %v542
        %v544 = vpop.xlane.xlu0 %543
        %v545 = vrcp.pop %v544
        %v546 = vmul.f32 %v541, %v545
        %v547 = vpack.c.bf16 %v546, %v546
        %548 = vrot.lane.b32.xlu0 %v323, 40
        %v549 = vpop.permute.xlu0 %548
        %v551 = vsel %vm326, %v547, 0
        %v554 = vsel %vm364, %v549, 0
        %556 = vmatpush.bf16.msra.mxu0 0
        %557 = vmatpush.bf16.msra.mxu0 0
        %558 = vmatpush.bf16.msra.mxu0 0
        %559 = vmatpush.bf16.msra.mxu0 0
        %560 = vmatpush.bf16.msra.mxu0 0
        %561 = vmatpush.bf16.msra.mxu0 0
        %562 = vmatpush.bf16.msra.mxu0 0
        %563 = vmatpush.bf16.msra.mxu0 %v554
        %564 = vmatmul.bf16.gmra.mxu0 %v551
        %v565 = vpop.f32.mrf.mxu0
        %v566 = vadd.f32 0.0, %v565
        %v567 = vpop.f32.mrf.mxu0
        %568 = vdwg.mxu0
        %v569 = vpack.c.bf16 %v566, %v566
        %571 = vrot.lane.b32.xlu0 %v569, 24
        %v572 = vpop.permute.xlu0 %571
        %vm574 = vcmask 257216
        %575 = vst.msk [vmem:[#allocation2] sm:$0xf] %vm574, %v572
        %v576 = vld [vmem:[#allocation2] sm:$0xf]
        %v577 = vld [vmem:[%s2] sm:$0xf]
        %v578 = vld [vmem:[%s2 + $0x4] sm:$0xf]
        %v579 = vld [vmem:[%s2 + $0x8] sm:$0xf]
        %v580 = vld [vmem:[%s2 + $0xc] sm:$0xf]
        %v585 = vunpack.c.l.b16 %v577
        %v586 = vunpack.c.l.b16 %v578
        %v587 = vunpack.c.l.b16 %v579
        %v588 = vunpack.c.l.b16 %v580
        %v589 = vpack.c.b16 %v586, %v585
        %v590 = vpack.c.b16 %v588, %v587
        %v594 = vsel %vm256, %v576, 0
        %596 = vmatpush.bf16.msra.mxu0 0
        %597 = vmatpush.bf16.msra.mxu0 0
        %598 = vmatpush.bf16.msra.mxu0 0
        %599 = vmatpush.bf16.msra.mxu0 0
        %600 = vmatpush.bf16.msra.mxu0 0
        %601 = vmatpush.bf16.msra.mxu0 0
        %602 = vmatpush.bf16.msra.mxu0 %v590
        %603 = vmatpush.bf16.msra.mxu0 %v589
        %604 = vmatmul.bf16.gmra.mxu0 %v594
        %v605 = vpop.f32.mrf.mxu0
        %v606 = vadd.f32 0.0, %v605
        %v607 = vpop.f32.mrf.mxu0
        %608 = vdwg.mxu0
        %v609 = vadd.f32 %v248, %v606
        %v610 = vperm.slane %v250, 0
        %v611 = vadd.f32 %v609, %v610
        %v612 = vsel %vm256, %v611, 0.0
        %613 = vadd.xlane.f32.xlu0 %v612
        %v614 = vpop.xlane.xlu0 %613
        %v615 = vmul.f32 %v614, %v266
        %v616 = vsub.f32 %v611, %v615
        %v617 = vmul.f32 %v616, %v616
        %v618 = vsel %vm256, %v617, 0.0
        %619 = vadd.xlane.f32.xlu0 %v618
        %v620 = vpop.xlane.xlu0 %619
        %v621 = vmul.f32 %v620, %v266
        %v622 = vadd.f32 %v621, 1e-06
        %v623 = vrsqrt.pop %v622
        %v624 = vmul.f32 %v623, %v622
        %v625 = vmul.f32 %v624, %v623
        %v626 = vmul.f32 0.5, %v625
        %v627 = vsub.f32 1.5, %v626
        %v628 = vmul.f32 %v623, %v627
        %vm629 = vweird.f32 %v622
        %vm630 = vweird.f32 %v623
        %vm631 = vmor %vm629, %vm630
        %v632 = vsel %vm631, %v623, %v628
        %v633 = vmul.f32 %v616, %v632
        %v634 = vpack.c.bf16 %v633, %v633
        %v635 = vld [vmem:[%s3] sm:$0xff]
        %v636 = vld [vmem:[%s3 + $0x8] sm:$0xff]
        %v637 = vld [vmem:[%s3 + $0x10] sm:$0xff]
        %v638 = vld [vmem:[%s3 + $0x18] sm:$0xff]
        %v639 = vld [vmem:[%s3 + $0x20] sm:$0xff]
        %v640 = vld [vmem:[%s3 + $0x28] sm:$0xff]
        %v641 = vld [vmem:[%s3 + $0x30] sm:$0xff]
        %v642 = vld [vmem:[%s3 + $0x38] sm:$0xff]
        %v643 = vld [vmem:[%s3 + $0x40] sm:$0xff]
        %v644 = vld [vmem:[%s3 + $0x48] sm:$0xff]
        %v645 = vld [vmem:[%s3 + $0x50] sm:$0xff]
        %v646 = vld [vmem:[%s3 + $0x58] sm:$0xff]
        %v647 = vld [vmem:[%s3 + $0x60] sm:$0xff]
        %v648 = vld [vmem:[%s3 + $0x68] sm:$0xff]
        %v649 = vld [vmem:[%s3 + $0x70] sm:$0xff]
        %v650 = vld [vmem:[%s3 + $0x78] sm:$0xff]
        %v651 = vld [vmem:[%s3 + $0x80] sm:$0xff]
        %v652 = vld [vmem:[%s3 + $0x88] sm:$0xff]
        %v653 = vld [vmem:[%s3 + $0x90] sm:$0xff]
        %v654 = vld [vmem:[%s3 + $0x98] sm:$0xff]
        %v655 = vld [vmem:[%s3 + $0xa0] sm:$0xff]
        %v656 = vld [vmem:[%s3 + $0xa8] sm:$0xff]
        %v657 = vld [vmem:[%s3 + $0xb0] sm:$0xff]
        %v658 = vld [vmem:[%s3 + $0xb8] sm:$0xff]
        %v659 = vld [vmem:[%s3 + $0xc0] sm:$0xff]
        %v660 = vld [vmem:[%s3 + $0xc8] sm:$0xff]
        %v661 = vld [vmem:[%s3 + $0xd0] sm:$0xff]
        %v662 = vld [vmem:[%s3 + $0xd8] sm:$0xff]
        %v663 = vld [vmem:[%s3 + $0xe0] sm:$0xff]
        %v664 = vld [vmem:[%s3 + $0xe8] sm:$0xff]
        %v665 = vld [vmem:[%s3 + $0xf0] sm:$0xff]
        %v666 = vld [vmem:[%s3 + $0xf8] sm:$0xff]
        %v669 = vperm.slane %v252, 0
        %v670 = vperm.slane %v252, 1
        %v671 = vperm.slane %v252, 2
        %v672 = vperm.slane %v252, 3
        %v673 = vperm.slane %v252, 4
        %v674 = vperm.slane %v252, 5
        %v675 = vperm.slane %v252, 6
        %v676 = vperm.slane %v252, 7
        %v677 = vperm.slane %v254, 0
        %v678 = vperm.slane %v254, 1
        %v679 = vperm.slane %v254, 2
        %v680 = vperm.slane %v254, 3
        %v681 = vperm.slane %v254, 4
        %v682 = vperm.slane %v254, 5
        %v683 = vperm.slane %v254, 6
        %v684 = vperm.slane %v254, 7
        %v733 = vunpack.c.l.b16 %v635
        %v734 = vunpack.c.h.b16 %v635
        %v735 = vunpack.c.l.b16 %v636
        %v736 = vunpack.c.h.b16 %v636
        %v737 = vunpack.c.l.b16 %v637
        %v738 = vunpack.c.h.b16 %v637
        %v739 = vunpack.c.l.b16 %v638
        %v740 = vunpack.c.h.b16 %v638
        %v741 = vunpack.c.l.b16 %v639
        %v742 = vunpack.c.h.b16 %v639
        %v743 = vunpack.c.l.b16 %v640
        %v744 = vunpack.c.h.b16 %v640
        %v745 = vunpack.c.l.b16 %v641
        %v746 = vunpack.c.h.b16 %v641
        %v747 = vunpack.c.l.b16 %v642
        %v748 = vunpack.c.h.b16 %v642
        %v749 = vunpack.c.l.b16 %v643
        %v750 = vunpack.c.h.b16 %v643
        %v751 = vunpack.c.l.b16 %v644
        %v752 = vunpack.c.h.b16 %v644
        %v753 = vunpack.c.l.b16 %v645
        %v754 = vunpack.c.h.b16 %v645
        %v755 = vunpack.c.l.b16 %v646
        %v756 = vunpack.c.h.b16 %v646
        %v757 = vunpack.c.l.b16 %v647
        %v758 = vunpack.c.h.b16 %v647
        %v759 = vunpack.c.l.b16 %v648
        %v760 = vunpack.c.h.b16 %v648
        %v761 = vunpack.c.l.b16 %v649
        %v762 = vunpack.c.h.b16 %v649
        %v763 = vunpack.c.l.b16 %v650
        %v764 = vunpack.c.h.b16 %v650
        %v765 = vunpack.c.l.b16 %v651
        %v766 = vunpack.c.h.b16 %v651
        %v767 = vunpack.c.l.b16 %v652
        %v768 = vunpack.c.h.b16 %v652
        %v769 = vunpack.c.l.b16 %v653
        %v770 = vunpack.c.h.b16 %v653
        %v771 = vunpack.c.l.b16 %v654
        %v772 = vunpack.c.h.b16 %v654
        %v773 = vunpack.c.l.b16 %v655
        %v774 = vunpack.c.h.b16 %v655
        %v775 = vunpack.c.l.b16 %v656
        %v776 = vunpack.c.h.b16 %v656
        %v777 = vunpack.c.l.b16 %v657
        %v778 = vunpack.c.h.b16 %v657
        %v779 = vunpack.c.l.b16 %v658
        %v780 = vunpack.c.h.b16 %v658
        %v781 = vunpack.c.l.b16 %v659
        %v782 = vunpack.c.h.b16 %v659
        %v783 = vunpack.c.l.b16 %v660
        %v784 = vunpack.c.h.b16 %v660
        %v785 = vunpack.c.l.b16 %v661
        %v786 = vunpack.c.h.b16 %v661
        %v787 = vunpack.c.l.b16 %v662
        %v788 = vunpack.c.h.b16 %v662
        %v789 = vunpack.c.l.b16 %v663
        %v790 = vunpack.c.h.b16 %v663
        %v791 = vunpack.c.l.b16 %v664
        %v792 = vunpack.c.h.b16 %v664
        %v793 = vunpack.c.l.b16 %v665
        %v794 = vunpack.c.h.b16 %v665
        %v795 = vunpack.c.l.b16 %v666
        %v796 = vunpack.c.h.b16 %v666
        %v797 = vpack.c.b16 %v749, %v733
        %v798 = vpack.c.b16 %v750, %v734
        %v799 = vpack.c.b16 %v751, %v735
        %v800 = vpack.c.b16 %v752, %v736
        %v801 = vpack.c.b16 %v753, %v737
        %v802 = vpack.c.b16 %v754, %v738
        %v803 = vpack.c.b16 %v755, %v739
        %v804 = vpack.c.b16 %v756, %v740
        %v805 = vpack.c.b16 %v757, %v741
        %v806 = vpack.c.b16 %v758, %v742
        %v807 = vpack.c.b16 %v759, %v743
        %v808 = vpack.c.b16 %v760, %v744
        %v809 = vpack.c.b16 %v761, %v745
        %v810 = vpack.c.b16 %v762, %v746
        %v811 = vpack.c.b16 %v763, %v747
        %v812 = vpack.c.b16 %v764, %v748
        %v813 = vpack.c.b16 %v781, %v765
        %v814 = vpack.c.b16 %v782, %v766
        %v815 = vpack.c.b16 %v783, %v767
        %v816 = vpack.c.b16 %v784, %v768
        %v817 = vpack.c.b16 %v785, %v769
        %v818 = vpack.c.b16 %v786, %v770
        %v819 = vpack.c.b16 %v787, %v771
        %v820 = vpack.c.b16 %v788, %v772
        %v821 = vpack.c.b16 %v789, %v773
        %v822 = vpack.c.b16 %v790, %v774
        %v823 = vpack.c.b16 %v791, %v775
        %v824 = vpack.c.b16 %v792, %v776
        %v825 = vpack.c.b16 %v793, %v777
        %v826 = vpack.c.b16 %v794, %v778
        %v827 = vpack.c.b16 %v795, %v779
        %v828 = vpack.c.b16 %v796, %v780
        %v862 = vsel %vm256, %v634, 0
        %864 = vmatpush.bf16.msra.mxu0 0
        %865 = vmatpush.bf16.msra.mxu0 0
        %866 = vmatpush.bf16.msra.mxu0 0
        %867 = vmatpush.bf16.msra.mxu0 0
        %868 = vmatpush.bf16.msra.mxu0 0
        %869 = vmatpush.bf16.msra.mxu0 0
        %870 = vmatpush.bf16.msra.mxu0 %v813
        %871 = vmatpush.bf16.msra.mxu0 %v797
        %872 = vmatmul.bf16.gmra.mxu0 %v862
        %v873 = vpop.f32.mrf.mxu0
        %v874 = vadd.f32 %v669, %v873
        %v875 = vpop.f32.mrf.mxu0
        %876 = vdwg.mxu0
        %877 = vmatpush.bf16.msra.mxu0 0
        %878 = vmatpush.bf16.msra.mxu0 0
        %879 = vmatpush.bf16.msra.mxu0 0
        %880 = vmatpush.bf16.msra.mxu0 0
        %881 = vmatpush.bf16.msra.mxu0 0
        %882 = vmatpush.bf16.msra.mxu0 0
        %883 = vmatpush.bf16.msra.mxu0 %v814
        %884 = vmatpush.bf16.msra.mxu0 %v798
        %885 = vmatmul.bf16.gmra.mxu0 %v862
        %v886 = vpop.f32.mrf.mxu0
        %v887 = vadd.f32 %v670, %v886
        %v888 = vpop.f32.mrf.mxu0
        %889 = vdwg.mxu0
        %890 = vmatpush.bf16.msra.mxu0 0
        %891 = vmatpush.bf16.msra.mxu0 0
        %892 = vmatpush.bf16.msra.mxu0 0
        %893 = vmatpush.bf16.msra.mxu0 0
        %894 = vmatpush.bf16.msra.mxu0 0
        %895 = vmatpush.bf16.msra.mxu0 0
        %896 = vmatpush.bf16.msra.mxu0 %v815
        %897 = vmatpush.bf16.msra.mxu0 %v799
        %898 = vmatmul.bf16.gmra.mxu0 %v862
        %v899 = vpop.f32.mrf.mxu0
        %v900 = vadd.f32 %v671, %v899
        %v901 = vpop.f32.mrf.mxu0
        %902 = vdwg.mxu0
        %903 = vmatpush.bf16.msra.mxu0 0
        %904 = vmatpush.bf16.msra.mxu0 0
        %905 = vmatpush.bf16.msra.mxu0 0
        %906 = vmatpush.bf16.msra.mxu0 0
        %907 = vmatpush.bf16.msra.mxu0 0
        %908 = vmatpush.bf16.msra.mxu0 0
        %909 = vmatpush.bf16.msra.mxu0 %v816
        %910 = vmatpush.bf16.msra.mxu0 %v800
        %911 = vmatmul.bf16.gmra.mxu0 %v862
        %v912 = vpop.f32.mrf.mxu0
        %v913 = vadd.f32 %v672, %v912
        %v914 = vpop.f32.mrf.mxu0
        %915 = vdwg.mxu0
        %916 = vmatpush.bf16.msra.mxu0 0
        %917 = vmatpush.bf16.msra.mxu0 0
        %918 = vmatpush.bf16.msra.mxu0 0
        %919 = vmatpush.bf16.msra.mxu0 0
        %920 = vmatpush.bf16.msra.mxu0 0
        %921 = vmatpush.bf16.msra.mxu0 0
        %922 = vmatpush.bf16.msra.mxu0 %v817
        %923 = vmatpush.bf16.msra.mxu0 %v801
        %924 = vmatmul.bf16.gmra.mxu0 %v862
        %v925 = vpop.f32.mrf.mxu0
        %v926 = vadd.f32 %v673, %v925
        %v927 = vpop.f32.mrf.mxu0
        %928 = vdwg.mxu0
        %929 = vmatpush.bf16.msra.mxu0 0
        %930 = vmatpush.bf16.msra.mxu0 0
        %931 = vmatpush.bf16.msra.mxu0 0
        %932 = vmatpush.bf16.msra.mxu0 0
        %933 = vmatpush.bf16.msra.mxu0 0
        %934 = vmatpush.bf16.msra.mxu0 0
        %935 = vmatpush.bf16.msra.mxu0 %v818
        %936 = vmatpush.bf16.msra.mxu0 %v802
        %937 = vmatmul.bf16.gmra.mxu0 %v862
        %v938 = vpop.f32.mrf.mxu0
        %v939 = vadd.f32 %v674, %v938
        %v940 = vpop.f32.mrf.mxu0
        %941 = vdwg.mxu0
        %942 = vmatpush.bf16.msra.mxu0 0
        %943 = vmatpush.bf16.msra.mxu0 0
        %944 = vmatpush.bf16.msra.mxu0 0
        %945 = vmatpush.bf16.msra.mxu0 0
        %946 = vmatpush.bf16.msra.mxu0 0
        %947 = vmatpush.bf16.msra.mxu0 0
        %948 = vmatpush.bf16.msra.mxu0 %v819
        %949 = vmatpush.bf16.msra.mxu0 %v803
        %950 = vmatmul.bf16.gmra.mxu0 %v862
        %v951 = vpop.f32.mrf.mxu0
        %v952 = vadd.f32 %v675, %v951
        %v953 = vpop.f32.mrf.mxu0
        %954 = vdwg.mxu0
        %955 = vmatpush.bf16.msra.mxu0 0
        %956 = vmatpush.bf16.msra.mxu0 0
        %957 = vmatpush.bf16.msra.mxu0 0
        %958 = vmatpush.bf16.msra.mxu0 0
        %959 = vmatpush.bf16.msra.mxu0 0
        %960 = vmatpush.bf16.msra.mxu0 0
        %961 = vmatpush.bf16.msra.mxu0 %v820
        %962 = vmatpush.bf16.msra.mxu0 %v804
        %963 = vmatmul.bf16.gmra.mxu0 %v862
        %v964 = vpop.f32.mrf.mxu0
        %v965 = vadd.f32 %v676, %v964
        %v966 = vpop.f32.mrf.mxu0
        %967 = vdwg.mxu0
        %968 = vmatpush.bf16.msra.mxu0 0
        %969 = vmatpush.bf16.msra.mxu0 0
        %970 = vmatpush.bf16.msra.mxu0 0
        %971 = vmatpush.bf16.msra.mxu0 0
        %972 = vmatpush.bf16.msra.mxu0 0
        %973 = vmatpush.bf16.msra.mxu0 0
        %974 = vmatpush.bf16.msra.mxu0 %v821
        %975 = vmatpush.bf16.msra.mxu0 %v805
        %976 = vmatmul.bf16.gmra.mxu0 %v862
        %v977 = vpop.f32.mrf.mxu0
        %v978 = vadd.f32 %v677, %v977
        %v979 = vpop.f32.mrf.mxu0
        %980 = vdwg.mxu0
        %981 = vmatpush.bf16.msra.mxu0 0
        %982 = vmatpush.bf16.msra.mxu0 0
        %983 = vmatpush.bf16.msra.mxu0 0
        %984 = vmatpush.bf16.msra.mxu0 0
        %985 = vmatpush.bf16.msra.mxu0 0
        %986 = vmatpush.bf16.msra.mxu0 0
        %987 = vmatpush.bf16.msra.mxu0 %v822
        %988 = vmatpush.bf16.msra.mxu0 %v806
        %989 = vmatmul.bf16.gmra.mxu0 %v862
        %v990 = vpop.f32.mrf.mxu0
        %v991 = vadd.f32 %v678, %v990
        %v992 = vpop.f32.mrf.mxu0
        %993 = vdwg.mxu0
        %994 = vmatpush.bf16.msra.mxu0 0
        %995 = vmatpush.bf16.msra.mxu0 0
        %996 = vmatpush.bf16.msra.mxu0 0
        %997 = vmatpush.bf16.msra.mxu0 0
        %998 = vmatpush.bf16.msra.mxu0 0
        %999 = vmatpush.bf16.msra.mxu0 0
        %1000 = vmatpush.bf16.msra.mxu0 %v823
        %1001 = vmatpush.bf16.msra.mxu0 %v807
        %1002 = vmatmul.bf16.gmra.mxu0 %v862
        %v1003 = vpop.f32.mrf.mxu0
        %v1004 = vadd.f32 %v679, %v1003
        %v1005 = vpop.f32.mrf.mxu0
        %1006 = vdwg.mxu0
        %1007 = vmatpush.bf16.msra.mxu0 0
        %1008 = vmatpush.bf16.msra.mxu0 0
        %1009 = vmatpush.bf16.msra.mxu0 0
        %1010 = vmatpush.bf16.msra.mxu0 0
        %1011 = vmatpush.bf16.msra.mxu0 0
        %1012 = vmatpush.bf16.msra.mxu0 0
        %1013 = vmatpush.bf16.msra.mxu0 %v824
        %1014 = vmatpush.bf16.msra.mxu0 %v808
        %1015 = vmatmul.bf16.gmra.mxu0 %v862
        %v1016 = vpop.f32.mrf.mxu0
        %v1017 = vadd.f32 %v680, %v1016
        %v1018 = vpop.f32.mrf.mxu0
        %1019 = vdwg.mxu0
        %1020 = vmatpush.bf16.msra.mxu0 0
        %1021 = vmatpush.bf16.msra.mxu0 0
        %1022 = vmatpush.bf16.msra.mxu0 0
        %1023 = vmatpush.bf16.msra.mxu0 0
        %1024 = vmatpush.bf16.msra.mxu0 0
        %1025 = vmatpush.bf16.msra.mxu0 0
        %1026 = vmatpush.bf16.msra.mxu0 %v825
        %1027 = vmatpush.bf16.msra.mxu0 %v809
        %1028 = vmatmul.bf16.gmra.mxu0 %v862
        %v1029 = vpop.f32.mrf.mxu0
        %v1030 = vadd.f32 %v681, %v1029
        %v1031 = vpop.f32.mrf.mxu0
        %1032 = vdwg.mxu0
        %1033 = vmatpush.bf16.msra.mxu0 0
        %1034 = vmatpush.bf16.msra.mxu0 0
        %1035 = vmatpush.bf16.msra.mxu0 0
        %1036 = vmatpush.bf16.msra.mxu0 0
        %1037 = vmatpush.bf16.msra.mxu0 0
        %1038 = vmatpush.bf16.msra.mxu0 0
        %1039 = vmatpush.bf16.msra.mxu0 %v826
        %1040 = vmatpush.bf16.msra.mxu0 %v810
        %1041 = vmatmul.bf16.gmra.mxu0 %v862
        %v1042 = vpop.f32.mrf.mxu0
        %v1043 = vadd.f32 %v682, %v1042
        %v1044 = vpop.f32.mrf.mxu0
        %1045 = vdwg.mxu0
        %1046 = vmatpush.bf16.msra.mxu0 0
        %1047 = vmatpush.bf16.msra.mxu0 0
        %1048 = vmatpush.bf16.msra.mxu0 0
        %1049 = vmatpush.bf16.msra.mxu0 0
        %1050 = vmatpush.bf16.msra.mxu0 0
        %1051 = vmatpush.bf16.msra.mxu0 0
        %1052 = vmatpush.bf16.msra.mxu0 %v827
        %1053 = vmatpush.bf16.msra.mxu0 %v811
        %1054 = vmatmul.bf16.gmra.mxu0 %v862
        %v1055 = vpop.f32.mrf.mxu0
        %v1056 = vadd.f32 %v683, %v1055
        %v1057 = vpop.f32.mrf.mxu0
        %1058 = vdwg.mxu0
        %1059 = vmatpush.bf16.msra.mxu0 0
        %1060 = vmatpush.bf16.msra.mxu0 0
        %1061 = vmatpush.bf16.msra.mxu0 0
        %1062 = vmatpush.bf16.msra.mxu0 0
        %1063 = vmatpush.bf16.msra.mxu0 0
        %1064 = vmatpush.bf16.msra.mxu0 0
        %1065 = vmatpush.bf16.msra.mxu0 %v828
        %1066 = vmatpush.bf16.msra.mxu0 %v812
        %1067 = vmatmul.bf16.gmra.mxu0 %v862
        %v1068 = vpop.f32.mrf.mxu0
        %v1069 = vadd.f32 %v684, %v1068
        %v1070 = vpop.f32.mrf.mxu0
        %1071 = vdwg.mxu0
        %v1072 = vmax.f32 %v874, 0.0
        %v1073 = vmax.f32 %v887, 0.0
        %v1074 = vmax.f32 %v900, 0.0
        %v1075 = vmax.f32 %v913, 0.0
        %v1076 = vmax.f32 %v926, 0.0
        %v1077 = vmax.f32 %v939, 0.0
        %v1078 = vmax.f32 %v952, 0.0
        %v1079 = vmax.f32 %v965, 0.0
        %v1080 = vmax.f32 %v978, 0.0
        %v1081 = vmax.f32 %v991, 0.0
        %v1082 = vmax.f32 %v1004, 0.0
        %v1083 = vmax.f32 %v1017, 0.0
        %v1084 = vmax.f32 %v1030, 0.0
        %v1085 = vmax.f32 %v1043, 0.0
        %v1086 = vmax.f32 %v1056, 0.0
        %v1087 = vmax.f32 %v1069, 0.0
        %v1088 = vpack.c.bf16 %v1072, %v1072
        %v1089 = vpack.c.bf16 %v1073, %v1073
        %v1090 = vpack.c.bf16 %v1074, %v1074
        %v1091 = vpack.c.bf16 %v1075, %v1075
        %v1092 = vpack.c.bf16 %v1076, %v1076
        %v1093 = vpack.c.bf16 %v1077, %v1077
        %v1094 = vpack.c.bf16 %v1078, %v1078
        %v1095 = vpack.c.bf16 %v1079, %v1079
        %v1096 = vpack.c.bf16 %v1080, %v1080
        %v1097 = vpack.c.bf16 %v1081, %v1081
        %v1098 = vpack.c.bf16 %v1082, %v1082
        %v1099 = vpack.c.bf16 %v1083, %v1083
        %v1100 = vpack.c.bf16 %v1084, %v1084
        %v1101 = vpack.c.bf16 %v1085, %v1085
        %v1102 = vpack.c.bf16 %v1086, %v1086
        %v1103 = vpack.c.bf16 %v1087, %v1087
        %v1104 = vld [vmem:[%s4] sm:$0xf]
        %v1105 = vld [vmem:[%s4 + $0x4] sm:$0xf]
        %v1106 = vld [vmem:[%s4 + $0x8] sm:$0xf]
        %v1107 = vld [vmem:[%s4 + $0xc] sm:$0xf]
        %v1108 = vld [vmem:[%s4 + $0x10] sm:$0xf]
        %v1109 = vld [vmem:[%s4 + $0x14] sm:$0xf]
        %v1110 = vld [vmem:[%s4 + $0x18] sm:$0xf]
        %v1111 = vld [vmem:[%s4 + $0x1c] sm:$0xf]
        %v1112 = vld [vmem:[%s4 + $0x20] sm:$0xf]
        %v1113 = vld [vmem:[%s4 + $0x24] sm:$0xf]
        %v1114 = vld [vmem:[%s4 + $0x28] sm:$0xf]
        %v1115 = vld [vmem:[%s4 + $0x2c] sm:$0xf]
        %v1116 = vld [vmem:[%s4 + $0x30] sm:$0xf]
        %v1117 = vld [vmem:[%s4 + $0x34] sm:$0xf]
        %v1118 = vld [vmem:[%s4 + $0x38] sm:$0xf]
        %v1119 = vld [vmem:[%s4 + $0x3c] sm:$0xf]
        %v1120 = vld [vmem:[%s4 + $0x40] sm:$0xf]
        %v1121 = vld [vmem:[%s4 + $0x44] sm:$0xf]
        %v1122 = vld [vmem:[%s4 + $0x48] sm:$0xf]
        %v1123 = vld [vmem:[%s4 + $0x4c] sm:$0xf]
        %v1124 = vld [vmem:[%s4 + $0x50] sm:$0xf]
        %v1125 = vld [vmem:[%s4 + $0x54] sm:$0xf]
        %v1126 = vld [vmem:[%s4 + $0x58] sm:$0xf]
        %v1127 = vld [vmem:[%s4 + $0x5c] sm:$0xf]
        %v1128 = vld [vmem:[%s4 + $0x60] sm:$0xf]
        %v1129 = vld [vmem:[%s4 + $0x64] sm:$0xf]
        %v1130 = vld [vmem:[%s4 + $0x68] sm:$0xf]
        %v1131 = vld [vmem:[%s4 + $0x6c] sm:$0xf]
        %v1132 = vld [vmem:[%s4 + $0x70] sm:$0xf]
        %v1133 = vld [vmem:[%s4 + $0x74] sm:$0xf]
        %v1134 = vld [vmem:[%s4 + $0x78] sm:$0xf]
        %v1135 = vld [vmem:[%s4 + $0x7c] sm:$0xf]
        %v1136 = vld [vmem:[%s4 + $0x80] sm:$0xf]
        %v1137 = vld [vmem:[%s4 + $0x84] sm:$0xf]
        %v1138 = vld [vmem:[%s4 + $0x88] sm:$0xf]
        %v1139 = vld [vmem:[%s4 + $0x8c] sm:$0xf]
        %v1140 = vld [vmem:[%s4 + $0x90] sm:$0xf]
        %v1141 = vld [vmem:[%s4 + $0x94] sm:$0xf]
        %v1142 = vld [vmem:[%s4 + $0x98] sm:$0xf]
        %v1143 = vld [vmem:[%s4 + $0x9c] sm:$0xf]
        %v1144 = vld [vmem:[%s4 + $0xa0] sm:$0xf]
        %v1145 = vld [vmem:[%s4 + $0xa4] sm:$0xf]
        %v1146 = vld [vmem:[%s4 + $0xa8] sm:$0xf]
        %v1147 = vld [vmem:[%s4 + $0xac] sm:$0xf]
        %v1148 = vld [vmem:[%s4 + $0xb0] sm:$0xf]
        %v1149 = vld [vmem:[%s4 + $0xb4] sm:$0xf]
        %v1150 = vld [vmem:[%s4 + $0xb8] sm:$0xf]
        %v1151 = vld [vmem:[%s4 + $0xbc] sm:$0xf]
        %v1152 = vld [vmem:[%s4 + $0xc0] sm:$0xf]
        %v1153 = vld [vmem:[%s4 + $0xc4] sm:$0xf]
        %v1154 = vld [vmem:[%s4 + $0xc8] sm:$0xf]
        %v1155 = vld [vmem:[%s4 + $0xcc] sm:$0xf]
        %v1156 = vld [vmem:[%s4 + $0xd0] sm:$0xf]
        %v1157 = vld [vmem:[%s4 + $0xd4] sm:$0xf]
        %v1158 = vld [vmem:[%s4 + $0xd8] sm:$0xf]
        %v1159 = vld [vmem:[%s4 + $0xdc] sm:$0xf]
        %v1160 = vld [vmem:[%s4 + $0xe0] sm:$0xf]
        %v1161 = vld [vmem:[%s4 + $0xe4] sm:$0xf]
        %v1162 = vld [vmem:[%s4 + $0xe8] sm:$0xf]
        %v1163 = vld [vmem:[%s4 + $0xec] sm:$0xf]
        %v1164 = vld [vmem:[%s4 + $0xf0] sm:$0xf]
        %v1165 = vld [vmem:[%s4 + $0xf4] sm:$0xf]
        %v1166 = vld [vmem:[%s4 + $0xf8] sm:$0xf]
        %v1167 = vld [vmem:[%s4 + $0xfc] sm:$0xf]
        %v1168 = vld [vmem:[%s4 + $0x100] sm:$0xf]
        %v1169 = vld [vmem:[%s4 + $0x104] sm:$0xf]
        %v1170 = vld [vmem:[%s4 + $0x108] sm:$0xf]
        %v1171 = vld [vmem:[%s4 + $0x10c] sm:$0xf]
        %v1172 = vld [vmem:[%s4 + $0x110] sm:$0xf]
        %v1173 = vld [vmem:[%s4 + $0x114] sm:$0xf]
        %v1174 = vld [vmem:[%s4 + $0x118] sm:$0xf]
        %v1175 = vld [vmem:[%s4 + $0x11c] sm:$0xf]
        %v1176 = vld [vmem:[%s4 + $0x120] sm:$0xf]
        %v1177 = vld [vmem:[%s4 + $0x124] sm:$0xf]
        %v1178 = vld [vmem:[%s4 + $0x128] sm:$0xf]
        %v1179 = vld [vmem:[%s4 + $0x12c] sm:$0xf]
        %v1180 = vld [vmem:[%s4 + $0x130] sm:$0xf]
        %v1181 = vld [vmem:[%s4 + $0x134] sm:$0xf]
        %v1182 = vld [vmem:[%s4 + $0x138] sm:$0xf]
        %v1183 = vld [vmem:[%s4 + $0x13c] sm:$0xf]
        %v1184 = vld [vmem:[%s4 + $0x140] sm:$0xf]
        %v1185 = vld [vmem:[%s4 + $0x144] sm:$0xf]
        %v1186 = vld [vmem:[%s4 + $0x148] sm:$0xf]
        %v1187 = vld [vmem:[%s4 + $0x14c] sm:$0xf]
        %v1188 = vld [vmem:[%s4 + $0x150] sm:$0xf]
        %v1189 = vld [vmem:[%s4 + $0x154] sm:$0xf]
        %v1190 = vld [vmem:[%s4 + $0x158] sm:$0xf]
        %v1191 = vld [vmem:[%s4 + $0x15c] sm:$0xf]
        %v1192 = vld [vmem:[%s4 + $0x160] sm:$0xf]
        %v1193 = vld [vmem:[%s4 + $0x164] sm:$0xf]
        %v1194 = vld [vmem:[%s4 + $0x168] sm:$0xf]
        %v1195 = vld [vmem:[%s4 + $0x16c] sm:$0xf]
        %v1196 = vld [vmem:[%s4 + $0x170] sm:$0xf]
        %v1197 = vld [vmem:[%s4 + $0x174] sm:$0xf]
        %v1198 = vld [vmem:[%s4 + $0x178] sm:$0xf]
        %v1199 = vld [vmem:[%s4 + $0x17c] sm:$0xf]
        %v1200 = vld [vmem:[%s4 + $0x180] sm:$0xf]
        %v1201 = vld [vmem:[%s4 + $0x184] sm:$0xf]
        %v1202 = vld [vmem:[%s4 + $0x188] sm:$0xf]
        %v1203 = vld [vmem:[%s4 + $0x18c] sm:$0xf]
        %v1204 = vld [vmem:[%s4 + $0x190] sm:$0xf]
        %v1205 = vld [vmem:[%s4 + $0x194] sm:$0xf]
        %v1206 = vld [vmem:[%s4 + $0x198] sm:$0xf]
        %v1207 = vld [vmem:[%s4 + $0x19c] sm:$0xf]
        %v1208 = vld [vmem:[%s4 + $0x1a0] sm:$0xf]
        %v1209 = vld [vmem:[%s4 + $0x1a4] sm:$0xf]
        %v1210 = vld [vmem:[%s4 + $0x1a8] sm:$0xf]
        %v1211 = vld [vmem:[%s4 + $0x1ac] sm:$0xf]
        %v1212 = vld [vmem:[%s4 + $0x1b0] sm:$0xf]
        %v1213 = vld [vmem:[%s4 + $0x1b4] sm:$0xf]
        %v1214 = vld [vmem:[%s4 + $0x1b8] sm:$0xf]
        %v1215 = vld [vmem:[%s4 + $0x1bc] sm:$0xf]
        %v1216 = vld [vmem:[%s4 + $0x1c0] sm:$0xf]
        %v1217 = vld [vmem:[%s4 + $0x1c4] sm:$0xf]
        %v1218 = vld [vmem:[%s4 + $0x1c8] sm:$0xf]
        %v1219 = vld [vmem:[%s4 + $0x1cc] sm:$0xf]
        %v1220 = vld [vmem:[%s4 + $0x1d0] sm:$0xf]
        %v1221 = vld [vmem:[%s4 + $0x1d4] sm:$0xf]
        %v1222 = vld [vmem:[%s4 + $0x1d8] sm:$0xf]
        %v1223 = vld [vmem:[%s4 + $0x1dc] sm:$0xf]
        %v1224 = vld [vmem:[%s4 + $0x1e0] sm:$0xf]
        %v1225 = vld [vmem:[%s4 + $0x1e4] sm:$0xf]
        %v1226 = vld [vmem:[%s4 + $0x1e8] sm:$0xf]
        %v1227 = vld [vmem:[%s4 + $0x1ec] sm:$0xf]
        %v1228 = vld [vmem:[%s4 + $0x1f0] sm:$0xf]
        %v1229 = vld [vmem:[%s4 + $0x1f4] sm:$0xf]
        %v1230 = vld [vmem:[%s4 + $0x1f8] sm:$0xf]
        %v1231 = vld [vmem:[%s4 + $0x1fc] sm:$0xf]
        %v1232 = vld [vmem:[%s4 + $0x200] sm:$0xf]
        %v1233 = vld [vmem:[%s4 + $0x204] sm:$0xf]
        %v1234 = vld [vmem:[%s4 + $0x208] sm:$0xf]
        %v1235 = vld [vmem:[%s4 + $0x20c] sm:$0xf]
        %v1236 = vld [vmem:[%s4 + $0x210] sm:$0xf]
        %v1237 = vld [vmem:[%s4 + $0x214] sm:$0xf]
        %v1238 = vld [vmem:[%s4 + $0x218] sm:$0xf]
        %v1239 = vld [vmem:[%s4 + $0x21c] sm:$0xf]
        %v1240 = vld [vmem:[%s4 + $0x220] sm:$0xf]
        %v1241 = vld [vmem:[%s4 + $0x224] sm:$0xf]
        %v1242 = vld [vmem:[%s4 + $0x228] sm:$0xf]
        %v1243 = vld [vmem:[%s4 + $0x22c] sm:$0xf]
        %v1244 = vld [vmem:[%s4 + $0x230] sm:$0xf]
        %v1245 = vld [vmem:[%s4 + $0x234] sm:$0xf]
        %v1246 = vld [vmem:[%s4 + $0x238] sm:$0xf]
        %v1247 = vld [vmem:[%s4 + $0x23c] sm:$0xf]
        %v1248 = vld [vmem:[%s4 + $0x240] sm:$0xf]
        %v1249 = vld [vmem:[%s4 + $0x244] sm:$0xf]
        %v1250 = vld [vmem:[%s4 + $0x248] sm:$0xf]
        %v1251 = vld [vmem:[%s4 + $0x24c] sm:$0xf]
        %v1252 = vld [vmem:[%s4 + $0x250] sm:$0xf]
        %v1253 = vld [vmem:[%s4 + $0x254] sm:$0xf]
        %v1254 = vld [vmem:[%s4 + $0x258] sm:$0xf]
        %v1255 = vld [vmem:[%s4 + $0x25c] sm:$0xf]
        %v1256 = vld [vmem:[%s4 + $0x260] sm:$0xf]
        %v1257 = vld [vmem:[%s4 + $0x264] sm:$0xf]
        %v1258 = vld [vmem:[%s4 + $0x268] sm:$0xf]
        %v1259 = vld [vmem:[%s4 + $0x26c] sm:$0xf]
        %v1260 = vld [vmem:[%s4 + $0x270] sm:$0xf]
        %v1261 = vld [vmem:[%s4 + $0x274] sm:$0xf]
        %v1262 = vld [vmem:[%s4 + $0x278] sm:$0xf]
        %v1263 = vld [vmem:[%s4 + $0x27c] sm:$0xf]
        %v1264 = vld [vmem:[%s4 + $0x280] sm:$0xf]
        %v1265 = vld [vmem:[%s4 + $0x284] sm:$0xf]
        %v1266 = vld [vmem:[%s4 + $0x288] sm:$0xf]
        %v1267 = vld [vmem:[%s4 + $0x28c] sm:$0xf]
        %v1268 = vld [vmem:[%s4 + $0x290] sm:$0xf]
        %v1269 = vld [vmem:[%s4 + $0x294] sm:$0xf]
        %v1270 = vld [vmem:[%s4 + $0x298] sm:$0xf]
        %v1271 = vld [vmem:[%s4 + $0x29c] sm:$0xf]
        %v1272 = vld [vmem:[%s4 + $0x2a0] sm:$0xf]
        %v1273 = vld [vmem:[%s4 + $0x2a4] sm:$0xf]
        %v1274 = vld [vmem:[%s4 + $0x2a8] sm:$0xf]
        %v1275 = vld [vmem:[%s4 + $0x2ac] sm:$0xf]
        %v1276 = vld [vmem:[%s4 + $0x2b0] sm:$0xf]
        %v1277 = vld [vmem:[%s4 + $0x2b4] sm:$0xf]
        %v1278 = vld [vmem:[%s4 + $0x2b8] sm:$0xf]
        %v1279 = vld [vmem:[%s4 + $0x2bc] sm:$0xf]
        %v1280 = vld [vmem:[%s4 + $0x2c0] sm:$0xf]
        %v1281 = vld [vmem:[%s4 + $0x2c4] sm:$0xf]
        %v1282 = vld [vmem:[%s4 + $0x2c8] sm:$0xf]
        %v1283 = vld [vmem:[%s4 + $0x2cc] sm:$0xf]
        %v1284 = vld [vmem:[%s4 + $0x2d0] sm:$0xf]
        %v1285 = vld [vmem:[%s4 + $0x2d4] sm:$0xf]
        %v1286 = vld [vmem:[%s4 + $0x2d8] sm:$0xf]
        %v1287 = vld [vmem:[%s4 + $0x2dc] sm:$0xf]
        %v1288 = vld [vmem:[%s4 + $0x2e0] sm:$0xf]
        %v1289 = vld [vmem:[%s4 + $0x2e4] sm:$0xf]
        %v1290 = vld [vmem:[%s4 + $0x2e8] sm:$0xf]
        %v1291 = vld [vmem:[%s4 + $0x2ec] sm:$0xf]
        %v1292 = vld [vmem:[%s4 + $0x2f0] sm:$0xf]
        %v1293 = vld [vmem:[%s4 + $0x2f4] sm:$0xf]
        %v1294 = vld [vmem:[%s4 + $0x2f8] sm:$0xf]
        %v1295 = vld [vmem:[%s4 + $0x2fc] sm:$0xf]
        %v1296 = vld [vmem:[%s4 + $0x300] sm:$0xf]
        %v1297 = vld [vmem:[%s4 + $0x304] sm:$0xf]
        %v1298 = vld [vmem:[%s4 + $0x308] sm:$0xf]
        %v1299 = vld [vmem:[%s4 + $0x30c] sm:$0xf]
        %v1300 = vld [vmem:[%s4 + $0x310] sm:$0xf]
        %v1301 = vld [vmem:[%s4 + $0x314] sm:$0xf]
        %v1302 = vld [vmem:[%s4 + $0x318] sm:$0xf]
        %v1303 = vld [vmem:[%s4 + $0x31c] sm:$0xf]
        %v1304 = vld [vmem:[%s4 + $0x320] sm:$0xf]
        %v1305 = vld [vmem:[%s4 + $0x324] sm:$0xf]
        %v1306 = vld [vmem:[%s4 + $0x328] sm:$0xf]
        %v1307 = vld [vmem:[%s4 + $0x32c] sm:$0xf]
        %v1308 = vld [vmem:[%s4 + $0x330] sm:$0xf]
        %v1309 = vld [vmem:[%s4 + $0x334] sm:$0xf]
        %v1310 = vld [vmem:[%s4 + $0x338] sm:$0xf]
        %v1311 = vld [vmem:[%s4 + $0x33c] sm:$0xf]
        %v1312 = vld [vmem:[%s4 + $0x340] sm:$0xf]
        %v1313 = vld [vmem:[%s4 + $0x344] sm:$0xf]
        %v1314 = vld [vmem:[%s4 + $0x348] sm:$0xf]
        %v1315 = vld [vmem:[%s4 + $0x34c] sm:$0xf]
        %v1316 = vld [vmem:[%s4 + $0x350] sm:$0xf]
        %v1317 = vld [vmem:[%s4 + $0x354] sm:$0xf]
        %v1318 = vld [vmem:[%s4 + $0x358] sm:$0xf]
        %v1319 = vld [vmem:[%s4 + $0x35c] sm:$0xf]
        %v1320 = vld [vmem:[%s4 + $0x360] sm:$0xf]
        %v1321 = vld [vmem:[%s4 + $0x364] sm:$0xf]
        %v1322 = vld [vmem:[%s4 + $0x368] sm:$0xf]
        %v1323 = vld [vmem:[%s4 + $0x36c] sm:$0xf]
        %v1324 = vld [vmem:[%s4 + $0x370] sm:$0xf]
        %v1325 = vld [vmem:[%s4 + $0x374] sm:$0xf]
        %v1326 = vld [vmem:[%s4 + $0x378] sm:$0xf]
        %v1327 = vld [vmem:[%s4 + $0x37c] sm:$0xf]
        %v1328 = vld [vmem:[%s4 + $0x380] sm:$0xf]
        %v1329 = vld [vmem:[%s4 + $0x384] sm:$0xf]
        %v1330 = vld [vmem:[%s4 + $0x388] sm:$0xf]
        %v1331 = vld [vmem:[%s4 + $0x38c] sm:$0xf]
        %v1332 = vld [vmem:[%s4 + $0x390] sm:$0xf]
        %v1333 = vld [vmem:[%s4 + $0x394] sm:$0xf]
        %v1334 = vld [vmem:[%s4 + $0x398] sm:$0xf]
        %v1335 = vld [vmem:[%s4 + $0x39c] sm:$0xf]
        %v1336 = vld [vmem:[%s4 + $0x3a0] sm:$0xf]
        %v1337 = vld [vmem:[%s4 + $0x3a4] sm:$0xf]
        %v1338 = vld [vmem:[%s4 + $0x3a8] sm:$0xf]
        %v1339 = vld [vmem:[%s4 + $0x3ac] sm:$0xf]
        %v1340 = vld [vmem:[%s4 + $0x3b0] sm:$0xf]
        %v1341 = vld [vmem:[%s4 + $0x3b4] sm:$0xf]
        %v1342 = vld [vmem:[%s4 + $0x3b8] sm:$0xf]
        %v1343 = vld [vmem:[%s4 + $0x3bc] sm:$0xf]
        %v1344 = vld [vmem:[%s4 + $0x3c0] sm:$0xf]
        %v1345 = vld [vmem:[%s4 + $0x3c4] sm:$0xf]
        %v1346 = vld [vmem:[%s4 + $0x3c8] sm:$0xf]
        %v1347 = vld [vmem:[%s4 + $0x3cc] sm:$0xf]
        %v1348 = vld [vmem:[%s4 + $0x3d0] sm:$0xf]
        %v1349 = vld [vmem:[%s4 + $0x3d4] sm:$0xf]
        %v1350 = vld [vmem:[%s4 + $0x3d8] sm:$0xf]
        %v1351 = vld [vmem:[%s4 + $0x3dc] sm:$0xf]
        %v1352 = vld [vmem:[%s4 + $0x3e0] sm:$0xf]
        %v1353 = vld [vmem:[%s4 + $0x3e4] sm:$0xf]
        %v1354 = vld [vmem:[%s4 + $0x3e8] sm:$0xf]
        %v1355 = vld [vmem:[%s4 + $0x3ec] sm:$0xf]
        %v1356 = vld [vmem:[%s4 + $0x3f0] sm:$0xf]
        %v1357 = vld [vmem:[%s4 + $0x3f4] sm:$0xf]
        %v1358 = vld [vmem:[%s4 + $0x3f8] sm:$0xf]
        %v1359 = vld [vmem:[%s4 + $0x3fc] sm:$0xf]
        %v1360 = vperm.slane %v255, 0
        %v1617 = vunpack.c.l.b16 %v1104
        %v1618 = vunpack.c.l.b16 %v1105
        %v1619 = vunpack.c.l.b16 %v1106
        %v1620 = vunpack.c.l.b16 %v1107
        %v1621 = vunpack.c.l.b16 %v1108
        %v1622 = vunpack.c.l.b16 %v1109
        %v1623 = vunpack.c.l.b16 %v1110
        %v1624 = vunpack.c.l.b16 %v1111
        %v1625 = vunpack.c.l.b16 %v1112
        %v1626 = vunpack.c.l.b16 %v1113
        %v1627 = vunpack.c.l.b16 %v1114
        %v1628 = vunpack.c.l.b16 %v1115
        %v1629 = vunpack.c.l.b16 %v1116
        %v1630 = vunpack.c.l.b16 %v1117
        %v1631 = vunpack.c.l.b16 %v1118
        %v1632 = vunpack.c.l.b16 %v1119
        %v1633 = vunpack.c.l.b16 %v1120
        %v1634 = vunpack.c.l.b16 %v1121
        %v1635 = vunpack.c.l.b16 %v1122
        %v1636 = vunpack.c.l.b16 %v1123
        %v1637 = vunpack.c.l.b16 %v1124
        %v1638 = vunpack.c.l.b16 %v1125
        %v1639 = vunpack.c.l.b16 %v1126
        %v1640 = vunpack.c.l.b16 %v1127
        %v1641 = vunpack.c.l.b16 %v1128
        %v1642 = vunpack.c.l.b16 %v1129
        %v1643 = vunpack.c.l.b16 %v1130
        %v1644 = vunpack.c.l.b16 %v1131
        %v1645 = vunpack.c.l.b16 %v1132
        %v1646 = vunpack.c.l.b16 %v1133
        %v1647 = vunpack.c.l.b16 %v1134
        %v1648 = vunpack.c.l.b16 %v1135
        %v1649 = vunpack.c.l.b16 %v1136
        %v1650 = vunpack.c.l.b16 %v1137
        %v1651 = vunpack.c.l.b16 %v1138
        %v1652 = vunpack.c.l.b16 %v1139
        %v1653 = vunpack.c.l.b16 %v1140
        %v1654 = vunpack.c.l.b16 %v1141
        %v1655 = vunpack.c.l.b16 %v1142
        %v1656 = vunpack.c.l.b16 %v1143
        %v1657 = vunpack.c.l.b16 %v1144
        %v1658 = vunpack.c.l.b16 %v1145
        %v1659 = vunpack.c.l.b16 %v1146
        %v1660 = vunpack.c.l.b16 %v1147
        %v1661 = vunpack.c.l.b16 %v1148
        %v1662 = vunpack.c.l.b16 %v1149
        %v1663 = vunpack.c.l.b16 %v1150
        %v1664 = vunpack.c.l.b16 %v1151
        %v1665 = vunpack.c.l.b16 %v1152
        %v1666 = vunpack.c.l.b16 %v1153
        %v1667 = vunpack.c.l.b16 %v1154
        %v1668 = vunpack.c.l.b16 %v1155
        %v1669 = vunpack.c.l.b16 %v1156
        %v1670 = vunpack.c.l.b16 %v1157
        %v1671 = vunpack.c.l.b16 %v1158
        %v1672 = vunpack.c.l.b16 %v1159
        %v1673 = vunpack.c.l.b16 %v1160
        %v1674 = vunpack.c.l.b16 %v1161
        %v1675 = vunpack.c.l.b16 %v1162
        %v1676 = vunpack.c.l.b16 %v1163
        %v1677 = vunpack.c.l.b16 %v1164
        %v1678 = vunpack.c.l.b16 %v1165
        %v1679 = vunpack.c.l.b16 %v1166
        %v1680 = vunpack.c.l.b16 %v1167
        %v1681 = vunpack.c.l.b16 %v1168
        %v1682 = vunpack.c.l.b16 %v1169
        %v1683 = vunpack.c.l.b16 %v1170
        %v1684 = vunpack.c.l.b16 %v1171
        %v1685 = vunpack.c.l.b16 %v1172
        %v1686 = vunpack.c.l.b16 %v1173
        %v1687 = vunpack.c.l.b16 %v1174
        %v1688 = vunpack.c.l.b16 %v1175
        %v1689 = vunpack.c.l.b16 %v1176
        %v1690 = vunpack.c.l.b16 %v1177
        %v1691 = vunpack.c.l.b16 %v1178
        %v1692 = vunpack.c.l.b16 %v1179
        %v1693 = vunpack.c.l.b16 %v1180
        %v1694 = vunpack.c.l.b16 %v1181
        %v1695 = vunpack.c.l.b16 %v1182
        %v1696 = vunpack.c.l.b16 %v1183
        %v1697 = vunpack.c.l.b16 %v1184
        %v1698 = vunpack.c.l.b16 %v1185
        %v1699 = vunpack.c.l.b16 %v1186
        %v1700 = vunpack.c.l.b16 %v1187
        %v1701 = vunpack.c.l.b16 %v1188
        %v1702 = vunpack.c.l.b16 %v1189
        %v1703 = vunpack.c.l.b16 %v1190
        %v1704 = vunpack.c.l.b16 %v1191
        %v1705 = vunpack.c.l.b16 %v1192
        %v1706 = vunpack.c.l.b16 %v1193
        %v1707 = vunpack.c.l.b16 %v1194
        %v1708 = vunpack.c.l.b16 %v1195
        %v1709 = vunpack.c.l.b16 %v1196
        %v1710 = vunpack.c.l.b16 %v1197
        %v1711 = vunpack.c.l.b16 %v1198
        %v1712 = vunpack.c.l.b16 %v1199
        %v1713 = vunpack.c.l.b16 %v1200
        %v1714 = vunpack.c.l.b16 %v1201
        %v1715 = vunpack.c.l.b16 %v1202
        %v1716 = vunpack.c.l.b16 %v1203
        %v1717 = vunpack.c.l.b16 %v1204
        %v1718 = vunpack.c.l.b16 %v1205
        %v1719 = vunpack.c.l.b16 %v1206
        %v1720 = vunpack.c.l.b16 %v1207
        %v1721 = vunpack.c.l.b16 %v1208
        %v1722 = vunpack.c.l.b16 %v1209
        %v1723 = vunpack.c.l.b16 %v1210
        %v1724 = vunpack.c.l.b16 %v1211
        %v1725 = vunpack.c.l.b16 %v1212
        %v1726 = vunpack.c.l.b16 %v1213
        %v1727 = vunpack.c.l.b16 %v1214
        %v1728 = vunpack.c.l.b16 %v1215
        %v1729 = vunpack.c.l.b16 %v1216
        %v1730 = vunpack.c.l.b16 %v1217
        %v1731 = vunpack.c.l.b16 %v1218
        %v1732 = vunpack.c.l.b16 %v1219
        %v1733 = vunpack.c.l.b16 %v1220
        %v1734 = vunpack.c.l.b16 %v1221
        %v1735 = vunpack.c.l.b16 %v1222
        %v1736 = vunpack.c.l.b16 %v1223
        %v1737 = vunpack.c.l.b16 %v1224
        %v1738 = vunpack.c.l.b16 %v1225
        %v1739 = vunpack.c.l.b16 %v1226
        %v1740 = vunpack.c.l.b16 %v1227
        %v1741 = vunpack.c.l.b16 %v1228
        %v1742 = vunpack.c.l.b16 %v1229
        %v1743 = vunpack.c.l.b16 %v1230
        %v1744 = vunpack.c.l.b16 %v1231
        %v1745 = vunpack.c.l.b16 %v1232
        %v1746 = vunpack.c.l.b16 %v1233
        %v1747 = vunpack.c.l.b16 %v1234
        %v1748 = vunpack.c.l.b16 %v1235
        %v1749 = vunpack.c.l.b16 %v1236
        %v1750 = vunpack.c.l.b16 %v1237
        %v1751 = vunpack.c.l.b16 %v1238
        %v1752 = vunpack.c.l.b16 %v1239
        %v1753 = vunpack.c.l.b16 %v1240
        %v1754 = vunpack.c.l.b16 %v1241
        %v1755 = vunpack.c.l.b16 %v1242
        %v1756 = vunpack.c.l.b16 %v1243
        %v1757 = vunpack.c.l.b16 %v1244
        %v1758 = vunpack.c.l.b16 %v1245
        %v1759 = vunpack.c.l.b16 %v1246
        %v1760 = vunpack.c.l.b16 %v1247
        %v1761 = vunpack.c.l.b16 %v1248
        %v1762 = vunpack.c.l.b16 %v1249
        %v1763 = vunpack.c.l.b16 %v1250
        %v1764 = vunpack.c.l.b16 %v1251
        %v1765 = vunpack.c.l.b16 %v1252
        %v1766 = vunpack.c.l.b16 %v1253
        %v1767 = vunpack.c.l.b16 %v1254
        %v1768 = vunpack.c.l.b16 %v1255
        %v1769 = vunpack.c.l.b16 %v1256
        %v1770 = vunpack.c.l.b16 %v1257
        %v1771 = vunpack.c.l.b16 %v1258
        %v1772 = vunpack.c.l.b16 %v1259
        %v1773 = vunpack.c.l.b16 %v1260
        %v1774 = vunpack.c.l.b16 %v1261
        %v1775 = vunpack.c.l.b16 %v1262
        %v1776 = vunpack.c.l.b16 %v1263
        %v1777 = vunpack.c.l.b16 %v1264
        %v1778 = vunpack.c.l.b16 %v1265
        %v1779 = vunpack.c.l.b16 %v1266
        %v1780 = vunpack.c.l.b16 %v1267
        %v1781 = vunpack.c.l.b16 %v1268
        %v1782 = vunpack.c.l.b16 %v1269
        %v1783 = vunpack.c.l.b16 %v1270
        %v1784 = vunpack.c.l.b16 %v1271
        %v1785 = vunpack.c.l.b16 %v1272
        %v1786 = vunpack.c.l.b16 %v1273
        %v1787 = vunpack.c.l.b16 %v1274
        %v1788 = vunpack.c.l.b16 %v1275
        %v1789 = vunpack.c.l.b16 %v1276
        %v1790 = vunpack.c.l.b16 %v1277
        %v1791 = vunpack.c.l.b16 %v1278
        %v1792 = vunpack.c.l.b16 %v1279
        %v1793 = vunpack.c.l.b16 %v1280
        %v1794 = vunpack.c.l.b16 %v1281
        %v1795 = vunpack.c.l.b16 %v1282
        %v1796 = vunpack.c.l.b16 %v1283
        %v1797 = vunpack.c.l.b16 %v1284
        %v1798 = vunpack.c.l.b16 %v1285
        %v1799 = vunpack.c.l.b16 %v1286
        %v1800 = vunpack.c.l.b16 %v1287
        %v1801 = vunpack.c.l.b16 %v1288
        %v1802 = vunpack.c.l.b16 %v1289
        %v1803 = vunpack.c.l.b16 %v1290
        %v1804 = vunpack.c.l.b16 %v1291
        %v1805 = vunpack.c.l.b16 %v1292
        %v1806 = vunpack.c.l.b16 %v1293
        %v1807 = vunpack.c.l.b16 %v1294
        %v1808 = vunpack.c.l.b16 %v1295
        %v1809 = vunpack.c.l.b16 %v1296
        %v1810 = vunpack.c.l.b16 %v1297
        %v1811 = vunpack.c.l.b16 %v1298
        %v1812 = vunpack.c.l.b16 %v1299
        %v1813 = vunpack.c.l.b16 %v1300
        %v1814 = vunpack.c.l.b16 %v1301
        %v1815 = vunpack.c.l.b16 %v1302
        %v1816 = vunpack.c.l.b16 %v1303
        %v1817 = vunpack.c.l.b16 %v1304
        %v1818 = vunpack.c.l.b16 %v1305
        %v1819 = vunpack.c.l.b16 %v1306
        %v1820 = vunpack.c.l.b16 %v1307
        %v1821 = vunpack.c.l.b16 %v1308
        %v1822 = vunpack.c.l.b16 %v1309
        %v1823 = vunpack.c.l.b16 %v1310
        %v1824 = vunpack.c.l.b16 %v1311
        %v1825 = vunpack.c.l.b16 %v1312
        %v1826 = vunpack.c.l.b16 %v1313
        %v1827 = vunpack.c.l.b16 %v1314
        %v1828 = vunpack.c.l.b16 %v1315
        %v1829 = vunpack.c.l.b16 %v1316
        %v1830 = vunpack.c.l.b16 %v1317
        %v1831 = vunpack.c.l.b16 %v1318
        %v1832 = vunpack.c.l.b16 %v1319
        %v1833 = vunpack.c.l.b16 %v1320
        %v1834 = vunpack.c.l.b16 %v1321
        %v1835 = vunpack.c.l.b16 %v1322
        %v1836 = vunpack.c.l.b16 %v1323
        %v1837 = vunpack.c.l.b16 %v1324
        %v1838 = vunpack.c.l.b16 %v1325
        %v1839 = vunpack.c.l.b16 %v1326
        %v1840 = vunpack.c.l.b16 %v1327
        %v1841 = vunpack.c.l.b16 %v1328
        %v1842 = vunpack.c.l.b16 %v1329
        %v1843 = vunpack.c.l.b16 %v1330
        %v1844 = vunpack.c.l.b16 %v1331
        %v1845 = vunpack.c.l.b16 %v1332
        %v1846 = vunpack.c.l.b16 %v1333
        %v1847 = vunpack.c.l.b16 %v1334
        %v1848 = vunpack.c.l.b16 %v1335
        %v1849 = vunpack.c.l.b16 %v1336
        %v1850 = vunpack.c.l.b16 %v1337
        %v1851 = vunpack.c.l.b16 %v1338
        %v1852 = vunpack.c.l.b16 %v1339
        %v1853 = vunpack.c.l.b16 %v1340
        %v1854 = vunpack.c.l.b16 %v1341
        %v1855 = vunpack.c.l.b16 %v1342
        %v1856 = vunpack.c.l.b16 %v1343
        %v1857 = vunpack.c.l.b16 %v1344
        %v1858 = vunpack.c.l.b16 %v1345
        %v1859 = vunpack.c.l.b16 %v1346
        %v1860 = vunpack.c.l.b16 %v1347
        %v1861 = vunpack.c.l.b16 %v1348
        %v1862 = vunpack.c.l.b16 %v1349
        %v1863 = vunpack.c.l.b16 %v1350
        %v1864 = vunpack.c.l.b16 %v1351
        %v1865 = vunpack.c.l.b16 %v1352
        %v1866 = vunpack.c.l.b16 %v1353
        %v1867 = vunpack.c.l.b16 %v1354
        %v1868 = vunpack.c.l.b16 %v1355
        %v1869 = vunpack.c.l.b16 %v1356
        %v1870 = vunpack.c.l.b16 %v1357
        %v1871 = vunpack.c.l.b16 %v1358
        %v1872 = vunpack.c.l.b16 %v1359
        %v1873 = vpack.c.b16 %v1618, %v1617
        %v1874 = vpack.c.b16 %v1620, %v1619
        %v1875 = vpack.c.b16 %v1622, %v1621
        %v1876 = vpack.c.b16 %v1624, %v1623
        %v1877 = vpack.c.b16 %v1626, %v1625
        %v1878 = vpack.c.b16 %v1628, %v1627
        %v1879 = vpack.c.b16 %v1630, %v1629
        %v1880 = vpack.c.b16 %v1632, %v1631
        %v1881 = vpack.c.b16 %v1634, %v1633
        %v1882 = vpack.c.b16 %v1636, %v1635
        %v1883 = vpack.c.b16 %v1638, %v1637
        %v1884 = vpack.c.b16 %v1640, %v1639
        %v1885 = vpack.c.b16 %v1642, %v1641
        %v1886 = vpack.c.b16 %v1644, %v1643
        %v1887 = vpack.c.b16 %v1646, %v1645
        %v1888 = vpack.c.b16 %v1648, %v1647
        %v1889 = vpack.c.b16 %v1650, %v1649
        %v1890 = vpack.c.b16 %v1652, %v1651
        %v1891 = vpack.c.b16 %v1654, %v1653
        %v1892 = vpack.c.b16 %v1656, %v1655
        %v1893 = vpack.c.b16 %v1658, %v1657
        %v1894 = vpack.c.b16 %v1660, %v1659
        %v1895 = vpack.c.b16 %v1662, %v1661
        %v1896 = vpack.c.b16 %v1664, %v1663
        %v1897 = vpack.c.b16 %v1666, %v1665
        %v1898 = vpack.c.b16 %v1668, %v1667
        %v1899 = vpack.c.b16 %v1670, %v1669
        %v1900 = vpack.c.b16 %v1672, %v1671
        %v1901 = vpack.c.b16 %v1674, %v1673
        %v1902 = vpack.c.b16 %v1676, %v1675
        %v1903 = vpack.c.b16 %v1678, %v1677
        %v1904 = vpack.c.b16 %v1680, %v1679
        %v1905 = vpack.c.b16 %v1682, %v1681
        %v1906 = vpack.c.b16 %v1684, %v1683
        %v1907 = vpack.c.b16 %v1686, %v1685
        %v1908 = vpack.c.b16 %v1688, %v1687
        %v1909 = vpack.c.b16 %v1690, %v1689
        %v1910 = vpack.c.b16 %v1692, %v1691
        %v1911 = vpack.c.b16 %v1694, %v1693
        %v1912 = vpack.c.b16 %v1696, %v1695
        %v1913 = vpack.c.b16 %v1698, %v1697
        %v1914 = vpack.c.b16 %v1700, %v1699
        %v1915 = vpack.c.b16 %v1702, %v1701
        %v1916 = vpack.c.b16 %v1704, %v1703
        %v1917 = vpack.c.b16 %v1706, %v1705
        %v1918 = vpack.c.b16 %v1708, %v1707
        %v1919 = vpack.c.b16 %v1710, %v1709
        %v1920 = vpack.c.b16 %v1712, %v1711
        %v1921 = vpack.c.b16 %v1714, %v1713
        %v1922 = vpack.c.b16 %v1716, %v1715
        %v1923 = vpack.c.b16 %v1718, %v1717
        %v1924 = vpack.c.b16 %v1720, %v1719
        %v1925 = vpack.c.b16 %v1722, %v1721
        %v1926 = vpack.c.b16 %v1724, %v1723
        %v1927 = vpack.c.b16 %v1726, %v1725
        %v1928 = vpack.c.b16 %v1728, %v1727
        %v1929 = vpack.c.b16 %v1730, %v1729
        %v1930 = vpack.c.b16 %v1732, %v1731
        %v1931 = vpack.c.b16 %v1734, %v1733
        %v1932 = vpack.c.b16 %v1736, %v1735
        %v1933 = vpack.c.b16 %v1738, %v1737
        %v1934 = vpack.c.b16 %v1740, %v1739
        %v1935 = vpack.c.b16 %v1742, %v1741
        %v1936 = vpack.c.b16 %v1744, %v1743
        %v1937 = vpack.c.b16 %v1746, %v1745
        %v1938 = vpack.c.b16 %v1748, %v1747
        %v1939 = vpack.c.b16 %v1750, %v1749
        %v1940 = vpack.c.b16 %v1752, %v1751
        %v1941 = vpack.c.b16 %v1754, %v1753
        %v1942 = vpack.c.b16 %v1756, %v1755
        %v1943 = vpack.c.b16 %v1758, %v1757
        %v1944 = vpack.c.b16 %v1760, %v1759
        %v1945 = vpack.c.b16 %v1762, %v1761
        %v1946 = vpack.c.b16 %v1764, %v1763
        %v1947 = vpack.c.b16 %v1766, %v1765
        %v1948 = vpack.c.b16 %v1768, %v1767
        %v1949 = vpack.c.b16 %v1770, %v1769
        %v1950 = vpack.c.b16 %v1772, %v1771
        %v1951 = vpack.c.b16 %v1774, %v1773
        %v1952 = vpack.c.b16 %v1776, %v1775
        %v1953 = vpack.c.b16 %v1778, %v1777
        %v1954 = vpack.c.b16 %v1780, %v1779
        %v1955 = vpack.c.b16 %v1782, %v1781
        %v1956 = vpack.c.b16 %v1784, %v1783
        %v1957 = vpack.c.b16 %v1786, %v1785
        %v1958 = vpack.c.b16 %v1788, %v1787
        %v1959 = vpack.c.b16 %v1790, %v1789
        %v1960 = vpack.c.b16 %v1792, %v1791
        %v1961 = vpack.c.b16 %v1794, %v1793
        %v1962 = vpack.c.b16 %v1796, %v1795
        %v1963 = vpack.c.b16 %v1798, %v1797
        %v1964 = vpack.c.b16 %v1800, %v1799
        %v1965 = vpack.c.b16 %v1802, %v1801
        %v1966 = vpack.c.b16 %v1804, %v1803
        %v1967 = vpack.c.b16 %v1806, %v1805
        %v1968 = vpack.c.b16 %v1808, %v1807
        %v1969 = vpack.c.b16 %v1810, %v1809
        %v1970 = vpack.c.b16 %v1812, %v1811
        %v1971 = vpack.c.b16 %v1814, %v1813
        %v1972 = vpack.c.b16 %v1816, %v1815
        %v1973 = vpack.c.b16 %v1818, %v1817
        %v1974 = vpack.c.b16 %v1820, %v1819
        %v1975 = vpack.c.b16 %v1822, %v1821
        %v1976 = vpack.c.b16 %v1824, %v1823
        %v1977 = vpack.c.b16 %v1826, %v1825
        %v1978 = vpack.c.b16 %v1828, %v1827
        %v1979 = vpack.c.b16 %v1830, %v1829
        %v1980 = vpack.c.b16 %v1832, %v1831
        %v1981 = vpack.c.b16 %v1834, %v1833
        %v1982 = vpack.c.b16 %v1836, %v1835
        %v1983 = vpack.c.b16 %v1838, %v1837
        %v1984 = vpack.c.b16 %v1840, %v1839
        %v1985 = vpack.c.b16 %v1842, %v1841
        %v1986 = vpack.c.b16 %v1844, %v1843
        %v1987 = vpack.c.b16 %v1846, %v1845
        %v1988 = vpack.c.b16 %v1848, %v1847
        %v1989 = vpack.c.b16 %v1850, %v1849
        %v1990 = vpack.c.b16 %v1852, %v1851
        %v1991 = vpack.c.b16 %v1854, %v1853
        %v1992 = vpack.c.b16 %v1856, %v1855
        %v1993 = vpack.c.b16 %v1858, %v1857
        %v1994 = vpack.c.b16 %v1860, %v1859
        %v1995 = vpack.c.b16 %v1862, %v1861
        %v1996 = vpack.c.b16 %v1864, %v1863
        %v1997 = vpack.c.b16 %v1866, %v1865
        %v1998 = vpack.c.b16 %v1868, %v1867
        %v1999 = vpack.c.b16 %v1870, %v1869
        %v2000 = vpack.c.b16 %v1872, %v1871
        %2129 = vmatpush.bf16.msra.mxu0 %v1880
        %2130 = vmatpush.bf16.msra.mxu0 %v1879
        %2131 = vmatpush.bf16.msra.mxu0 %v1878
        %2132 = vmatpush.bf16.msra.mxu0 %v1877
        %2133 = vmatpush.bf16.msra.mxu0 %v1876
        %2134 = vmatpush.bf16.msra.mxu0 %v1875
        %2135 = vmatpush.bf16.msra.mxu0 %v1874
        %2136 = vmatpush.bf16.msra.mxu0 %v1873
        %2137 = vmatmul.bf16.gmra.mxu0 %v1088
        %v2138 = vpop.f32.mrf.mxu0
        %v2139 = vadd.f32 %v1360, %v2138
        %v2140 = vpop.f32.mrf.mxu0
        %2141 = vdwg.mxu0
        %2142 = vmatpush.bf16.msra.mxu0 %v1888
        %2143 = vmatpush.bf16.msra.mxu0 %v1887
        %2144 = vmatpush.bf16.msra.mxu0 %v1886
        %2145 = vmatpush.bf16.msra.mxu0 %v1885
        %2146 = vmatpush.bf16.msra.mxu0 %v1884
        %2147 = vmatpush.bf16.msra.mxu0 %v1883
        %2148 = vmatpush.bf16.msra.mxu0 %v1882
        %2149 = vmatpush.bf16.msra.mxu0 %v1881
        %2150 = vmatmul.bf16.gmra.mxu0 %v1089
        %v2151 = vpop.f32.mrf.mxu0
        %v2152 = vadd.f32 %v2139, %v2151
        %v2153 = vpop.f32.mrf.mxu0
        %2154 = vdwg.mxu0
        %2155 = vmatpush.bf16.msra.mxu0 %v1896
        %2156 = vmatpush.bf16.msra.mxu0 %v1895
        %2157 = vmatpush.bf16.msra.mxu0 %v1894
        %2158 = vmatpush.bf16.msra.mxu0 %v1893
        %2159 = vmatpush.bf16.msra.mxu0 %v1892
        %2160 = vmatpush.bf16.msra.mxu0 %v1891
        %2161 = vmatpush.bf16.msra.mxu0 %v1890
        %2162 = vmatpush.bf16.msra.mxu0 %v1889
        %2163 = vmatmul.bf16.gmra.mxu0 %v1090
        %v2164 = vpop.f32.mrf.mxu0
        %v2165 = vadd.f32 %v2152, %v2164
        %v2166 = vpop.f32.mrf.mxu0
        %2167 = vdwg.mxu0
        %2168 = vmatpush.bf16.msra.mxu0 %v1904
        %2169 = vmatpush.bf16.msra.mxu0 %v1903
        %2170 = vmatpush.bf16.msra.mxu0 %v1902
        %2171 = vmatpush.bf16.msra.mxu0 %v1901
        %2172 = vmatpush.bf16.msra.mxu0 %v1900
        %2173 = vmatpush.bf16.msra.mxu0 %v1899
        %2174 = vmatpush.bf16.msra.mxu0 %v1898
        %2175 = vmatpush.bf16.msra.mxu0 %v1897
        %2176 = vmatmul.bf16.gmra.mxu0 %v1091
        %v2177 = vpop.f32.mrf.mxu0
        %v2178 = vadd.f32 %v2165, %v2177
        %v2179 = vpop.f32.mrf.mxu0
        %2180 = vdwg.mxu0
        %2181 = vmatpush.bf16.msra.mxu0 %v1912
        %2182 = vmatpush.bf16.msra.mxu0 %v1911
        %2183 = vmatpush.bf16.msra.mxu0 %v1910
        %2184 = vmatpush.bf16.msra.mxu0 %v1909
        %2185 = vmatpush.bf16.msra.mxu0 %v1908
        %2186 = vmatpush.bf16.msra.mxu0 %v1907
        %2187 = vmatpush.bf16.msra.mxu0 %v1906
        %2188 = vmatpush.bf16.msra.mxu0 %v1905
        %2189 = vmatmul.bf16.gmra.mxu0 %v1092
        %v2190 = vpop.f32.mrf.mxu0
        %v2191 = vadd.f32 %v2178, %v2190
        %v2192 = vpop.f32.mrf.mxu0
        %2193 = vdwg.mxu0
        %2194 = vmatpush.bf16.msra.mxu0 %v1920
        %2195 = vmatpush.bf16.msra.mxu0 %v1919
        %2196 = vmatpush.bf16.msra.mxu0 %v1918
        %2197 = vmatpush.bf16.msra.mxu0 %v1917
        %2198 = vmatpush.bf16.msra.mxu0 %v1916
        %2199 = vmatpush.bf16.msra.mxu0 %v1915
        %2200 = vmatpush.bf16.msra.mxu0 %v1914
        %2201 = vmatpush.bf16.msra.mxu0 %v1913
        %2202 = vmatmul.bf16.gmra.mxu0 %v1093
        %v2203 = vpop.f32.mrf.mxu0
        %v2204 = vadd.f32 %v2191, %v2203
        %v2205 = vpop.f32.mrf.mxu0
        %2206 = vdwg.mxu0
        %2207 = vmatpush.bf16.msra.mxu0 %v1928
        %2208 = vmatpush.bf16.msra.mxu0 %v1927
        %2209 = vmatpush.bf16.msra.mxu0 %v1926
        %2210 = vmatpush.bf16.msra.mxu0 %v1925
        %2211 = vmatpush.bf16.msra.mxu0 %v1924
        %2212 = vmatpush.bf16.msra.mxu0 %v1923
        %2213 = vmatpush.bf16.msra.mxu0 %v1922
        %2214 = vmatpush.bf16.msra.mxu0 %v1921
        %2215 = vmatmul.bf16.gmra.mxu0 %v1094
        %v2216 = vpop.f32.mrf.mxu0
        %v2217 = vadd.f32 %v2204, %v2216
        %v2218 = vpop.f32.mrf.mxu0
        %2219 = vdwg.mxu0
        %2220 = vmatpush.bf16.msra.mxu0 %v1936
        %2221 = vmatpush.bf16.msra.mxu0 %v1935
        %2222 = vmatpush.bf16.msra.mxu0 %v1934
        %2223 = vmatpush.bf16.msra.mxu0 %v1933
        %2224 = vmatpush.bf16.msra.mxu0 %v1932
        %2225 = vmatpush.bf16.msra.mxu0 %v1931
        %2226 = vmatpush.bf16.msra.mxu0 %v1930
        %2227 = vmatpush.bf16.msra.mxu0 %v1929
        %2228 = vmatmul.bf16.gmra.mxu0 %v1095
        %v2229 = vpop.f32.mrf.mxu0
        %v2230 = vadd.f32 %v2217, %v2229
        %v2231 = vpop.f32.mrf.mxu0
        %2232 = vdwg.mxu0
        %2233 = vmatpush.bf16.msra.mxu0 %v1944
        %2234 = vmatpush.bf16.msra.mxu0 %v1943
        %2235 = vmatpush.bf16.msra.mxu0 %v1942
        %2236 = vmatpush.bf16.msra.mxu0 %v1941
        %2237 = vmatpush.bf16.msra.mxu0 %v1940
        %2238 = vmatpush.bf16.msra.mxu0 %v1939
        %2239 = vmatpush.bf16.msra.mxu0 %v1938
        %2240 = vmatpush.bf16.msra.mxu0 %v1937
        %2241 = vmatmul.bf16.gmra.mxu0 %v1096
        %v2242 = vpop.f32.mrf.mxu0
        %v2243 = vadd.f32 %v2230, %v2242
        %v2244 = vpop.f32.mrf.mxu0
        %2245 = vdwg.mxu0
        %2246 = vmatpush.bf16.msra.mxu0 %v1952
        %2247 = vmatpush.bf16.msra.mxu0 %v1951
        %2248 = vmatpush.bf16.msra.mxu0 %v1950
        %2249 = vmatpush.bf16.msra.mxu0 %v1949
        %2250 = vmatpush.bf16.msra.mxu0 %v1948
        %2251 = vmatpush.bf16.msra.mxu0 %v1947
        %2252 = vmatpush.bf16.msra.mxu0 %v1946
        %2253 = vmatpush.bf16.msra.mxu0 %v1945
        %2254 = vmatmul.bf16.gmra.mxu0 %v1097
        %v2255 = vpop.f32.mrf.mxu0
        %v2256 = vadd.f32 %v2243, %v2255
        %v2257 = vpop.f32.mrf.mxu0
        %2258 = vdwg.mxu0
        %2259 = vmatpush.bf16.msra.mxu0 %v1960
        %2260 = vmatpush.bf16.msra.mxu0 %v1959
        %2261 = vmatpush.bf16.msra.mxu0 %v1958
        %2262 = vmatpush.bf16.msra.mxu0 %v1957
        %2263 = vmatpush.bf16.msra.mxu0 %v1956
        %2264 = vmatpush.bf16.msra.mxu0 %v1955
        %2265 = vmatpush.bf16.msra.mxu0 %v1954
        %2266 = vmatpush.bf16.msra.mxu0 %v1953
        %2267 = vmatmul.bf16.gmra.mxu0 %v1098
        %v2268 = vpop.f32.mrf.mxu0
        %v2269 = vadd.f32 %v2256, %v2268
        %v2270 = vpop.f32.mrf.mxu0
        %2271 = vdwg.mxu0
        %2272 = vmatpush.bf16.msra.mxu0 %v1968
        %2273 = vmatpush.bf16.msra.mxu0 %v1967
        %2274 = vmatpush.bf16.msra.mxu0 %v1966
        %2275 = vmatpush.bf16.msra.mxu0 %v1965
        %2276 = vmatpush.bf16.msra.mxu0 %v1964
        %2277 = vmatpush.bf16.msra.mxu0 %v1963
        %2278 = vmatpush.bf16.msra.mxu0 %v1962
        %2279 = vmatpush.bf16.msra.mxu0 %v1961
        %2280 = vmatmul.bf16.gmra.mxu0 %v1099
        %v2281 = vpop.f32.mrf.mxu0
        %v2282 = vadd.f32 %v2269, %v2281
        %v2283 = vpop.f32.mrf.mxu0
        %2284 = vdwg.mxu0
        %2285 = vmatpush.bf16.msra.mxu0 %v1976
        %2286 = vmatpush.bf16.msra.mxu0 %v1975
        %2287 = vmatpush.bf16.msra.mxu0 %v1974
        %2288 = vmatpush.bf16.msra.mxu0 %v1973
        %2289 = vmatpush.bf16.msra.mxu0 %v1972
        %2290 = vmatpush.bf16.msra.mxu0 %v1971
        %2291 = vmatpush.bf16.msra.mxu0 %v1970
        %2292 = vmatpush.bf16.msra.mxu0 %v1969
        %2293 = vmatmul.bf16.gmra.mxu0 %v1100
        %v2294 = vpop.f32.mrf.mxu0
        %v2295 = vadd.f32 %v2282, %v2294
        %v2296 = vpop.f32.mrf.mxu0
        %2297 = vdwg.mxu0
        %2298 = vmatpush.bf16.msra.mxu0 %v1984
        %2299 = vmatpush.bf16.msra.mxu0 %v1983
        %2300 = vmatpush.bf16.msra.mxu0 %v1982
        %2301 = vmatpush.bf16.msra.mxu0 %v1981
        %2302 = vmatpush.bf16.msra.mxu0 %v1980
        %2303 = vmatpush.bf16.msra.mxu0 %v1979
        %2304 = vmatpush.bf16.msra.mxu0 %v1978
        %2305 = vmatpush.bf16.msra.mxu0 %v1977
        %2306 = vmatmul.bf16.gmra.mxu0 %v1101
        %v2307 = vpop.f32.mrf.mxu0
        %v2308 = vadd.f32 %v2295, %v2307
        %v2309 = vpop.f32.mrf.mxu0
        %2310 = vdwg.mxu0
        %2311 = vmatpush.bf16.msra.mxu0 %v1992
        %2312 = vmatpush.bf16.msra.mxu0 %v1991
        %2313 = vmatpush.bf16.msra.mxu0 %v1990
        %2314 = vmatpush.bf16.msra.mxu0 %v1989
        %2315 = vmatpush.bf16.msra.mxu0 %v1988
        %2316 = vmatpush.bf16.msra.mxu0 %v1987
        %2317 = vmatpush.bf16.msra.mxu0 %v1986
        %2318 = vmatpush.bf16.msra.mxu0 %v1985
        %2319 = vmatmul.bf16.gmra.mxu0 %v1102
        %v2320 = vpop.f32.mrf.mxu0
        %v2321 = vadd.f32 %v2308, %v2320
        %v2322 = vpop.f32.mrf.mxu0
        %2323 = vdwg.mxu0
        %2324 = vmatpush.bf16.msra.mxu0 %v2000
        %2325 = vmatpush.bf16.msra.mxu0 %v1999
        %2326 = vmatpush.bf16.msra.mxu0 %v1998
        %2327 = vmatpush.bf16.msra.mxu0 %v1997
        %2328 = vmatpush.bf16.msra.mxu0 %v1996
        %2329 = vmatpush.bf16.msra.mxu0 %v1995
        %2330 = vmatpush.bf16.msra.mxu0 %v1994
        %2331 = vmatpush.bf16.msra.mxu0 %v1993
        %2332 = vmatmul.bf16.gmra.mxu0 %v1103
        %v2333 = vpop.f32.mrf.mxu0
        %v2334 = vadd.f32 %v2321, %v2333
        %v2335 = vpop.f32.mrf.mxu0
        %2336 = vdwg.mxu0
        %v2337 = vadd.f32 %v611, %v2334
        %2338 = vst.msk [vmem:[%s242] sm:$0xff] %vm256, %v2337
        %s2339 = sand.u32 %s159, 1
        %s2340 = scalar_lea.sflag [#allocation4], %s2339
        %s2341 = sand.u32 %s159, 1
        %s2342 = smul.addr %s2341, 8
        %s2343 = scalar_lea.vmem [#allocation3], %s2342
        // Predicated region
        $region45: #{tpu_custom_call.1} parent=43 // pred_check
          %p2344 = pneg %p169
        $region46: #{tpu_custom_call.1} parent=43 // pred_check_branch
          %2346 = sbr.rel (%p2344) target = $region48
        $region47: #{tpu_custom_call.1} parent=43 // pred_region
          %2348 = vsyncadd %s2340, 0
          %s2349 = smul.addr %s20, 8
          %s2350 = scalar_lea.hbm %s6, %s2349
          %s2352 = sshll.u32 %s2343, 4
          %s2353 = int_to_ptr.vmem [resolvable:$true] %s2352
          %s2354 = sshll.u32 %s2350, 4
          %s2355 = int_to_ptr.hbm [resolvable:$true] %s2354
          %2357 = dma.vmem_to_hbm [thread:$0]  %s2353, 128, %s2355, %s2340
        $region48: #{tpu_custom_call.1} parent=43 // pred_fallthru
          _
      $region44: #{tpu_custom_call.1} parent=5 // pred_fallthru
        _
      %p2358 = scmp.le.s32.totalorder 2, %s15
      // Predicated region
      $region49: #{tpu_custom_call.1} parent=5 // pred_check
        %p2359 = pneg %p2358
      $region50: #{tpu_custom_call.1} parent=5 // pred_check_branch
        %2361 = sbr.rel (%p2359) target = $region52
      $region51: #{tpu_custom_call.1} parent=5 // pred_region
        %s2362 = ssub.s32 %s15, 2
        // Predicated region
        $region53: #{tpu_custom_call.1} parent=51 // pred_check
          %p2363 = pneg %p175
        $region54: #{tpu_custom_call.1} parent=51 // pred_check_branch
          %2365 = sbr.rel (%p2363) target = $region56
        $region55: #{tpu_custom_call.1} parent=51 // pred_region
          %s2366 = sand.u32 %s160, 1
          %s2367 = scalar_lea.sflag [#allocation4], %s2366
          %s2368 = sand.u32 %s160, 1
          %s2369 = smul.addr %s2368, 8
          %s2370 = scalar_lea.vmem [#allocation3], %s2369
          %2372 = dma.done %s2367, 128
        $region56: #{tpu_custom_call.1} parent=51 // pred_fallthru
          _
      $region52: #{tpu_custom_call.1} parent=5 // pred_fallthru
        _
    $region6: #{tpu_custom_call.1} parent=1 // loop_footer
      %s19 = sadd.s32 1, %s15
    $region7: #{tpu_custom_call.1} parent=1 // loop_footer_branch
      %14 = sbr.rel target = $region3
    $region8: #{tpu_custom_call.1} parent=1 // loop_exit
      _
    %2373 = vsyncpa [#allocation4], 1
    %s2374 = scalar_lea.sflag [#allocation4], 1
    %2375 = vsyncpa %s2374, 1

// kernel: tpu_custom_call.1
$region0: #{tpu_custom_call.1}
  #allocation0 [shape = 'u32[]', space=smem, size = 0x4, offset = 0x4, fixed_abs, tag = 'smem constant byte address 0x4 - core index']
  #allocation1 [shape = 'u32[72,128]{1,0:T(1,128)}', space=vmem, size = 0x9000, scoped, tag = 'internal scratch']
  #allocation2 [shape = 'bf16[8,32]{1,0:T(8,128)(2,1)}', space=vmem, size = 0x800, scoped, tag = 'scratch operand']
  %s0 = inlined_call_operand.vmem [shape: f32[2,8,32], index: 0, kind: input, shape index: {}]
  %s1 = inlined_call_operand.vmem [shape: bf16[32,96], index: 1, kind: input, shape index: {}]
  %s2 = inlined_call_operand.vmem [shape: bf16[32,32], index: 2, kind: input, shape index: {}]
  %s3 = inlined_call_operand.vmem [shape: bf16[32,2048], index: 3, kind: input, shape index: {}]
  %s4 = inlined_call_operand.vmem [shape: bf16[2048,32], index: 4, kind: input, shape index: {}]
  %s5 = inlined_call_operand.vmem [shape: f32[4,2048], index: 5, kind: input, shape index: {}]
  %s6 = inlined_call_operand.hbm [shape: f32[2,8,32], index: 6, kind: output, shape index: {}]
  %s7 = sld [smem:[#allocation0]]
  $region57: #{tpu_custom_call.1} parent=0
    _
  %s9 = ssub.s32 1, %s7
  %s10 = scalar_select 0, %s9, %s7
  $region1: #{tpu_custom_call.1} parent=0
    #allocation3 [shape = 'u8[8192]{0}', space=vmem, size = 0x2000, scoped, tag = 'output window, operand 0']
    #allocation4 [shape = 's32[2]{0}', space=sflag, size = 0x8, scoped, tag = 'scoped memory for tpu_custom_call.1']
    %11 = vsyncpa [#allocation4], 0
    %s12 = scalar_lea.sflag [#allocation4], 1
    %13 = vsyncpa %s12, 0
    loop: start=0, step=1, limit=4
    $region2: #{tpu_custom_call.1} parent=1 // loop_pre_header
      _
    $region3: #{tpu_custom_call.1} parent=1 // loop_header
      %s15 = sphi 0, %s19
      %p16 = scmp.ge.s32.totalorder %s15, 4
      %s25 = sphi 0, %s27
      %s28 = sphi 0, %s25
      %s29 = sphi 0, %s28
      %s45 = sphi 0, %s29
      %s49 = sphi 0, %s49
      %s51 = sphi 0, %s49
      %s52 = sphi 0, %s51
      %s66 = sphi 0, %s52
      %s70 = sphi 0, %s70
      %s72 = sphi 0, %s70
      %s73 = sphi 0, %s72
      %s87 = sphi 0, %s73
      %s91 = sphi 0, %s91
      %s93 = sphi 0, %s91
      %s94 = sphi 0, %s93
      %s108 = sphi 0, %s94
      %s112 = sphi 0, %s112
      %s114 = sphi 0, %s112
      %s115 = sphi 0, %s114
      %s129 = sphi 0, %s115
      %s133 = sphi 0, %s133
      %s135 = sphi 0, %s133
      %s136 = sphi 0, %s135
      %s150 = sphi 0, %s136
      %s156 = sphi 0, %s158
      %s159 = sphi 0, %s156
      %s160 = sphi 0, %s159
      %s176 = sphi 0, %s160
    $region4: #{tpu_custom_call.1} parent=1 // loop_header_branch
      %18 = sbr.rel (%p16) target = $region8
    $region5: #{tpu_custom_call.1} parent=1 // loop_body
      %s20 = ssub.s32 %s15, 1
      %s21 = ssub.s32 %s15, 2
      %s22 = sadd.s32 %s15, 1
      %s23 = ssub.s32 %s15, %s22
      %p24 = scmp.eq.s32.totalorder %s23, 0
      %s26 = sadd.s32 %s25, 1
      %s27 = scalar_select %p24, %s25, %s26
      %p30 = pneg %p24
      %p31 = scmp.eq.s32.totalorder %s15, 1
      %p32 = por %p30, %p31
      %p33 = scmp.ne.s32.totalorder %s25, %s28
      %p34 = scmp.eq.s32.totalorder %s15, 0
      %p35 = por %p33, %p34
      %p36 = scmp.ne.s32.totalorder %s25, %s28
      %p37 = scmp.eq.s32.totalorder %s20, 1
      %p38 = por %p36, %p37
      %p39 = scmp.ne.s32.totalorder %s28, %s29
      %p40 = scmp.eq.s32.totalorder %s20, 0
      %p41 = por %p39, %p40
      %p42 = scmp.ne.s32.totalorder %s28, %s29
      %p43 = scmp.eq.s32.totalorder %s21, 1
      %p44 = por %p42, %p43
      %p46 = scmp.ne.s32.totalorder %s29, %s45
      %p47 = scmp.eq.s32.totalorder %s21, 0
      %p48 = por %p46, %p47
      %s50 = sadd.s32 %s49, 1
      %p53 = scmp.eq.s32.totalorder %s15, 1
      %p54 = scmp.ne.s32.totalorder %s49, %s51
      %p55 = scmp.eq.s32.totalorder %s15, 0
      %p56 = por %p54, %p55
      %p57 = scmp.ne.s32.totalorder %s49, %s51
      %p58 = scmp.eq.s32.totalorder %s20, 1
      %p59 = por %p57, %p58
      %p60 = scmp.ne.s32.totalorder %s51, %s52
      %p61 = scmp.eq.s32.totalorder %s20, 0
      %p62 = por %p60, %p61
      %p63 = scmp.ne.s32.totalorder %s51, %s52
      %p64 = scmp.eq.s32.totalorder %s21, 1
      %p65 = por %p63, %p64
      %p67 = scmp.ne.s32.totalorder %s52, %s66
      %p68 = scmp.eq.s32.totalorder %s21, 0
      %p69 = por %p67, %p68
      %s71 = sadd.s32 %s70, 1
      %p74 = scmp.eq.s32.totalorder %s15, 1
      %p75 = scmp.ne.s32.totalorder %s70, %s72
      %p76 = scmp.eq.s32.totalorder %s15, 0
      %p77 = por %p75, %p76
      %p78 = scmp.ne.s32.totalorder %s70, %s72
      %p79 = scmp.eq.s32.totalorder %s20, 1
      %p80 = por %p78, %p79
      %p81 = scmp.ne.s32.totalorder %s72, %s73
      %p82 = scmp.eq.s32.totalorder %s20, 0
      %p83 = por %p81, %p82
      %p84 = scmp.ne.s32.totalorder %s72, %s73
      %p85 = scmp.eq.s32.totalorder %s21, 1
      %p86 = por %p84, %p85
      %p88 = scmp.ne.s32.totalorder %s73, %s87
      %p89 = scmp.eq.s32.totalorder %s21, 0
      %p90 = por %p88, %p89
      %s92 = sadd.s32 %s91, 1
      %p95 = scmp.eq.s32.totalorder %s15, 1
      %p96 = scmp.ne.s32.totalorder %s91, %s93
      %p97 = scmp.eq.s32.totalorder %s15, 0
      %p98 = por %p96, %p97
      %p99 = scmp.ne.s32.totalorder %s91, %s93
      %p100 = scmp.eq.s32.totalorder %s20, 1
      %p101 = por %p99, %p100
      %p102 = scmp.ne.s32.totalorder %s93, %s94
      %p103 = scmp.eq.s32.totalorder %s20, 0
      %p104 = por %p102, %p103
      %p105 = scmp.ne.s32.totalorder %s93, %s94
      %p106 = scmp.eq.s32.totalorder %s21, 1
      %p107 = por %p105, %p106
      %p109 = scmp.ne.s32.totalorder %s94, %s108
      %p110 = scmp.eq.s32.totalorder %s21, 0
      %p111 = por %p109, %p110
      %s113 = sadd.s32 %s112, 1
      %p116 = scmp.eq.s32.totalorder %s15, 1
      %p117 = scmp.ne.s32.totalorder %s112, %s114
      %p118 = scmp.eq.s32.totalorder %s15, 0
      %p119 = por %p117, %p118
      %p120 = scmp.ne.s32.totalorder %s112, %s114
      %p121 = scmp.eq.s32.totalorder %s20, 1
      %p122 = por %p120, %p121
      %p123 = scmp.ne.s32.totalorder %s114, %s115
      %p124 = scmp.eq.s32.totalorder %s20, 0
      %p125 = por %p123, %p124
      %p126 = scmp.ne.s32.totalorder %s114, %s115
      %p127 = scmp.eq.s32.totalorder %s21, 1
      %p128 = por %p126, %p127
      %p130 = scmp.ne.s32.totalorder %s115, %s129
      %p131 = scmp.eq.s32.totalorder %s21, 0
      %p132 = por %p130, %p131
      %s134 = sadd.s32 %s133, 1
      %p137 = scmp.eq.s32.totalorder %s15, 1
      %p138 = scmp.ne.s32.totalorder %s133, %s135
      %p139 = scmp.eq.s32.totalorder %s15, 0
      %p140 = por %p138, %p139
      %p141 = scmp.ne.s32.totalorder %s133, %s135
      %p142 = scmp.eq.s32.totalorder %s20, 1
      %p143 = por %p141, %p142
      %p144 = scmp.ne.s32.totalorder %s135, %s136
      %p145 = scmp.eq.s32.totalorder %s20, 0
      %p146 = por %p144, %p145
      %p147 = scmp.ne.s32.totalorder %s135, %s136
      %p148 = scmp.eq.s32.totalorder %s21, 1
      %p149 = por %p147, %p148
      %p151 = scmp.ne.s32.totalorder %s136, %s150
      %p152 = scmp.eq.s32.totalorder %s21, 0
      %p153 = por %p151, %p152
      %s154 = ssub.s32 %s15, %s22
      %p155 = scmp.eq.s32.totalorder %s154, 0
      %s157 = sadd.s32 %s156, 1
      %s158 = scalar_select %p155, %s156, %s157
      %p161 = pneg %p155
      %p162 = scmp.eq.s32.totalorder %s15, 1
      %p163 = por %p161, %p162
      %p164 = scmp.ne.s32.totalorder %s156, %s159
      %p165 = scmp.eq.s32.totalorder %s15, 0
      %p166 = por %p164, %p165
      %p167 = scmp.ne.s32.totalorder %s156, %s159
      %p168 = scmp.eq.s32.totalorder %s20, 1
      %p169 = por %p167, %p168
      %p170 = scmp.ne.s32.totalorder %s159, %s160
      %p171 = scmp.eq.s32.totalorder %s20, 0
      %p172 = por %p170, %p171
      %p173 = scmp.ne.s32.totalorder %s159, %s160
      %p174 = scmp.eq.s32.totalorder %s21, 1
      %p175 = por %p173, %p174
      %p177 = scmp.ne.s32.totalorder %s160, %s176
      %p178 = scmp.eq.s32.totalorder %s21, 0
      %p179 = por %p177, %p178
      %p180 = scmp.le.s32.totalorder 1, %s15
      %p181 = scmp.lt.s32.totalorder %s15, 3
      %p182 = pnand %p180, %p181
      %p183 = pneg %p182
      // Predicated region
      $region9: #{tpu_custom_call.1} parent=5 // pred_check
        _
      $region10: #{tpu_custom_call.1} parent=5 // pred_check_branch
        %185 = sbr.rel (%p182) target = $region12
      $region11: #{tpu_custom_call.1} parent=5 // pred_region
        %s186 = ssub.s32 %s15, 1
        // Predicated region
        $region13: #{tpu_custom_call.1} parent=11 // pred_check
          %p187 = pneg %p62
        $region14: #{tpu_custom_call.1} parent=11 // pred_check_branch
          %189 = sbr.rel (%p187) target = $region16
        $region15: #{tpu_custom_call.1} parent=11 // pred_region
          _
        $region16: #{tpu_custom_call.1} parent=11 // pred_fallthru
          _
        // Predicated region
        $region17: #{tpu_custom_call.1} parent=11 // pred_check
          %p190 = pneg %p83
        $region18: #{tpu_custom_call.1} parent=11 // pred_check_branch
          %192 = sbr.rel (%p190) target = $region20
        $region19: #{tpu_custom_call.1} parent=11 // pred_region
          _
        $region20: #{tpu_custom_call.1} parent=11 // pred_fallthru
          _
        // Predicated region
        $region21: #{tpu_custom_call.1} parent=11 // pred_check
          %p193 = pneg %p104
        $region22: #{tpu_custom_call.1} parent=11 // pred_check_branch
          %195 = sbr.rel (%p193) target = $region24
        $region23: #{tpu_custom_call.1} parent=11 // pred_region
          _
        $region24: #{tpu_custom_call.1} parent=11 // pred_fallthru
          _
        // Predicated region
        $region25: #{tpu_custom_call.1} parent=11 // pred_check
          %p196 = pneg %p125
        $region26: #{tpu_custom_call.1} parent=11 // pred_check_branch
          %198 = sbr.rel (%p196) target = $region28
        $region27: #{tpu_custom_call.1} parent=11 // pred_region
          _
        $region28: #{tpu_custom_call.1} parent=11 // pred_fallthru
          _
        // Predicated region
        $region29: #{tpu_custom_call.1} parent=11 // pred_check
          %p199 = pneg %p146
        $region30: #{tpu_custom_call.1} parent=11 // pred_check_branch
          %201 = sbr.rel (%p199) target = $region32
        $region31: #{tpu_custom_call.1} parent=11 // pred_region
          _
        $region32: #{tpu_custom_call.1} parent=11 // pred_fallthru
          _
      $region12: #{tpu_custom_call.1} parent=5 // pred_fallthru
        _
      %p202 = scmp.lt.s32.totalorder %s15, 2
      // Predicated region
      $region33: #{tpu_custom_call.1} parent=5 // pred_check
        %p203 = pneg %p202
      $region34: #{tpu_custom_call.1} parent=5 // pred_check_branch
        %205 = sbr.rel (%p203) target = $region36
      $region35: #{tpu_custom_call.1} parent=5 // pred_region
        // Predicated region
        $region37: #{tpu_custom_call.1} parent=35 // pred_check
          %p206 = pneg %p35
        $region38: #{tpu_custom_call.1} parent=35 // pred_check_branch
          %208 = sbr.rel (%p206) target = $region40
        $region39: #{tpu_custom_call.1} parent=35 // pred_region
          %p209 = scmp.lt.s32.totalorder %s15, 1
          %s210 = scalar_select %p209, %s15, 1
          %s211 = smul.addr %s210, 8
          %s212 = scalar_lea.vmem %s0, %s211
        $region40: #{tpu_custom_call.1} parent=35 // pred_fallthru
          _
      $region36: #{tpu_custom_call.1} parent=5 // pred_fallthru
        _
      %p213 = scmp.le.s32.totalorder 1, %s15
      %p214 = scmp.lt.s32.totalorder %s15, 3
      %p215 = pnand %p213, %p214
      %p216 = pneg %p215
      // Predicated region
      $region41: #{tpu_custom_call.1} parent=5 // pred_check
        _
      $region42: #{tpu_custom_call.1} parent=5 // pred_check_branch
        %218 = sbr.rel (%p215) target = $region44
      $region43: #{tpu_custom_call.1} parent=5 // pred_region
        %s219 = ssub.s32 %s15, 1
        %p220 = scmp.lt.s32.totalorder %s20, 1
        %s221 = scalar_select %p220, %s20, 1
        %s222 = smul.addr %s221, 8
        %s223 = scalar_lea.vmem %s0, %s222
        %p224 = pneg %p41
        %p225 = pneg %p38
        %p226 = pneg %p62
        %p227 = pneg %p59
        %p228 = pneg %p83
        %p229 = pneg %p80
        %p230 = pneg %p104
        %p231 = pneg %p101
        %p232 = pneg %p125
        %p233 = pneg %p122
        %p234 = pneg %p146
        %p235 = pneg %p143
        %p236 = pneg %p172
        %p237 = pneg %p169
        %s238 = sand.u32 %s159, 1
        %s239 = scalar_lea.sflag [#allocation4], %s238
        %s240 = sand.u32 %s159, 1
        %s241 = smul.addr %s240, 8
        %s242 = scalar_lea.vmem [#allocation3], %s241
        %p243 = scmp.lt.s32.totalorder %s20, 1
        %s244 = scalar_select %p243, %s20, 1
        %s245 = smul.addr %s244, 8
        %s246 = scalar_lea.vmem %s0, %s245
        %v248 = vld [vmem:[%s246] sm:$0xff]
        %v249 = vld [vmem:[%s5] sm:$0x1]
        %v250 = vld [vmem:[%s5 + $0x1] sm:$0x1]
        %s251 = scalar_lea.vmem %s5, 2
        %v252 = vld [vmem:[%s251] ss:$4 sm:$0xff]
        %s253 = scalar_lea.vmem %s5, 34
        %v254 = vld [vmem:[%s253] ss:$4 sm:$0xff]
        %v255 = vld [vmem:[%s5 + $0x3] sm:$0x1]
        %vm256 = vcmask 261120
        %v257 = vsel %vm256, %v248, 0.0
        %258 = vadd.xlane.f32.xlu0 %v257
        %v259 = vpop.xlane.xlu0 %258
        %v260 = vrcp.pop 32.0
        %v261 = vmul.f32 32.0, %v260
        %v262 = vsub.f32 1.0, %v261
        %v263 = vmul.f32 %v260, %v262
        %v264 = vadd.f32 %v260, %v263
        %vm265 = vweird.f32 %v260
        %v266 = vsel %vm265, %v260, %v264
        %v267 = vmul.f32 %v259, %v266
        %v268 = vsub.f32 %v248, %v267
        %v269 = vmul.f32 %v268, %v268
        %v270 = vsel %vm256, %v269, 0.0
        %271 = vadd.xlane.f32.xlu0 %v270
        %v272 = vpop.xlane.xlu0 %271
        %v273 = vmul.f32 %v272, %v266
        %v274 = vadd.f32 %v273, 1e-06
        %v275 = vrsqrt.pop %v274
        %v276 = vmul.f32 %v275, %v274
        %v277 = vmul.f32 %v276, %v275
        %v278 = vmul.f32 0.5, %v277
        %v279 = vsub.f32 1.5, %v278
        %v280 = vmul.f32 %v275, %v279
        %vm281 = vweird.f32 %v274
        %vm282 = vweird.f32 %v275
        %vm283 = vmor %vm281, %vm282
        %v284 = vsel %vm283, %v275, %v280
        %v285 = vmul.f32 %v268, %v284
        %v286 = vpack.c.bf16 %v285, %v285
        %v287 = vld [vmem:[%s1] sm:$0xf]
        %v288 = vld [vmem:[%s1 + $0x4] sm:$0xf]
        %v289 = vld [vmem:[%s1 + $0x8] sm:$0xf]
        %v290 = vld [vmem:[%s1 + $0xc] sm:$0xf]
        %v291 = vperm.slane %v249, 0
        %v296 = vunpack.c.l.b16 %v287
        %v297 = vunpack.c.l.b16 %v288
        %v298 = vunpack.c.l.b16 %v289
        %v299 = vunpack.c.l.b16 %v290
        %v300 = vpack.c.b16 %v297, %v296
        %v301 = vpack.c.b16 %v299, %v298
        %v305 = vsel %vm256, %v286, 0
        %307 = vmatpush.bf16.msra.mxu0 0
        %308 = vmatpush.bf16.msra.mxu0 0
        %309 = vmatpush.bf16.msra.mxu0 0
        %310 = vmatpush.bf16.msra.mxu0 0
        %311 = vmatpush.bf16.msra.mxu0 0
        %312 = vmatpush.bf16.msra.mxu0 0
        %313 = vmatpush.bf16.msra.mxu0 %v301
        %314 = vmatpush.bf16.msra.mxu0 %v300
        %315 = vmatmul.bf16.gmra.mxu0 %v305
        %v316 = vpop.f32.mrf.mxu0
        %v317 = vadd.f32 %v291, %v316
        %v318 = vpop.f32.mrf.mxu0
        %319 = vdwg.mxu0
        %v320 = vpack.c.bf16 %v317, %v317
        %v322 = vunpack.c.l.b16 %v320
        %v323 = vpack.c.b16 %v322, %v322
        %324 = vrot.lane.b32.xlu0 %v323, 96
        %v325 = vpop.permute.xlu0 %324
        %vm326 = vcmask 64512
        %v328 = vsel %vm326, %v320, 0
        %v331 = vsel %vm326, %v325, 0
        %333 = vmatpush.bf16.xpose.msra.mxu0 0
        %334 = vmatpush.bf16.xpose.msra.mxu0 0
        %335 = vmatpush.bf16.xpose.msra.mxu0 0
        %336 = vmatpush.bf16.xpose.msra.mxu0 0
        %337 = vmatpush.bf16.xpose.msra.mxu0 0
        %338 = vmatpush.bf16.xpose.msra.mxu0 0
        %339 = vmatpush.bf16.xpose.msra.mxu0 0
        %340 = vmatpush.bf16.xpose.msra.mxu0 %v331
        %341 = vmatmul.bf16.gmra.mxu0 %v328
        %v342 = vpop.f32.mrf.mxu0
        %v343 = vadd.f32 0.0, %v342
        %v344 = vpop.f32.mrf.mxu0
        %345 = vdwg.mxu0
        %v346 = vmul.f32 %v343, 0.35355338
        %v347 = vsel %vm326, %v346, -inf
        %348 = vmax.xlane.f32.xlu0 %v347
        %v349 = vpop.xlane.xlu0 %348
        %v350 = vsub.f32 %v346, %v349
        %v351 = vmul.f32 %v350, 1.442695
        %v352 = vpow.pop %v351
        %v353 = vsel %vm326, %v352, 0.0
        %354 = vadd.xlane.f32.xlu0 %v353
        %v355 = vpop.xlane.xlu0 %354
        %v356 = vrcp.pop %v355
        %v357 = vmul.f32 %v352, %v356
        %v358 = vpack.c.bf16 %v357, %v357
        %359 = vrot.lane.b32.xlu0 %v323, 64
        %v360 = vpop.permute.xlu0 %359
        %v362 = vsel %vm326, %v358, 0
        %vm364 = vcmask 1043456
        %v366 = vsel %vm364, %v360, 0
        %368 = vmatpush.bf16.msra.mxu0 0
        %369 = vmatpush.bf16.msra.mxu0 0
        %370 = vmatpush.bf16.msra.mxu0 0
        %371 = vmatpush.bf16.msra.mxu0 0
        %372 = vmatpush.bf16.msra.mxu0 0
        %373 = vmatpush.bf16.msra.mxu0 0
        %374 = vmatpush.bf16.msra.mxu0 0
        %375 = vmatpush.bf16.msra.mxu0 %v366
        %376 = vmatmul.bf16.gmra.mxu0 %v362
        %v377 = vpop.f32.mrf.mxu0
        %v378 = vadd.f32 0.0, %v377
        %v379 = vpop.f32.mrf.mxu0
        %380 = vdwg.mxu0
        %v381 = vpack.c.bf16 %v378, %v378
        %vm382 = vcmask 60416
        %383 = vst.msk [vmem:[#allocation2] sm:$0xf] %vm382, %v381
        %384 = vrot.lane.b32.xlu0 %v323, 120
        %v385 = vpop.permute.xlu0 %384
        %386 = vrot.lane.b32.xlu0 %v323, 88
        %v387 = vpop.permute.xlu0 %386
        %v389 = vsel %vm326, %v385, 0
        %v392 = vsel %vm326, %v387, 0
        %394 = vmatpush.bf16.xpose.msra.mxu0 0
        %395 = vmatpush.bf16.xpose.msra.mxu0 0
        %396 = vmatpush.bf16.xpose.msra.mxu0 0
        %397 = vmatpush.bf16.xpose.msra.mxu0 0
        %398 = vmatpush.bf16.xpose.msra.mxu0 0
        %399 = vmatpush.bf16.xpose.msra.mxu0 0
        %400 = vmatpush.bf16.xpose.msra.mxu0 0
        %401 = vmatpush.bf16.xpose.msra.mxu0 %v392
        %402 = vmatmul.bf16.gmra.mxu0 %v389
        %v403 = vpop.f32.mrf.mxu0
        %v404 = vadd.f32 0.0, %v403
        %v405 = vpop.f32.mrf.mxu0
        %406 = vdwg.mxu0
        %v407 = vmul.f32 %v404, 0.35355338
        %v408 = vsel %vm326, %v407, -inf
        %409 = vmax.xlane.f32.xlu0 %v408
        %v410 = vpop.xlane.xlu0 %409
        %v411 = vsub.f32 %v407, %v410
        %v412 = vmul.f32 %v411, 1.442695
        %v413 = vpow.pop %v412
        %v414 = vsel %vm326, %v413, 0.0
        %415 = vadd.xlane.f32.xlu0 %v414
        %v416 = vpop.xlane.xlu0 %415
        %v417 = vrcp.pop %v416
        %v418 = vmul.f32 %v413, %v417
        %v419 = vpack.c.bf16 %v418, %v418
        %420 = vrot.lane.b32.xlu0 %v323, 56
        %v421 = vpop.permute.xlu0 %420
        %v423 = vsel %vm326, %v419, 0
        %v426 = vsel %vm364, %v421, 0
        %428 = vmatpush.bf16.msra.mxu0 0
        %429 = vmatpush.bf16.msra.mxu0 0
        %430 = vmatpush.bf16.msra.mxu0 0
        %431 = vmatpush.bf16.msra.mxu0 0
        %432 = vmatpush.bf16.msra.mxu0 0
        %433 = vmatpush.bf16.msra.mxu0 0
        %434 = vmatpush.bf16.msra.mxu0 0
        %435 = vmatpush.bf16.msra.mxu0 %v426
        %436 = vmatmul.bf16.gmra.mxu0 %v423
        %v437 = vpop.f32.mrf.mxu0
        %v438 = vadd.f32 0.0, %v437
        %v439 = vpop.f32.mrf.mxu0
        %440 = vdwg.mxu0
        %v441 = vpack.c.bf16 %v438, %v438
        %443 = vrot.lane.b32.xlu0 %v441, 8
        %v444 = vpop.permute.xlu0 %443
        %vm446 = vcmask 126016
        %447 = vst.msk [vmem:[#allocation2] sm:$0xf] %vm446, %v444
        %448 = vrot.lane.b32.xlu0 %v323, 112
        %v449 = vpop.permute.xlu0 %448
        %450 = vrot.lane.b32.xlu0 %v323, 80
        %v451 = vpop.permute.xlu0 %450
        %v453 = vsel %vm326, %v449, 0
        %v456 = vsel %vm326, %v451, 0
        %458 = vmatpush.bf16.xpose.msra.mxu0 0
        %459 = vmatpush.bf16.xpose.msra.mxu0 0
        %460 = vmatpush.bf16.xpose.msra.mxu0 0
        %461 = vmatpush.bf16.xpose.msra.mxu0 0
        %462 = vmatpush.bf16.xpose.msra.mxu0 0
        %463 = vmatpush.bf16.xpose.msra.mxu0 0
        %464 = vmatpush.bf16.xpose.msra.mxu0 0
        %465 = vmatpush.bf16.xpose.msra.mxu0 %v456
        %466 = vmatmul.bf16.gmra.mxu0 %v453
        %v467 = vpop.f32.mrf.mxu0
        %v468 = vadd.f32 0.0, %v467
        %v469 = vpop.f32.mrf.mxu0
        %470 = vdwg.mxu0
        %v471 = vmul.f32 %v468, 0.35355338
        %v472 = vsel %vm326, %v471, -inf
        %473 = vmax.xlane.f32.xlu0 %v472
        %v474 = vpop.xlane.xlu0 %473
        %v475 = vsub.f32 %v471, %v474
        %v476 = vmul.f32 %v475, 1.442695
        %v477 = vpow.pop %v476
        %v478 = vsel %vm326, %v477, 0.0
        %479 = vadd.xlane.f32.xlu0 %v478
        %v480 = vpop.xlane.xlu0 %479
        %v481 = vrcp.pop %v480
        %v482 = vmul.f32 %v477, %v481
        %v483 = vpack.c.bf16 %v482, %v482
        %484 = vrot.lane.b32.xlu0 %v323, 48
        %v485 = vpop.permute.xlu0 %484
        %v487 = vsel %vm326, %v483, 0
        %v490 = vsel %vm364, %v485, 0
        %492 = vmatpush.bf16.msra.mxu0 0
        %493 = vmatpush.bf16.msra.mxu0 0
        %494 = vmatpush.bf16.msra.mxu0 0
        %495 = vmatpush.bf16.msra.mxu0 0
        %496 = vmatpush.bf16.msra.mxu0 0
        %497 = vmatpush.bf16.msra.mxu0 0
        %498 = vmatpush.bf16.msra.mxu0 0
        %499 = vmatpush.bf16.msra.mxu0 %v490
        %500 = vmatmul.bf16.gmra.mxu0 %v487
        %v501 = vpop.f32.mrf.mxu0
        %v502 = vadd.f32 0.0, %v501
        %v503 = vpop.f32.mrf.mxu0
        %504 = vdwg.mxu0
        %v505 = vpack.c.bf16 %v502, %v502
        %507 = vrot.lane.b32.xlu0 %v505, 16
        %v508 = vpop.permute.xlu0 %507
        %vm510 = vcmask 191616
        %511 = vst.msk [vmem:[#allocation2] sm:$0xf] %vm510, %v508
        %512 = vrot.lane.b32.xlu0 %v323, 104
        %v513 = vpop.permute.xlu0 %512
        %514 = vrot.lane.b32.xlu0 %v323, 72
        %v515 = vpop.permute.xlu0 %514
        %v517 = vsel %vm326, %v513, 0
        %v520 = vsel %vm326, %v515, 0
        %522 = vmatpush.bf16.xpose.msra.mxu0 0
        %523 = vmatpush.bf16.xpose.msra.mxu0 0
        %524 = vmatpush.bf16.xpose.msra.mxu0 0
        %525 = vmatpush.bf16.xpose.msra.mxu0 0
        %526 = vmatpush.bf16.xpose.msra.mxu0 0
        %527 = vmatpush.bf16.xpose.msra.mxu0 0
        %528 = vmatpush.bf16.xpose.msra.mxu0 0
        %529 = vmatpush.bf16.xpose.msra.mxu0 %v520
        %530 = vmatmul.bf16.gmra.mxu0 %v517
        %v531 = vpop.f32.mrf.mxu0
        %v532 = vadd.f32 0.0, %v531
        %v533 = vpop.f32.mrf.mxu0
        %534 = vdwg.mxu0
        %v535 = vmul.f32 %v532, 0.35355338
        %v536 = vsel %vm326, %v535, -inf
        %537 = vmax.xlane.f32.xlu0 %v536
        %v538 = vpop.xlane.xlu0 %537
        %v539 = vsub.f32 %v535, %v538
        %v540 = vmul.f32 %v539, 1.442695
        %v541 = vpow.pop %v540
        %v542 = vsel %vm326, %v541, 0.0
        %543 = vadd.xlane.f32.xlu0 %v542
        %v544 = vpop.xlane.xlu0 %543
        %v545 = vrcp.pop %v544
        %v546 = vmul.f32 %v541, %v545
        %v547 = vpack.c.bf16 %v546, %v546
        %548 = vrot.lane.b32.xlu0 %v323, 40
        %v549 = vpop.permute.xlu0 %548
        %v551 = vsel %vm326, %v547, 0
        %v554 = vsel %vm364, %v549, 0
        %556 = vmatpush.bf16.msra.mxu0 0
        %557 = vmatpush.bf16.msra.mxu0 0
        %558 = vmatpush.bf16.msra.mxu0 0
        %559 = vmatpush.bf16.msra.mxu0 0
        %560 = vmatpush.bf16.msra.mxu0 0
        %561 = vmatpush.bf16.msra.mxu0 0
        %562 = vmatpush.bf16.msra.mxu0 0
        %563 = vmatpush.bf16.msra.mxu0 %v554
        %564 = vmatmul.bf16.gmra.mxu0 %v551
        %v565 = vpop.f32.mrf.mxu0
        %v566 = vadd.f32 0.0, %v565
        %v567 = vpop.f32.mrf.mxu0
        %568 = vdwg.mxu0
        %v569 = vpack.c.bf16 %v566, %v566
        %571 = vrot.lane.b32.xlu0 %v569, 24
        %v572 = vpop.permute.xlu0 %571
        %vm574 = vcmask 257216
        %575 = vst.msk [vmem:[#allocation2] sm:$0xf] %vm574, %v572
        %v576 = vld [vmem:[#allocation2] sm:$0xf]
        %v577 = vld [vmem:[%s2] sm:$0xf]
        %v578 = vld [vmem:[%s2 + $0x4] sm:$0xf]
        %v579 = vld [vmem:[%s2 + $0x8] sm:$0xf]
        %v580 = vld [vmem:[%s2 + $0xc] sm:$0xf]
        %v585 = vunpack.c.l.b16 %v577
        %v586 = vunpack.c.l.b16 %v578
        %v587 = vunpack.c.l.b16 %v579
        %v588 = vunpack.c.l.b16 %v580
        %v589 = vpack.c.b16 %v586, %v585
        %v590 = vpack.c.b16 %v588, %v587
        %v594 = vsel %vm256, %v576, 0
        %596 = vmatpush.bf16.msra.mxu0 0
        %597 = vmatpush.bf16.msra.mxu0 0
        %598 = vmatpush.bf16.msra.mxu0 0
        %599 = vmatpush.bf16.msra.mxu0 0
        %600 = vmatpush.bf16.msra.mxu0 0
        %601 = vmatpush.bf16.msra.mxu0 0
        %602 = vmatpush.bf16.msra.mxu0 %v590
        %603 = vmatpush.bf16.msra.mxu0 %v589
        %604 = vmatmul.bf16.gmra.mxu0 %v594
        %v605 = vpop.f32.mrf.mxu0
        %v606 = vadd.f32 0.0, %v605
        %v607 = vpop.f32.mrf.mxu0
        %608 = vdwg.mxu0
        %v609 = vadd.f32 %v248, %v606
        %v610 = vperm.slane %v250, 0
        %v611 = vadd.f32 %v609, %v610
        %v612 = vsel %vm256, %v611, 0.0
        %613 = vadd.xlane.f32.xlu0 %v612
        %v614 = vpop.xlane.xlu0 %613
        %v615 = vmul.f32 %v614, %v266
        %v616 = vsub.f32 %v611, %v615
        %v617 = vmul.f32 %v616, %v616
        %v618 = vsel %vm256, %v617, 0.0
        %619 = vadd.xlane.f32.xlu0 %v618
        %v620 = vpop.xlane.xlu0 %619
        %v621 = vmul.f32 %v620, %v266
        %v622 = vadd.f32 %v621, 1e-06
        %v623 = vrsqrt.pop %v622
        %v624 = vmul.f32 %v623, %v622
        %v625 = vmul.f32 %v624, %v623
        %v626 = vmul.f32 0.5, %v625
        %v627 = vsub.f32 1.5, %v626
        %v628 = vmul.f32 %v623, %v627
        %vm629 = vweird.f32 %v622
        %vm630 = vweird.f32 %v623
        %vm631 = vmor %vm629, %vm630
        %v632 = vsel %vm631, %v623, %v628
        %v633 = vmul.f32 %v616, %v632
        %v634 = vpack.c.bf16 %v633, %v633
        %v635 = vld [vmem:[%s3] sm:$0xff]
        %v636 = vld [vmem:[%s3 + $0x8] sm:$0xff]
        %v637 = vld [vmem:[%s3 + $0x10] sm:$0xff]
        %v638 = vld [vmem:[%s3 + $0x18] sm:$0xff]
        %v639 = vld [vmem:[%s3 + $0x20] sm:$0xff]
        %v640 = vld [vmem:[%s3 + $0x28] sm:$0xff]
        %v641 = vld [vmem:[%s3 + $0x30] sm:$0xff]
        %v642 = vld [vmem:[%s3 + $0x38] sm:$0xff]
        %v643 = vld [vmem:[%s3 + $0x40] sm:$0xff]
        %v644 = vld [vmem:[%s3 + $0x48] sm:$0xff]
        %v645 = vld [vmem:[%s3 + $0x50] sm:$0xff]
        %v646 = vld [vmem:[%s3 + $0x58] sm:$0xff]
        %v647 = vld [vmem:[%s3 + $0x60] sm:$0xff]
        %v648 = vld [vmem:[%s3 + $0x68] sm:$0xff]
        %v649 = vld [vmem:[%s3 + $0x70] sm:$0xff]
        %v650 = vld [vmem:[%s3 + $0x78] sm:$0xff]
        %v651 = vld [vmem:[%s3 + $0x80] sm:$0xff]
        %v652 = vld [vmem:[%s3 + $0x88] sm:$0xff]
        %v653 = vld [vmem:[%s3 + $0x90] sm:$0xff]
        %v654 = vld [vmem:[%s3 + $0x98] sm:$0xff]
        %v655 = vld [vmem:[%s3 + $0xa0] sm:$0xff]
        %v656 = vld [vmem:[%s3 + $0xa8] sm:$0xff]
        %v657 = vld [vmem:[%s3 + $0xb0] sm:$0xff]
        %v658 = vld [vmem:[%s3 + $0xb8] sm:$0xff]
        %v659 = vld [vmem:[%s3 + $0xc0] sm:$0xff]
        %v660 = vld [vmem:[%s3 + $0xc8] sm:$0xff]
        %v661 = vld [vmem:[%s3 + $0xd0] sm:$0xff]
        %v662 = vld [vmem:[%s3 + $0xd8] sm:$0xff]
        %v663 = vld [vmem:[%s3 + $0xe0] sm:$0xff]
        %v664 = vld [vmem:[%s3 + $0xe8] sm:$0xff]
        %v665 = vld [vmem:[%s3 + $0xf0] sm:$0xff]
        %v666 = vld [vmem:[%s3 + $0xf8] sm:$0xff]
        %v669 = vperm.slane %v252, 0
        %v670 = vperm.slane %v252, 1
        %v671 = vperm.slane %v252, 2
        %v672 = vperm.slane %v252, 3
        %v673 = vperm.slane %v252, 4
        %v674 = vperm.slane %v252, 5
        %v675 = vperm.slane %v252, 6
        %v676 = vperm.slane %v252, 7
        %v677 = vperm.slane %v254, 0
        %v678 = vperm.slane %v254, 1
        %v679 = vperm.slane %v254, 2
        %v680 = vperm.slane %v254, 3
        %v681 = vperm.slane %v254, 4
        %v682 = vperm.slane %v254, 5
        %v683 = vperm.slane %v254, 6
        %v684 = vperm.slane %v254, 7
        %v733 = vunpack.c.l.b16 %v635
        %v734 = vunpack.c.h.b16 %v635
        %v735 = vunpack.c.l.b16 %v636
        %v736 = vunpack.c.h.b16 %v636
        %v737 = vunpack.c.l.b16 %v637
        %v738 = vunpack.c.h.b16 %v637
        %v739 = vunpack.c.l.b16 %v638
        %v740 = vunpack.c.h.b16 %v638
        %v741 = vunpack.c.l.b16 %v639
        %v742 = vunpack.c.h.b16 %v639
        %v743 = vunpack.c.l.b16 %v640
        %v744 = vunpack.c.h.b16 %v640
        %v745 = vunpack.c.l.b16 %v641
        %v746 = vunpack.c.h.b16 %v641
        %v747 = vunpack.c.l.b16 %v642
        %v748 = vunpack.c.h.b16 %v642
        %v749 = vunpack.c.l.b16 %v643
        %v750 = vunpack.c.h.b16 %v643
        %v751 = vunpack.c.l.b16 %v644
        %v752 = vunpack.c.h.b16 %v644
        %v753 = vunpack.c.l.b16 %v645
        %v754 = vunpack.c.h.b16 %v645
        %v755 = vunpack.c.l.b16 %v646
        %v756 = vunpack.c.h.b16 %v646
        %v757 = vunpack.c.l.b16 %v647
        %v758 = vunpack.c.h.b16 %v647
        %v759 = vunpack.c.l.b16 %v648
        %v760 = vunpack.c.h.b16 %v648
        %v761 = vunpack.c.l.b16 %v649
        %v762 = vunpack.c.h.b16 %v649
        %v763 = vunpack.c.l.b16 %v650
        %v764 = vunpack.c.h.b16 %v650
        %v765 = vunpack.c.l.b16 %v651
        %v766 = vunpack.c.h.b16 %v651
        %v767 = vunpack.c.l.b16 %v652
        %v768 = vunpack.c.h.b16 %v652
        %v769 = vunpack.c.l.b16 %v653
        %v770 = vunpack.c.h.b16 %v653
        %v771 = vunpack.c.l.b16 %v654
        %v772 = vunpack.c.h.b16 %v654
        %v773 = vunpack.c.l.b16 %v655
        %v774 = vunpack.c.h.b16 %v655
        %v775 = vunpack.c.l.b16 %v656
        %v776 = vunpack.c.h.b16 %v656
        %v777 = vunpack.c.l.b16 %v657
        %v778 = vunpack.c.h.b16 %v657
        %v779 = vunpack.c.l.b16 %v658
        %v780 = vunpack.c.h.b16 %v658
        %v781 = vunpack.c.l.b16 %v659
        %v782 = vunpack.c.h.b16 %v659
        %v783 = vunpack.c.l.b16 %v660
        %v784 = vunpack.c.h.b16 %v660
        %v785 = vunpack.c.l.b16 %v661
        %v786 = vunpack.c.h.b16 %v661
        %v787 = vunpack.c.l.b16 %v662
        %v788 = vunpack.c.h.b16 %v662
        %v789 = vunpack.c.l.b16 %v663
        %v790 = vunpack.c.h.b16 %v663
        %v791 = vunpack.c.l.b16 %v664
        %v792 = vunpack.c.h.b16 %v664
        %v793 = vunpack.c.l.b16 %v665
        %v794 = vunpack.c.h.b16 %v665
        %v795 = vunpack.c.l.b16 %v666
        %v796 = vunpack.c.h.b16 %v666
        %v797 = vpack.c.b16 %v749, %v733
        %v798 = vpack.c.b16 %v750, %v734
        %v799 = vpack.c.b16 %v751, %v735
        %v800 = vpack.c.b16 %v752, %v736
        %v801 = vpack.c.b16 %v753, %v737
        %v802 = vpack.c.b16 %v754, %v738
        %v803 = vpack.c.b16 %v755, %v739
        %v804 = vpack.c.b16 %v756, %v740
        %v805 = vpack.c.b16 %v757, %v741
        %v806 = vpack.c.b16 %v758, %v742
        %v807 = vpack.c.b16 %v759, %v743
        %v808 = vpack.c.b16 %v760, %v744
        %v809 = vpack.c.b16 %v761, %v745
        %v810 = vpack.c.b16 %v762, %v746
        %v811 = vpack.c.b16 %v763, %v747
        %v812 = vpack.c.b16 %v764, %v748
        %v813 = vpack.c.b16 %v781, %v765
        %v814 = vpack.c.b16 %v782, %v766
        %v815 = vpack.c.b16 %v783, %v767
        %v816 = vpack.c.b16 %v784, %v768
        %v817 = vpack.c.b16 %v785, %v769
        %v818 = vpack.c.b16 %v786, %v770
        %v819 = vpack.c.b16 %v787, %v771
        %v820 = vpack.c.b16 %v788, %v772
        %v821 = vpack.c.b16 %v789, %v773
        %v822 = vpack.c.b16 %v790, %v774
        %v823 = vpack.c.b16 %v791, %v775
        %v824 = vpack.c.b16 %v792, %v776
        %v825 = vpack.c.b16 %v793, %v777
        %v826 = vpack.c.b16 %v794, %v778
        %v827 = vpack.c.b16 %v795, %v779
        %v828 = vpack.c.b16 %v796, %v780
        %v862 = vsel %vm256, %v634, 0
        %864 = vmatpush.bf16.msra.mxu0 0
        %865 = vmatpush.bf16.msra.mxu0 0
        %866 = vmatpush.bf16.msra.mxu0 0
        %867 = vmatpush.bf16.msra.mxu0 0
        %868 = vmatpush.bf16.msra.mxu0 0
        %869 = vmatpush.bf16.msra.mxu0 0
        %870 = vmatpush.bf16.msra.mxu0 %v813
        %871 = vmatpush.bf16.msra.mxu0 %v797
        %872 = vmatmul.bf16.gmra.mxu0 %v862
        %v873 = vpop.f32.mrf.mxu0
        %v874 = vadd.f32 %v669, %v873
        %v875 = vpop.f32.mrf.mxu0
        %876 = vdwg.mxu0
        %877 = vmatpush.bf16.msra.mxu0 0
        %878 = vmatpush.bf16.msra.mxu0 0
        %879 = vmatpush.bf16.msra.mxu0 0
        %880 = vmatpush.bf16.msra.mxu0 0
        %881 = vmatpush.bf16.msra.mxu0 0
        %882 = vmatpush.bf16.msra.mxu0 0
        %883 = vmatpush.bf16.msra.mxu0 %v814
        %884 = vmatpush.bf16.msra.mxu0 %v798
        %885 = vmatmul.bf16.gmra.mxu0 %v862
        %v886 = vpop.f32.mrf.mxu0
        %v887 = vadd.f32 %v670, %v886
        %v888 = vpop.f32.mrf.mxu0
        %889 = vdwg.mxu0
        %890 = vmatpush.bf16.msra.mxu0 0
        %891 = vmatpush.bf16.msra.mxu0 0
        %892 = vmatpush.bf16.msra.mxu0 0
        %893 = vmatpush.bf16.msra.mxu0 0
        %894 = vmatpush.bf16.msra.mxu0 0
        %895 = vmatpush.bf16.msra.mxu0 0
        %896 = vmatpush.bf16.msra.mxu0 %v815
        %897 = vmatpush.bf16.msra.mxu0 %v799
        %898 = vmatmul.bf16.gmra.mxu0 %v862
        %v899 = vpop.f32.mrf.mxu0
        %v900 = vadd.f32 %v671, %v899
        %v901 = vpop.f32.mrf.mxu0
        %902 = vdwg.mxu0
        %903 = vmatpush.bf16.msra.mxu0 0
        %904 = vmatpush.bf16.msra.mxu0 0
        %905 = vmatpush.bf16.msra.mxu0 0
        %906 = vmatpush.bf16.msra.mxu0 0
        %907 = vmatpush.bf16.msra.mxu0 0
        %908 = vmatpush.bf16.msra.mxu0 0
        %909 = vmatpush.bf16.msra.mxu0 %v816
        %910 = vmatpush.bf16.msra.mxu0 %v800
        %911 = vmatmul.bf16.gmra.mxu0 %v862
        %v912 = vpop.f32.mrf.mxu0
        %v913 = vadd.f32 %v672, %v912
        %v914 = vpop.f32.mrf.mxu0
        %915 = vdwg.mxu0
        %916 = vmatpush.bf16.msra.mxu0 0
        %917 = vmatpush.bf16.msra.mxu0 0
        %918 = vmatpush.bf16.msra.mxu0 0
        %919 = vmatpush.bf16.msra.mxu0 0
        %920 = vmatpush.bf16.msra.mxu0 0
        %921 = vmatpush.bf16.msra.mxu0 0
        %922 = vmatpush.bf16.msra.mxu0 %v817
        %923 = vmatpush.bf16.msra.mxu0 %v801
        %924 = vmatmul.bf16.gmra.mxu0 %v862
        %v925 = vpop.f32.mrf.mxu0
        %v926 = vadd.f32 %v673, %v925
        %v927 = vpop.f32.mrf.mxu0
        %928 = vdwg.mxu0
        %929 = vmatpush.bf16.msra.mxu0 0
        %930 = vmatpush.bf16.msra.mxu0 0
        %931 = vmatpush.bf16.msra.mxu0 0
        %932 = vmatpush.bf16.msra.mxu0 0
        %933 = vmatpush.bf16.msra.mxu0 0
        %934 = vmatpush.bf16.msra.mxu0 0
        %935 = vmatpush.bf16.msra.mxu0 %v818
        %936 = vmatpush.bf16.msra.mxu0 %v802
        %937 = vmatmul.bf16.gmra.mxu0 %v862
        %v938 = vpop.f32.mrf.mxu0
        %v939 = vadd.f32 %v674, %v938
        %v940 = vpop.f32.mrf.mxu0
        %941 = vdwg.mxu0
        %942 = vmatpush.bf16.msra.mxu0 0
        %943 = vmatpush.bf16.msra.mxu0 0
        %944 = vmatpush.bf16.msra.mxu0 0
        %945 = vmatpush.bf16.msra.mxu0 0
        %946 = vmatpush.bf16.msra.mxu0 0
        %947 = vmatpush.bf16.msra.mxu0 0
        %948 = vmatpush.bf16.msra.mxu0 %v819
        %949 = vmatpush.bf16.msra.mxu0 %v803
        %950 = vmatmul.bf16.gmra.mxu0 %v862
        %v951 = vpop.f32.mrf.mxu0
        %v952 = vadd.f32 %v675, %v951
        %v953 = vpop.f32.mrf.mxu0
        %954 = vdwg.mxu0
        %955 = vmatpush.bf16.msra.mxu0 0
        %956 = vmatpush.bf16.msra.mxu0 0
        %957 = vmatpush.bf16.msra.mxu0 0
        %958 = vmatpush.bf16.msra.mxu0 0
        %959 = vmatpush.bf16.msra.mxu0 0
        %960 = vmatpush.bf16.msra.mxu0 0
        %961 = vmatpush.bf16.msra.mxu0 %v820
        %962 = vmatpush.bf16.msra.mxu0 %v804
        %963 = vmatmul.bf16.gmra.mxu0 %v862
        %v964 = vpop.f32.mrf.mxu0
        %v965 = vadd.f32 %v676, %v964
        %v966 = vpop.f32.mrf.mxu0
        %967 = vdwg.mxu0
        %968 = vmatpush.bf16.msra.mxu0 0
        %969 = vmatpush.bf16.msra.mxu0 0
        %970 = vmatpush.bf16.msra.mxu0 0
        %971 = vmatpush.bf16.msra.mxu0 0
        %972 = vmatpush.bf16.msra.mxu0 0
        %973 = vmatpush.bf16.msra.mxu0 0
        %974 = vmatpush.bf16.msra.mxu0 %v821
        %975 = vmatpush.bf16.msra.mxu0 %v805
        %976 = vmatmul.bf16.gmra.mxu0 %v862
        %v977 = vpop.f32.mrf.mxu0
        %v978 = vadd.f32 %v677, %v977
        %v979 = vpop.f32.mrf.mxu0
        %980 = vdwg.mxu0
        %981 = vmatpush.bf16.msra.mxu0 0
        %982 = vmatpush.bf16.msra.mxu0 0
        %983 = vmatpush.bf16.msra.mxu0 0
        %984 = vmatpush.bf16.msra.mxu0 0
        %985 = vmatpush.bf16.msra.mxu0 0
        %986 = vmatpush.bf16.msra.mxu0 0
        %987 = vmatpush.bf16.msra.mxu0 %v822
        %988 = vmatpush.bf16.msra.mxu0 %v806
        %989 = vmatmul.bf16.gmra.mxu0 %v862
        %v990 = vpop.f32.mrf.mxu0
        %v991 = vadd.f32 %v678, %v990
        %v992 = vpop.f32.mrf.mxu0
        %993 = vdwg.mxu0
        %994 = vmatpush.bf16.msra.mxu0 0
        %995 = vmatpush.bf16.msra.mxu0 0
        %996 = vmatpush.bf16.msra.mxu0 0
        %997 = vmatpush.bf16.msra.mxu0 0
        %998 = vmatpush.bf16.msra.mxu0 0
        %999 = vmatpush.bf16.msra.mxu0 0
        %1000 = vmatpush.bf16.msra.mxu0 %v823
        %1001 = vmatpush.bf16.msra.mxu0 %v807
        %1002 = vmatmul.bf16.gmra.mxu0 %v862
        %v1003 = vpop.f32.mrf.mxu0
        %v1004 = vadd.f32 %v679, %v1003
        %v1005 = vpop.f32.mrf.mxu0
        %1006 = vdwg.mxu0
        %1007 = vmatpush.bf16.msra.mxu0 0
        %1008 = vmatpush.bf16.msra.mxu0 0
        %1009 = vmatpush.bf16.msra.mxu0 0
        %1010 = vmatpush.bf16.msra.mxu0 0
        %1011 = vmatpush.bf16.msra.mxu0 0
        %1012 = vmatpush.bf16.msra.mxu0 0
        %1013 = vmatpush.bf16.msra.mxu0 %v824
        %1014 = vmatpush.bf16.msra.mxu0 %v808
        %1015 = vmatmul.bf16.gmra.mxu0 %v862
        %v1016 = vpop.f32.mrf.mxu0
        %v1017 = vadd.f32 %v680, %v1016
        %v1018 = vpop.f32.mrf.mxu0
        %1019 = vdwg.mxu0
        %1020 = vmatpush.bf16.msra.mxu0 0
        %1021 = vmatpush.bf16.msra.mxu0 0
        %1022 = vmatpush.bf16.msra.mxu0 0
        %1023 = vmatpush.bf16.msra.mxu0 0
        %1024 = vmatpush.bf16.msra.mxu0 0
        %1025 = vmatpush.bf16.msra.mxu0 0
        %1026 = vmatpush.bf16.msra.mxu0 %v825
        %1027 = vmatpush.bf16.msra.mxu0 %v809
        %1028 = vmatmul.bf16.gmra.mxu0 %v862
        %v1029 = vpop.f32.mrf.mxu0
        %v1030 = vadd.f32 %v681, %v1029
        %v1031 = vpop.f32.mrf.mxu0
        %1032 = vdwg.mxu0
        %1033 = vmatpush.bf16.msra.mxu0 0
        %1034 = vmatpush.bf16.msra.mxu0 0
        %1035 = vmatpush.bf16.msra.mxu0 0
        %1036 = vmatpush.bf16.msra.mxu0 0
        %1037 = vmatpush.bf16.msra.mxu0 0
        %1038 = vmatpush.bf16.msra.mxu0 0
        %1039 = vmatpush.bf16.msra.mxu0 %v826
        %1040 = vmatpush.bf16.msra.mxu0 %v810
        %1041 = vmatmul.bf16.gmra.mxu0 %v862
        %v1042 = vpop.f32.mrf.mxu0
        %v1043 = vadd.f32 %v682, %v1042
        %v1044 = vpop.f32.mrf.mxu0
        %1045 = vdwg.mxu0
        %1046 = vmatpush.bf16.msra.mxu0 0
        %1047 = vmatpush.bf16.msra.mxu0 0
        %1048 = vmatpush.bf16.msra.mxu0 0
        %1049 = vmatpush.bf16.msra.mxu0 0
        %1050 = vmatpush.bf16.msra.mxu0 0
        %1051 = vmatpush.bf16.msra.mxu0 0
        %1052 = vmatpush.bf16.msra.mxu0 %v827
        %1053 = vmatpush.bf16.msra.mxu0 %v811
        %1054 = vmatmul.bf16.gmra.mxu0 %v862
        %v1055 = vpop.f32.mrf.mxu0
        %v1056 = vadd.f32 %v683, %v1055
        %v1057 = vpop.f32.mrf.mxu0
        %1058 = vdwg.mxu0
        %1059 = vmatpush.bf16.msra.mxu0 0
        %1060 = vmatpush.bf16.msra.mxu0 0
        %1061 = vmatpush.bf16.msra.mxu0 0
        %1062 = vmatpush.bf16.msra.mxu0 0
        %1063 = vmatpush.bf16.msra.mxu0 0
        %1064 = vmatpush.bf16.msra.mxu0 0
        %1065 = vmatpush.bf16.msra.mxu0 %v828
        %1066 = vmatpush.bf16.msra.mxu0 %v812
        %1067 = vmatmul.bf16.gmra.mxu0 %v862
        %v1068 = vpop.f32.mrf.mxu0
        %v1069 = vadd.f32 %v684, %v1068
        %v1070 = vpop.f32.mrf.mxu0
        %1071 = vdwg.mxu0
        %v1072 = vmax.f32 %v874, 0.0
        %v1073 = vmax.f32 %v887, 0.0
        %v1074 = vmax.f32 %v900, 0.0
        %v1075 = vmax.f32 %v913, 0.0
        %v1076 = vmax.f32 %v926, 0.0
        %v1077 = vmax.f32 %v939, 0.0
        %v1078 = vmax.f32 %v952, 0.0
        %v1079 = vmax.f32 %v965, 0.0
        %v1080 = vmax.f32 %v978, 0.0
        %v1081 = vmax.f32 %v991, 0.0
        %v1082 = vmax.f32 %v1004, 0.0
        %v1083 = vmax.f32 %v1017, 0.0
        %v1084 = vmax.f32 %v1030, 0.0
        %v1085 = vmax.f32 %v1043, 0.0
        %v1086 = vmax.f32 %v1056, 0.0
        %v1087 = vmax.f32 %v1069, 0.0
        %v1088 = vpack.c.bf16 %v1072, %v1072
        %v1089 = vpack.c.bf16 %v1073, %v1073
        %v1090 = vpack.c.bf16 %v1074, %v1074
        %v1091 = vpack.c.bf16 %v1075, %v1075
        %v1092 = vpack.c.bf16 %v1076, %v1076
        %v1093 = vpack.c.bf16 %v1077, %v1077
        %v1094 = vpack.c.bf16 %v1078, %v1078
        %v1095 = vpack.c.bf16 %v1079, %v1079
        %v1096 = vpack.c.bf16 %v1080, %v1080
        %v1097 = vpack.c.bf16 %v1081, %v1081
        %v1098 = vpack.c.bf16 %v1082, %v1082
        %v1099 = vpack.c.bf16 %v1083, %v1083
        %v1100 = vpack.c.bf16 %v1084, %v1084
        %v1101 = vpack.c.bf16 %v1085, %v1085
        %v1102 = vpack.c.bf16 %v1086, %v1086
        %v1103 = vpack.c.bf16 %v1087, %v1087
        %v1104 = vld [vmem:[%s4] sm:$0xf]
        %v1105 = vld [vmem:[%s4 + $0x4] sm:$0xf]
        %v1106 = vld [vmem:[%s4 + $0x8] sm:$0xf]
        %v1107 = vld [vmem:[%s4 + $0xc] sm:$0xf]
        %v1108 = vld [vmem:[%s4 + $0x10] sm:$0xf]
        %v1109 = vld [vmem:[%s4 + $0x14] sm:$0xf]
        %v1110 = vld [vmem:[%s4 + $0x18] sm:$0xf]
        %v1111 = vld [vmem:[%s4 + $0x1c] sm:$0xf]
        %v1112 = vld [vmem:[%s4 + $0x20] sm:$0xf]
        %v1113 = vld [vmem:[%s4 + $0x24] sm:$0xf]
        %v1114 = vld [vmem:[%s4 + $0x28] sm:$0xf]
        %v1115 = vld [vmem:[%s4 + $0x2c] sm:$0xf]
        %v1116 = vld [vmem:[%s4 + $0x30] sm:$0xf]
        %v1117 = vld [vmem:[%s4 + $0x34] sm:$0xf]
        %v1118 = vld [vmem:[%s4 + $0x38] sm:$0xf]
        %v1119 = vld [vmem:[%s4 + $0x3c] sm:$0xf]
        %v1120 = vld [vmem:[%s4 + $0x40] sm:$0xf]
        %v1121 = vld [vmem:[%s4 + $0x44] sm:$0xf]
        %v1122 = vld [vmem:[%s4 + $0x48] sm:$0xf]
        %v1123 = vld [vmem:[%s4 + $0x4c] sm:$0xf]
        %v1124 = vld [vmem:[%s4 + $0x50] sm:$0xf]
        %v1125 = vld [vmem:[%s4 + $0x54] sm:$0xf]
        %v1126 = vld [vmem:[%s4 + $0x58] sm:$0xf]
        %v1127 = vld [vmem:[%s4 + $0x5c] sm:$0xf]
        %v1128 = vld [vmem:[%s4 + $0x60] sm:$0xf]
        %v1129 = vld [vmem:[%s4 + $0x64] sm:$0xf]
        %v1130 = vld [vmem:[%s4 + $0x68] sm:$0xf]
        %v1131 = vld [vmem:[%s4 + $0x6c] sm:$0xf]
        %v1132 = vld [vmem:[%s4 + $0x70] sm:$0xf]
        %v1133 = vld [vmem:[%s4 + $0x74] sm:$0xf]
        %v1134 = vld [vmem:[%s4 + $0x78] sm:$0xf]
        %v1135 = vld [vmem:[%s4 + $0x7c] sm:$0xf]
        %v1136 = vld [vmem:[%s4 + $0x80] sm:$0xf]
        %v1137 = vld [vmem:[%s4 + $0x84] sm:$0xf]
        %v1138 = vld [vmem:[%s4 + $0x88] sm:$0xf]
        %v1139 = vld [vmem:[%s4 + $0x8c] sm:$0xf]
        %v1140 = vld [vmem:[%s4 + $0x90] sm:$0xf]
        %v1141 = vld [vmem:[%s4 + $0x94] sm:$0xf]
        %v1142 = vld [vmem:[%s4 + $0x98] sm:$0xf]
        %v1143 = vld [vmem:[%s4 + $0x9c] sm:$0xf]
        %v1144 = vld [vmem:[%s4 + $0xa0] sm:$0xf]
        %v1145 = vld [vmem:[%s4 + $0xa4] sm:$0xf]
        %v1146 = vld [vmem:[%s4 + $0xa8] sm:$0xf]
        %v1147 = vld [vmem:[%s4 + $0xac] sm:$0xf]
        %v1148 = vld [vmem:[%s4 + $0xb0] sm:$0xf]
        %v1149 = vld [vmem:[%s4 + $0xb4] sm:$0xf]
        %v1150 = vld [vmem:[%s4 + $0xb8] sm:$0xf]
        %v1151 = vld [vmem:[%s4 + $0xbc] sm:$0xf]
        %v1152 = vld [vmem:[%s4 + $0xc0] sm:$0xf]
        %v1153 = vld [vmem:[%s4 + $0xc4] sm:$0xf]
        %v1154 = vld [vmem:[%s4 + $0xc8] sm:$0xf]
        %v1155 = vld [vmem:[%s4 + $0xcc] sm:$0xf]
        %v1156 = vld [vmem:[%s4 + $0xd0] sm:$0xf]
        %v1157 = vld [vmem:[%s4 + $0xd4] sm:$0xf]
        %v1158 = vld [vmem:[%s4 + $0xd8] sm:$0xf]
        %v1159 = vld [vmem:[%s4 + $0xdc] sm:$0xf]
        %v1160 = vld [vmem:[%s4 + $0xe0] sm:$0xf]
        %v1161 = vld [vmem:[%s4 + $0xe4] sm:$0xf]
        %v1162 = vld [vmem:[%s4 + $0xe8] sm:$0xf]
        %v1163 = vld [vmem:[%s4 + $0xec] sm:$0xf]
        %v1164 = vld [vmem:[%s4 + $0xf0] sm:$0xf]
        %v1165 = vld [vmem:[%s4 + $0xf4] sm:$0xf]
        %v1166 = vld [vmem:[%s4 + $0xf8] sm:$0xf]
        %v1167 = vld [vmem:[%s4 + $0xfc] sm:$0xf]
        %v1168 = vld [vmem:[%s4 + $0x100] sm:$0xf]
        %v1169 = vld [vmem:[%s4 + $0x104] sm:$0xf]
        %v1170 = vld [vmem:[%s4 + $0x108] sm:$0xf]
        %v1171 = vld [vmem:[%s4 + $0x10c] sm:$0xf]
        %v1172 = vld [vmem:[%s4 + $0x110] sm:$0xf]
        %v1173 = vld [vmem:[%s4 + $0x114] sm:$0xf]
        %v1174 = vld [vmem:[%s4 + $0x118] sm:$0xf]
        %v1175 = vld [vmem:[%s4 + $0x11c] sm:$0xf]
        %v1176 = vld [vmem:[%s4 + $0x120] sm:$0xf]
        %v1177 = vld [vmem:[%s4 + $0x124] sm:$0xf]
        %v1178 = vld [vmem:[%s4 + $0x128] sm:$0xf]
        %v1179 = vld [vmem:[%s4 + $0x12c] sm:$0xf]
        %v1180 = vld [vmem:[%s4 + $0x130] sm:$0xf]
        %v1181 = vld [vmem:[%s4 + $0x134] sm:$0xf]
        %v1182 = vld [vmem:[%s4 + $0x138] sm:$0xf]
        %v1183 = vld [vmem:[%s4 + $0x13c] sm:$0xf]
        %v1184 = vld [vmem:[%s4 + $0x140] sm:$0xf]
        %v1185 = vld [vmem:[%s4 + $0x144] sm:$0xf]
        %v1186 = vld [vmem:[%s4 + $0x148] sm:$0xf]
        %v1187 = vld [vmem:[%s4 + $0x14c] sm:$0xf]
        %v1188 = vld [vmem:[%s4 + $0x150] sm:$0xf]
        %v1189 = vld [vmem:[%s4 + $0x154] sm:$0xf]
        %v1190 = vld [vmem:[%s4 + $0x158] sm:$0xf]
        %v1191 = vld [vmem:[%s4 + $0x15c] sm:$0xf]
        %v1192 = vld [vmem:[%s4 + $0x160] sm:$0xf]
        %v1193 = vld [vmem:[%s4 + $0x164] sm:$0xf]
        %v1194 = vld [vmem:[%s4 + $0x168] sm:$0xf]
        %v1195 = vld [vmem:[%s4 + $0x16c] sm:$0xf]
        %v1196 = vld [vmem:[%s4 + $0x170] sm:$0xf]
        %v1197 = vld [vmem:[%s4 + $0x174] sm:$0xf]
        %v1198 = vld [vmem:[%s4 + $0x178] sm:$0xf]
        %v1199 = vld [vmem:[%s4 + $0x17c] sm:$0xf]
        %v1200 = vld [vmem:[%s4 + $0x180] sm:$0xf]
        %v1201 = vld [vmem:[%s4 + $0x184] sm:$0xf]
        %v1202 = vld [vmem:[%s4 + $0x188] sm:$0xf]
        %v1203 = vld [vmem:[%s4 + $0x18c] sm:$0xf]
        %v1204 = vld [vmem:[%s4 + $0x190] sm:$0xf]
        %v1205 = vld [vmem:[%s4 + $0x194] sm:$0xf]
        %v1206 = vld [vmem:[%s4 + $0x198] sm:$0xf]
        %v1207 = vld [vmem:[%s4 + $0x19c] sm:$0xf]
        %v1208 = vld [vmem:[%s4 + $0x1a0] sm:$0xf]
        %v1209 = vld [vmem:[%s4 + $0x1a4] sm:$0xf]
        %v1210 = vld [vmem:[%s4 + $0x1a8] sm:$0xf]
        %v1211 = vld [vmem:[%s4 + $0x1ac] sm:$0xf]
        %v1212 = vld [vmem:[%s4 + $0x1b0] sm:$0xf]
        %v1213 = vld [vmem:[%s4 + $0x1b4] sm:$0xf]
        %v1214 = vld [vmem:[%s4 + $0x1b8] sm:$0xf]
        %v1215 = vld [vmem:[%s4 + $0x1bc] sm:$0xf]
        %v1216 = vld [vmem:[%s4 + $0x1c0] sm:$0xf]
        %v1217 = vld [vmem:[%s4 + $0x1c4] sm:$0xf]
        %v1218 = vld [vmem:[%s4 + $0x1c8] sm:$0xf]
        %v1219 = vld [vmem:[%s4 + $0x1cc] sm:$0xf]
        %v1220 = vld [vmem:[%s4 + $0x1d0] sm:$0xf]
        %v1221 = vld [vmem:[%s4 + $0x1d4] sm:$0xf]
        %v1222 = vld [vmem:[%s4 + $0x1d8] sm:$0xf]
        %v1223 = vld [vmem:[%s4 + $0x1dc] sm:$0xf]
        %v1224 = vld [vmem:[%s4 + $0x1e0] sm:$0xf]
        %v1225 = vld [vmem:[%s4 + $0x1e4] sm:$0xf]
        %v1226 = vld [vmem:[%s4 + $0x1e8] sm:$0xf]
        %v1227 = vld [vmem:[%s4 + $0x1ec] sm:$0xf]
        %v1228 = vld [vmem:[%s4 + $0x1f0] sm:$0xf]
        %v1229 = vld [vmem:[%s4 + $0x1f4] sm:$0xf]
        %v1230 = vld [vmem:[%s4 + $0x1f8] sm:$0xf]
        %v1231 = vld [vmem:[%s4 + $0x1fc] sm:$0xf]
        %v1232 = vld [vmem:[%s4 + $0x200] sm:$0xf]
        %v1233 = vld [vmem:[%s4 + $0x204] sm:$0xf]
        %v1234 = vld [vmem:[%s4 + $0x208] sm:$0xf]
        %v1235 = vld [vmem:[%s4 + $0x20c] sm:$0xf]
        %v1236 = vld [vmem:[%s4 + $0x210] sm:$0xf]
        %v1237 = vld [vmem:[%s4 + $0x214] sm:$0xf]
        %v1238 = vld [vmem:[%s4 + $0x218] sm:$0xf]
        %v1239 = vld [vmem:[%s4 + $0x21c] sm:$0xf]
        %v1240 = vld [vmem:[%s4 + $0x220] sm:$0xf]
        %v1241 = vld [vmem:[%s4 + $0x224] sm:$0xf]
        %v1242 = vld [vmem:[%s4 + $0x228] sm:$0xf]
        %v1243 = vld [vmem:[%s4 + $0x22c] sm:$0xf]
        %v1244 = vld [vmem:[%s4 + $0x230] sm:$0xf]
        %v1245 = vld [vmem:[%s4 + $0x234] sm:$0xf]
        %v1246 = vld [vmem:[%s4 + $0x238] sm:$0xf]
        %v1247 = vld [vmem:[%s4 + $0x23c] sm:$0xf]
        %v1248 = vld [vmem:[%s4 + $0x240] sm:$0xf]
        %v1249 = vld [vmem:[%s4 + $0x244] sm:$0xf]
        %v1250 = vld [vmem:[%s4 + $0x248] sm:$0xf]
        %v1251 = vld [vmem:[%s4 + $0x24c] sm:$0xf]
        %v1252 = vld [vmem:[%s4 + $0x250] sm:$0xf]
        %v1253 = vld [vmem:[%s4 + $0x254] sm:$0xf]
        %v1254 = vld [vmem:[%s4 + $0x258] sm:$0xf]
        %v1255 = vld [vmem:[%s4 + $0x25c] sm:$0xf]
        %v1256 = vld [vmem:[%s4 + $0x260] sm:$0xf]
        %v1257 = vld [vmem:[%s4 + $0x264] sm:$0xf]
        %v1258 = vld [vmem:[%s4 + $0x268] sm:$0xf]
        %v1259 = vld [vmem:[%s4 + $0x26c] sm:$0xf]
        %v1260 = vld [vmem:[%s4 + $0x270] sm:$0xf]
        %v1261 = vld [vmem:[%s4 + $0x274] sm:$0xf]
        %v1262 = vld [vmem:[%s4 + $0x278] sm:$0xf]
        %v1263 = vld [vmem:[%s4 + $0x27c] sm:$0xf]
        %v1264 = vld [vmem:[%s4 + $0x280] sm:$0xf]
        %v1265 = vld [vmem:[%s4 + $0x284] sm:$0xf]
        %v1266 = vld [vmem:[%s4 + $0x288] sm:$0xf]
        %v1267 = vld [vmem:[%s4 + $0x28c] sm:$0xf]
        %v1268 = vld [vmem:[%s4 + $0x290] sm:$0xf]
        %v1269 = vld [vmem:[%s4 + $0x294] sm:$0xf]
        %v1270 = vld [vmem:[%s4 + $0x298] sm:$0xf]
        %v1271 = vld [vmem:[%s4 + $0x29c] sm:$0xf]
        %v1272 = vld [vmem:[%s4 + $0x2a0] sm:$0xf]
        %v1273 = vld [vmem:[%s4 + $0x2a4] sm:$0xf]
        %v1274 = vld [vmem:[%s4 + $0x2a8] sm:$0xf]
        %v1275 = vld [vmem:[%s4 + $0x2ac] sm:$0xf]
        %v1276 = vld [vmem:[%s4 + $0x2b0] sm:$0xf]
        %v1277 = vld [vmem:[%s4 + $0x2b4] sm:$0xf]
        %v1278 = vld [vmem:[%s4 + $0x2b8] sm:$0xf]
        %v1279 = vld [vmem:[%s4 + $0x2bc] sm:$0xf]
        %v1280 = vld [vmem:[%s4 + $0x2c0] sm:$0xf]
        %v1281 = vld [vmem:[%s4 + $0x2c4] sm:$0xf]
        %v1282 = vld [vmem:[%s4 + $0x2c8] sm:$0xf]
        %v1283 = vld [vmem:[%s4 + $0x2cc] sm:$0xf]
        %v1284 = vld [vmem:[%s4 + $0x2d0] sm:$0xf]
        %v1285 = vld [vmem:[%s4 + $0x2d4] sm:$0xf]
        %v1286 = vld [vmem:[%s4 + $0x2d8] sm:$0xf]
        %v1287 = vld [vmem:[%s4 + $0x2dc] sm:$0xf]
        %v1288 = vld [vmem:[%s4 + $0x2e0] sm:$0xf]
        %v1289 = vld [vmem:[%s4 + $0x2e4] sm:$0xf]
        %v1290 = vld [vmem:[%s4 + $0x2e8] sm:$0xf]
        %v1291 = vld [vmem:[%s4 + $0x2ec] sm:$0xf]
        %v1292 = vld [vmem:[%s4 + $0x2f0] sm:$0xf]
        %v1293 = vld [vmem:[%s4 + $0x2f4] sm:$0xf]
        %v1294 = vld [vmem:[%s4 + $0x2f8] sm:$0xf]
        %v1295 = vld [vmem:[%s4 + $0x2fc] sm:$0xf]
        %v1296 = vld [vmem:[%s4 + $0x300] sm:$0xf]
        %v1297 = vld [vmem:[%s4 + $0x304] sm:$0xf]
        %v1298 = vld [vmem:[%s4 + $0x308] sm:$0xf]
        %v1299 = vld [vmem:[%s4 + $0x30c] sm:$0xf]
        %v1300 = vld [vmem:[%s4 + $0x310] sm:$0xf]
        %v1301 = vld [vmem:[%s4 + $0x314] sm:$0xf]
        %v1302 = vld [vmem:[%s4 + $0x318] sm:$0xf]
        %v1303 = vld [vmem:[%s4 + $0x31c] sm:$0xf]
        %v1304 = vld [vmem:[%s4 + $0x320] sm:$0xf]
        %v1305 = vld [vmem:[%s4 + $0x324] sm:$0xf]
        %v1306 = vld [vmem:[%s4 + $0x328] sm:$0xf]
        %v1307 = vld [vmem:[%s4 + $0x32c] sm:$0xf]
        %v1308 = vld [vmem:[%s4 + $0x330] sm:$0xf]
        %v1309 = vld [vmem:[%s4 + $0x334] sm:$0xf]
        %v1310 = vld [vmem:[%s4 + $0x338] sm:$0xf]
        %v1311 = vld [vmem:[%s4 + $0x33c] sm:$0xf]
        %v1312 = vld [vmem:[%s4 + $0x340] sm:$0xf]
        %v1313 = vld [vmem:[%s4 + $0x344] sm:$0xf]
        %v1314 = vld [vmem:[%s4 + $0x348] sm:$0xf]
        %v1315 = vld [vmem:[%s4 + $0x34c] sm:$0xf]
        %v1316 = vld [vmem:[%s4 + $0x350] sm:$0xf]
        %v1317 = vld [vmem:[%s4 + $0x354] sm:$0xf]
        %v1318 = vld [vmem:[%s4 + $0x358] sm:$0xf]
        %v1319 = vld [vmem:[%s4 + $0x35c] sm:$0xf]
        %v1320 = vld [vmem:[%s4 + $0x360] sm:$0xf]
        %v1321 = vld [vmem:[%s4 + $0x364] sm:$0xf]
        %v1322 = vld [vmem:[%s4 + $0x368] sm:$0xf]
        %v1323 = vld [vmem:[%s4 + $0x36c] sm:$0xf]
        %v1324 = vld [vmem:[%s4 + $0x370] sm:$0xf]
        %v1325 = vld [vmem:[%s4 + $0x374] sm:$0xf]
        %v1326 = vld [vmem:[%s4 + $0x378] sm:$0xf]
        %v1327 = vld [vmem:[%s4 + $0x37c] sm:$0xf]
        %v1328 = vld [vmem:[%s4 + $0x380] sm:$0xf]
        %v1329 = vld [vmem:[%s4 + $0x384] sm:$0xf]
        %v1330 = vld [vmem:[%s4 + $0x388] sm:$0xf]
        %v1331 = vld [vmem:[%s4 + $0x38c] sm:$0xf]
        %v1332 = vld [vmem:[%s4 + $0x390] sm:$0xf]
        %v1333 = vld [vmem:[%s4 + $0x394] sm:$0xf]
        %v1334 = vld [vmem:[%s4 + $0x398] sm:$0xf]
        %v1335 = vld [vmem:[%s4 + $0x39c] sm:$0xf]
        %v1336 = vld [vmem:[%s4 + $0x3a0] sm:$0xf]
        %v1337 = vld [vmem:[%s4 + $0x3a4] sm:$0xf]
        %v1338 = vld [vmem:[%s4 + $0x3a8] sm:$0xf]
        %v1339 = vld [vmem:[%s4 + $0x3ac] sm:$0xf]
        %v1340 = vld [vmem:[%s4 + $0x3b0] sm:$0xf]
        %v1341 = vld [vmem:[%s4 + $0x3b4] sm:$0xf]
        %v1342 = vld [vmem:[%s4 + $0x3b8] sm:$0xf]
        %v1343 = vld [vmem:[%s4 + $0x3bc] sm:$0xf]
        %v1344 = vld [vmem:[%s4 + $0x3c0] sm:$0xf]
        %v1345 = vld [vmem:[%s4 + $0x3c4] sm:$0xf]
        %v1346 = vld [vmem:[%s4 + $0x3c8] sm:$0xf]
        %v1347 = vld [vmem:[%s4 + $0x3cc] sm:$0xf]
        %v1348 = vld [vmem:[%s4 + $0x3d0] sm:$0xf]
        %v1349 = vld [vmem:[%s4 + $0x3d4] sm:$0xf]
        %v1350 = vld [vmem:[%s4 + $0x3d8] sm:$0xf]
        %v1351 = vld [vmem:[%s4 + $0x3dc] sm:$0xf]
        %v1352 = vld [vmem:[%s4 + $0x3e0] sm:$0xf]
        %v1353 = vld [vmem:[%s4 + $0x3e4] sm:$0xf]
        %v1354 = vld [vmem:[%s4 + $0x3e8] sm:$0xf]
        %v1355 = vld [vmem:[%s4 + $0x3ec] sm:$0xf]
        %v1356 = vld [vmem:[%s4 + $0x3f0] sm:$0xf]
        %v1357 = vld [vmem:[%s4 + $0x3f4] sm:$0xf]
        %v1358 = vld [vmem:[%s4 + $0x3f8] sm:$0xf]
        %v1359 = vld [vmem:[%s4 + $0x3fc] sm:$0xf]
        %v1360 = vperm.slane %v255, 0
        %v1617 = vunpack.c.l.b16 %v1104
        %v1618 = vunpack.c.l.b16 %v1105
        %v1619 = vunpack.c.l.b16 %v1106
        %v1620 = vunpack.c.l.b16 %v1107
        %v1621 = vunpack.c.l.b16 %v1108
        %v1622 = vunpack.c.l.b16 %v1109
        %v1623 = vunpack.c.l.b16 %v1110
        %v1624 = vunpack.c.l.b16 %v1111
        %v1625 = vunpack.c.l.b16 %v1112
        %v1626 = vunpack.c.l.b16 %v1113
        %v1627 = vunpack.c.l.b16 %v1114
        %v1628 = vunpack.c.l.b16 %v1115
        %v1629 = vunpack.c.l.b16 %v1116
        %v1630 = vunpack.c.l.b16 %v1117
        %v1631 = vunpack.c.l.b16 %v1118
        %v1632 = vunpack.c.l.b16 %v1119
        %v1633 = vunpack.c.l.b16 %v1120
        %v1634 = vunpack.c.l.b16 %v1121
        %v1635 = vunpack.c.l.b16 %v1122
        %v1636 = vunpack.c.l.b16 %v1123
        %v1637 = vunpack.c.l.b16 %v1124
        %v1638 = vunpack.c.l.b16 %v1125
        %v1639 = vunpack.c.l.b16 %v1126
        %v1640 = vunpack.c.l.b16 %v1127
        %v1641 = vunpack.c.l.b16 %v1128
        %v1642 = vunpack.c.l.b16 %v1129
        %v1643 = vunpack.c.l.b16 %v1130
        %v1644 = vunpack.c.l.b16 %v1131
        %v1645 = vunpack.c.l.b16 %v1132
        %v1646 = vunpack.c.l.b16 %v1133
        %v1647 = vunpack.c.l.b16 %v1134
        %v1648 = vunpack.c.l.b16 %v1135
        %v1649 = vunpack.c.l.b16 %v1136
        %v1650 = vunpack.c.l.b16 %v1137
        %v1651 = vunpack.c.l.b16 %v1138
        %v1652 = vunpack.c.l.b16 %v1139
        %v1653 = vunpack.c.l.b16 %v1140
        %v1654 = vunpack.c.l.b16 %v1141
        %v1655 = vunpack.c.l.b16 %v1142
        %v1656 = vunpack.c.l.b16 %v1143
        %v1657 = vunpack.c.l.b16 %v1144
        %v1658 = vunpack.c.l.b16 %v1145
        %v1659 = vunpack.c.l.b16 %v1146
        %v1660 = vunpack.c.l.b16 %v1147
        %v1661 = vunpack.c.l.b16 %v1148
        %v1662 = vunpack.c.l.b16 %v1149
        %v1663 = vunpack.c.l.b16 %v1150
        %v1664 = vunpack.c.l.b16 %v1151
        %v1665 = vunpack.c.l.b16 %v1152
        %v1666 = vunpack.c.l.b16 %v1153
        %v1667 = vunpack.c.l.b16 %v1154
        %v1668 = vunpack.c.l.b16 %v1155
        %v1669 = vunpack.c.l.b16 %v1156
        %v1670 = vunpack.c.l.b16 %v1157
        %v1671 = vunpack.c.l.b16 %v1158
        %v1672 = vunpack.c.l.b16 %v1159
        %v1673 = vunpack.c.l.b16 %v1160
        %v1674 = vunpack.c.l.b16 %v1161
        %v1675 = vunpack.c.l.b16 %v1162
        %v1676 = vunpack.c.l.b16 %v1163
        %v1677 = vunpack.c.l.b16 %v1164
        %v1678 = vunpack.c.l.b16 %v1165
        %v1679 = vunpack.c.l.b16 %v1166
        %v1680 = vunpack.c.l.b16 %v1167
        %v1681 = vunpack.c.l.b16 %v1168
        %v1682 = vunpack.c.l.b16 %v1169
        %v1683 = vunpack.c.l.b16 %v1170
        %v1684 = vunpack.c.l.b16 %v1171
        %v1685 = vunpack.c.l.b16 %v1172
        %v1686 = vunpack.c.l.b16 %v1173
        %v1687 = vunpack.c.l.b16 %v1174
        %v1688 = vunpack.c.l.b16 %v1175
        %v1689 = vunpack.c.l.b16 %v1176
        %v1690 = vunpack.c.l.b16 %v1177
        %v1691 = vunpack.c.l.b16 %v1178
        %v1692 = vunpack.c.l.b16 %v1179
        %v1693 = vunpack.c.l.b16 %v1180
        %v1694 = vunpack.c.l.b16 %v1181
        %v1695 = vunpack.c.l.b16 %v1182
        %v1696 = vunpack.c.l.b16 %v1183
        %v1697 = vunpack.c.l.b16 %v1184
        %v1698 = vunpack.c.l.b16 %v1185
        %v1699 = vunpack.c.l.b16 %v1186
        %v1700 = vunpack.c.l.b16 %v1187
        %v1701 = vunpack.c.l.b16 %v1188
        %v1702 = vunpack.c.l.b16 %v1189
        %v1703 = vunpack.c.l.b16 %v1190
        %v1704 = vunpack.c.l.b16 %v1191
        %v1705 = vunpack.c.l.b16 %v1192
        %v1706 = vunpack.c.l.b16 %v1193
        %v1707 = vunpack.c.l.b16 %v1194
        %v1708 = vunpack.c.l.b16 %v1195
        %v1709 = vunpack.c.l.b16 %v1196
        %v1710 = vunpack.c.l.b16 %v1197
        %v1711 = vunpack.c.l.b16 %v1198
        %v1712 = vunpack.c.l.b16 %v1199
        %v1713 = vunpack.c.l.b16 %v1200
        %v1714 = vunpack.c.l.b16 %v1201
        %v1715 = vunpack.c.l.b16 %v1202
        %v1716 = vunpack.c.l.b16 %v1203
        %v1717 = vunpack.c.l.b16 %v1204
        %v1718 = vunpack.c.l.b16 %v1205
        %v1719 = vunpack.c.l.b16 %v1206
        %v1720 = vunpack.c.l.b16 %v1207
        %v1721 = vunpack.c.l.b16 %v1208
        %v1722 = vunpack.c.l.b16 %v1209
        %v1723 = vunpack.c.l.b16 %v1210
        %v1724 = vunpack.c.l.b16 %v1211
        %v1725 = vunpack.c.l.b16 %v1212
        %v1726 = vunpack.c.l.b16 %v1213
        %v1727 = vunpack.c.l.b16 %v1214
        %v1728 = vunpack.c.l.b16 %v1215
        %v1729 = vunpack.c.l.b16 %v1216
        %v1730 = vunpack.c.l.b16 %v1217
        %v1731 = vunpack.c.l.b16 %v1218
        %v1732 = vunpack.c.l.b16 %v1219
        %v1733 = vunpack.c.l.b16 %v1220
        %v1734 = vunpack.c.l.b16 %v1221
        %v1735 = vunpack.c.l.b16 %v1222
        %v1736 = vunpack.c.l.b16 %v1223
        %v1737 = vunpack.c.l.b16 %v1224
        %v1738 = vunpack.c.l.b16 %v1225
        %v1739 = vunpack.c.l.b16 %v1226
        %v1740 = vunpack.c.l.b16 %v1227
        %v1741 = vunpack.c.l.b16 %v1228
        %v1742 = vunpack.c.l.b16 %v1229
        %v1743 = vunpack.c.l.b16 %v1230
        %v1744 = vunpack.c.l.b16 %v1231
        %v1745 = vunpack.c.l.b16 %v1232
        %v1746 = vunpack.c.l.b16 %v1233
        %v1747 = vunpack.c.l.b16 %v1234
        %v1748 = vunpack.c.l.b16 %v1235
        %v1749 = vunpack.c.l.b16 %v1236
        %v1750 = vunpack.c.l.b16 %v1237
        %v1751 = vunpack.c.l.b16 %v1238
        %v1752 = vunpack.c.l.b16 %v1239
        %v1753 = vunpack.c.l.b16 %v1240
        %v1754 = vunpack.c.l.b16 %v1241
        %v1755 = vunpack.c.l.b16 %v1242
        %v1756 = vunpack.c.l.b16 %v1243
        %v1757 = vunpack.c.l.b16 %v1244
        %v1758 = vunpack.c.l.b16 %v1245
        %v1759 = vunpack.c.l.b16 %v1246
        %v1760 = vunpack.c.l.b16 %v1247
        %v1761 = vunpack.c.l.b16 %v1248
        %v1762 = vunpack.c.l.b16 %v1249
        %v1763 = vunpack.c.l.b16 %v1250
        %v1764 = vunpack.c.l.b16 %v1251
        %v1765 = vunpack.c.l.b16 %v1252
        %v1766 = vunpack.c.l.b16 %v1253
        %v1767 = vunpack.c.l.b16 %v1254
        %v1768 = vunpack.c.l.b16 %v1255
        %v1769 = vunpack.c.l.b16 %v1256
        %v1770 = vunpack.c.l.b16 %v1257
        %v1771 = vunpack.c.l.b16 %v1258
        %v1772 = vunpack.c.l.b16 %v1259
        %v1773 = vunpack.c.l.b16 %v1260
        %v1774 = vunpack.c.l.b16 %v1261
        %v1775 = vunpack.c.l.b16 %v1262
        %v1776 = vunpack.c.l.b16 %v1263
        %v1777 = vunpack.c.l.b16 %v1264
        %v1778 = vunpack.c.l.b16 %v1265
        %v1779 = vunpack.c.l.b16 %v1266
        %v1780 = vunpack.c.l.b16 %v1267
        %v1781 = vunpack.c.l.b16 %v1268
        %v1782 = vunpack.c.l.b16 %v1269
        %v1783 = vunpack.c.l.b16 %v1270
        %v1784 = vunpack.c.l.b16 %v1271
        %v1785 = vunpack.c.l.b16 %v1272
        %v1786 = vunpack.c.l.b16 %v1273
        %v1787 = vunpack.c.l.b16 %v1274
        %v1788 = vunpack.c.l.b16 %v1275
        %v1789 = vunpack.c.l.b16 %v1276
        %v1790 = vunpack.c.l.b16 %v1277
        %v1791 = vunpack.c.l.b16 %v1278
        %v1792 = vunpack.c.l.b16 %v1279
        %v1793 = vunpack.c.l.b16 %v1280
        %v1794 = vunpack.c.l.b16 %v1281
        %v1795 = vunpack.c.l.b16 %v1282
        %v1796 = vunpack.c.l.b16 %v1283
        %v1797 = vunpack.c.l.b16 %v1284
        %v1798 = vunpack.c.l.b16 %v1285
        %v1799 = vunpack.c.l.b16 %v1286
        %v1800 = vunpack.c.l.b16 %v1287
        %v1801 = vunpack.c.l.b16 %v1288
        %v1802 = vunpack.c.l.b16 %v1289
        %v1803 = vunpack.c.l.b16 %v1290
        %v1804 = vunpack.c.l.b16 %v1291
        %v1805 = vunpack.c.l.b16 %v1292
        %v1806 = vunpack.c.l.b16 %v1293
        %v1807 = vunpack.c.l.b16 %v1294
        %v1808 = vunpack.c.l.b16 %v1295
        %v1809 = vunpack.c.l.b16 %v1296
        %v1810 = vunpack.c.l.b16 %v1297
        %v1811 = vunpack.c.l.b16 %v1298
        %v1812 = vunpack.c.l.b16 %v1299
        %v1813 = vunpack.c.l.b16 %v1300
        %v1814 = vunpack.c.l.b16 %v1301
        %v1815 = vunpack.c.l.b16 %v1302
        %v1816 = vunpack.c.l.b16 %v1303
        %v1817 = vunpack.c.l.b16 %v1304
        %v1818 = vunpack.c.l.b16 %v1305
        %v1819 = vunpack.c.l.b16 %v1306
        %v1820 = vunpack.c.l.b16 %v1307
        %v1821 = vunpack.c.l.b16 %v1308
        %v1822 = vunpack.c.l.b16 %v1309
        %v1823 = vunpack.c.l.b16 %v1310
        %v1824 = vunpack.c.l.b16 %v1311
        %v1825 = vunpack.c.l.b16 %v1312
        %v1826 = vunpack.c.l.b16 %v1313
        %v1827 = vunpack.c.l.b16 %v1314
        %v1828 = vunpack.c.l.b16 %v1315
        %v1829 = vunpack.c.l.b16 %v1316
        %v1830 = vunpack.c.l.b16 %v1317
        %v1831 = vunpack.c.l.b16 %v1318
        %v1832 = vunpack.c.l.b16 %v1319
        %v1833 = vunpack.c.l.b16 %v1320
        %v1834 = vunpack.c.l.b16 %v1321
        %v1835 = vunpack.c.l.b16 %v1322
        %v1836 = vunpack.c.l.b16 %v1323
        %v1837 = vunpack.c.l.b16 %v1324
        %v1838 = vunpack.c.l.b16 %v1325
        %v1839 = vunpack.c.l.b16 %v1326
        %v1840 = vunpack.c.l.b16 %v1327
        %v1841 = vunpack.c.l.b16 %v1328
        %v1842 = vunpack.c.l.b16 %v1329
        %v1843 = vunpack.c.l.b16 %v1330
        %v1844 = vunpack.c.l.b16 %v1331
        %v1845 = vunpack.c.l.b16 %v1332
        %v1846 = vunpack.c.l.b16 %v1333
        %v1847 = vunpack.c.l.b16 %v1334
        %v1848 = vunpack.c.l.b16 %v1335
        %v1849 = vunpack.c.l.b16 %v1336
        %v1850 = vunpack.c.l.b16 %v1337
        %v1851 = vunpack.c.l.b16 %v1338
        %v1852 = vunpack.c.l.b16 %v1339
        %v1853 = vunpack.c.l.b16 %v1340
        %v1854 = vunpack.c.l.b16 %v1341
        %v1855 = vunpack.c.l.b16 %v1342
        %v1856 = vunpack.c.l.b16 %v1343
        %v1857 = vunpack.c.l.b16 %v1344
        %v1858 = vunpack.c.l.b16 %v1345
        %v1859 = vunpack.c.l.b16 %v1346
        %v1860 = vunpack.c.l.b16 %v1347
        %v1861 = vunpack.c.l.b16 %v1348
        %v1862 = vunpack.c.l.b16 %v1349
        %v1863 = vunpack.c.l.b16 %v1350
        %v1864 = vunpack.c.l.b16 %v1351
        %v1865 = vunpack.c.l.b16 %v1352
        %v1866 = vunpack.c.l.b16 %v1353
        %v1867 = vunpack.c.l.b16 %v1354
        %v1868 = vunpack.c.l.b16 %v1355
        %v1869 = vunpack.c.l.b16 %v1356
        %v1870 = vunpack.c.l.b16 %v1357
        %v1871 = vunpack.c.l.b16 %v1358
        %v1872 = vunpack.c.l.b16 %v1359
        %v1873 = vpack.c.b16 %v1618, %v1617
        %v1874 = vpack.c.b16 %v1620, %v1619
        %v1875 = vpack.c.b16 %v1622, %v1621
        %v1876 = vpack.c.b16 %v1624, %v1623
        %v1877 = vpack.c.b16 %v1626, %v1625
        %v1878 = vpack.c.b16 %v1628, %v1627
        %v1879 = vpack.c.b16 %v1630, %v1629
        %v1880 = vpack.c.b16 %v1632, %v1631
        %v1881 = vpack.c.b16 %v1634, %v1633
        %v1882 = vpack.c.b16 %v1636, %v1635
        %v1883 = vpack.c.b16 %v1638, %v1637
        %v1884 = vpack.c.b16 %v1640, %v1639
        %v1885 = vpack.c.b16 %v1642, %v1641
        %v1886 = vpack.c.b16 %v1644, %v1643
        %v1887 = vpack.c.b16 %v1646, %v1645
        %v1888 = vpack.c.b16 %v1648, %v1647
        %v1889 = vpack.c.b16 %v1650, %v1649
        %v1890 = vpack.c.b16 %v1652, %v1651
        %v1891 = vpack.c.b16 %v1654, %v1653
        %v1892 = vpack.c.b16 %v1656, %v1655
        %v1893 = vpack.c.b16 %v1658, %v1657
        %v1894 = vpack.c.b16 %v1660, %v1659
        %v1895 = vpack.c.b16 %v1662, %v1661
        %v1896 = vpack.c.b16 %v1664, %v1663
        %v1897 = vpack.c.b16 %v1666, %v1665
        %v1898 = vpack.c.b16 %v1668, %v1667
        %v1899 = vpack.c.b16 %v1670, %v1669
        %v1900 = vpack.c.b16 %v1672, %v1671
        %v1901 = vpack.c.b16 %v1674, %v1673
        %v1902 = vpack.c.b16 %v1676, %v1675
        %v1903 = vpack.c.b16 %v1678, %v1677
        %v1904 = vpack.c.b16 %v1680, %v1679
        %v1905 = vpack.c.b16 %v1682, %v1681
        %v1906 = vpack.c.b16 %v1684, %v1683
        %v1907 = vpack.c.b16 %v1686, %v1685
        %v1908 = vpack.c.b16 %v1688, %v1687
        %v1909 = vpack.c.b16 %v1690, %v1689
        %v1910 = vpack.c.b16 %v1692, %v1691
        %v1911 = vpack.c.b16 %v1694, %v1693
        %v1912 = vpack.c.b16 %v1696, %v1695
        %v1913 = vpack.c.b16 %v1698, %v1697
        %v1914 = vpack.c.b16 %v1700, %v1699
        %v1915 = vpack.c.b16 %v1702, %v1701
        %v1916 = vpack.c.b16 %v1704, %v1703
        %v1917 = vpack.c.b16 %v1706, %v1705
        %v1918 = vpack.c.b16 %v1708, %v1707
        %v1919 = vpack.c.b16 %v1710, %v1709
        %v1920 = vpack.c.b16 %v1712, %v1711
        %v1921 = vpack.c.b16 %v1714, %v1713
        %v1922 = vpack.c.b16 %v1716, %v1715
        %v1923 = vpack.c.b16 %v1718, %v1717
        %v1924 = vpack.c.b16 %v1720, %v1719
        %v1925 = vpack.c.b16 %v1722, %v1721
        %v1926 = vpack.c.b16 %v1724, %v1723
        %v1927 = vpack.c.b16 %v1726, %v1725
        %v1928 = vpack.c.b16 %v1728, %v1727
        %v1929 = vpack.c.b16 %v1730, %v1729
        %v1930 = vpack.c.b16 %v1732, %v1731
        %v1931 = vpack.c.b16 %v1734, %v1733
        %v1932 = vpack.c.b16 %v1736, %v1735
        %v1933 = vpack.c.b16 %v1738, %v1737
        %v1934 = vpack.c.b16 %v1740, %v1739
        %v1935 = vpack.c.b16 %v1742, %v1741
        %v1936 = vpack.c.b16 %v1744, %v1743
        %v1937 = vpack.c.b16 %v1746, %v1745
        %v1938 = vpack.c.b16 %v1748, %v1747
        %v1939 = vpack.c.b16 %v1750, %v1749
        %v1940 = vpack.c.b16 %v1752, %v1751
        %v1941 = vpack.c.b16 %v1754, %v1753
        %v1942 = vpack.c.b16 %v1756, %v1755
        %v1943 = vpack.c.b16 %v1758, %v1757
        %v1944 = vpack.c.b16 %v1760, %v1759
        %v1945 = vpack.c.b16 %v1762, %v1761
        %v1946 = vpack.c.b16 %v1764, %v1763
        %v1947 = vpack.c.b16 %v1766, %v1765
        %v1948 = vpack.c.b16 %v1768, %v1767
        %v1949 = vpack.c.b16 %v1770, %v1769
        %v1950 = vpack.c.b16 %v1772, %v1771
        %v1951 = vpack.c.b16 %v1774, %v1773
        %v1952 = vpack.c.b16 %v1776, %v1775
        %v1953 = vpack.c.b16 %v1778, %v1777
        %v1954 = vpack.c.b16 %v1780, %v1779
        %v1955 = vpack.c.b16 %v1782, %v1781
        %v1956 = vpack.c.b16 %v1784, %v1783
        %v1957 = vpack.c.b16 %v1786, %v1785
        %v1958 = vpack.c.b16 %v1788, %v1787
        %v1959 = vpack.c.b16 %v1790, %v1789
        %v1960 = vpack.c.b16 %v1792, %v1791
        %v1961 = vpack.c.b16 %v1794, %v1793
        %v1962 = vpack.c.b16 %v1796, %v1795
        %v1963 = vpack.c.b16 %v1798, %v1797
        %v1964 = vpack.c.b16 %v1800, %v1799
        %v1965 = vpack.c.b16 %v1802, %v1801
        %v1966 = vpack.c.b16 %v1804, %v1803
        %v1967 = vpack.c.b16 %v1806, %v1805
        %v1968 = vpack.c.b16 %v1808, %v1807
        %v1969 = vpack.c.b16 %v1810, %v1809
        %v1970 = vpack.c.b16 %v1812, %v1811
        %v1971 = vpack.c.b16 %v1814, %v1813
        %v1972 = vpack.c.b16 %v1816, %v1815
        %v1973 = vpack.c.b16 %v1818, %v1817
        %v1974 = vpack.c.b16 %v1820, %v1819
        %v1975 = vpack.c.b16 %v1822, %v1821
        %v1976 = vpack.c.b16 %v1824, %v1823
        %v1977 = vpack.c.b16 %v1826, %v1825
        %v1978 = vpack.c.b16 %v1828, %v1827
        %v1979 = vpack.c.b16 %v1830, %v1829
        %v1980 = vpack.c.b16 %v1832, %v1831
        %v1981 = vpack.c.b16 %v1834, %v1833
        %v1982 = vpack.c.b16 %v1836, %v1835
        %v1983 = vpack.c.b16 %v1838, %v1837
        %v1984 = vpack.c.b16 %v1840, %v1839
        %v1985 = vpack.c.b16 %v1842, %v1841
        %v1986 = vpack.c.b16 %v1844, %v1843
        %v1987 = vpack.c.b16 %v1846, %v1845
        %v1988 = vpack.c.b16 %v1848, %v1847
        %v1989 = vpack.c.b16 %v1850, %v1849
        %v1990 = vpack.c.b16 %v1852, %v1851
        %v1991 = vpack.c.b16 %v1854, %v1853
        %v1992 = vpack.c.b16 %v1856, %v1855
        %v1993 = vpack.c.b16 %v1858, %v1857
        %v1994 = vpack.c.b16 %v1860, %v1859
        %v1995 = vpack.c.b16 %v1862, %v1861
        %v1996 = vpack.c.b16 %v1864, %v1863
        %v1997 = vpack.c.b16 %v1866, %v1865
        %v1998 = vpack.c.b16 %v1868, %v1867
        %v1999 = vpack.c.b16 %v1870, %v1869
        %v2000 = vpack.c.b16 %v1872, %v1871
        %2129 = vmatpush.bf16.msra.mxu0 %v1880
        %2130 = vmatpush.bf16.msra.mxu0 %v1879
        %2131 = vmatpush.bf16.msra.mxu0 %v1878
        %2132 = vmatpush.bf16.msra.mxu0 %v1877
        %2133 = vmatpush.bf16.msra.mxu0 %v1876
        %2134 = vmatpush.bf16.msra.mxu0 %v1875
        %2135 = vmatpush.bf16.msra.mxu0 %v1874
        %2136 = vmatpush.bf16.msra.mxu0 %v1873
        %2137 = vmatmul.bf16.gmra.mxu0 %v1088
        %v2138 = vpop.f32.mrf.mxu0
        %v2139 = vadd.f32 %v1360, %v2138
        %v2140 = vpop.f32.mrf.mxu0
        %2141 = vdwg.mxu0
        %2142 = vmatpush.bf16.msra.mxu0 %v1888
        %2143 = vmatpush.bf16.msra.mxu0 %v1887
        %2144 = vmatpush.bf16.msra.mxu0 %v1886
        %2145 = vmatpush.bf16.msra.mxu0 %v1885
        %2146 = vmatpush.bf16.msra.mxu0 %v1884
        %2147 = vmatpush.bf16.msra.mxu0 %v1883
        %2148 = vmatpush.bf16.msra.mxu0 %v1882
        %2149 = vmatpush.bf16.msra.mxu0 %v1881
        %2150 = vmatmul.bf16.gmra.mxu0 %v1089
        %v2151 = vpop.f32.mrf.mxu0
        %v2152 = vadd.f32 %v2139, %v2151
        %v2153 = vpop.f32.mrf.mxu0
        %2154 = vdwg.mxu0
        %2155 = vmatpush.bf16.msra.mxu0 %v1896
        %2156 = vmatpush.bf16.msra.mxu0 %v1895
        %2157 = vmatpush.bf16.msra.mxu0 %v1894
        %2158 = vmatpush.bf16.msra.mxu0 %v1893
        %2159 = vmatpush.bf16.msra.mxu0 %v1892
        %2160 = vmatpush.bf16.msra.mxu0 %v1891
        %2161 = vmatpush.bf16.msra.mxu0 %v1890
        %2162 = vmatpush.bf16.msra.mxu0 %v1889
        %2163 = vmatmul.bf16.gmra.mxu0 %v1090
        %v2164 = vpop.f32.mrf.mxu0
        %v2165 = vadd.f32 %v2152, %v2164
        %v2166 = vpop.f32.mrf.mxu0
        %2167 = vdwg.mxu0
        %2168 = vmatpush.bf16.msra.mxu0 %v1904
        %2169 = vmatpush.bf16.msra.mxu0 %v1903
        %2170 = vmatpush.bf16.msra.mxu0 %v1902
        %2171 = vmatpush.bf16.msra.mxu0 %v1901
        %2172 = vmatpush.bf16.msra.mxu0 %v1900
        %2173 = vmatpush.bf16.msra.mxu0 %v1899
        %2174 = vmatpush.bf16.msra.mxu0 %v1898
        %2175 = vmatpush.bf16.msra.mxu0 %v1897
        %2176 = vmatmul.bf16.gmra.mxu0 %v1091
        %v2177 = vpop.f32.mrf.mxu0
        %v2178 = vadd.f32 %v2165, %v2177
        %v2179 = vpop.f32.mrf.mxu0
        %2180 = vdwg.mxu0
        %2181 = vmatpush.bf16.msra.mxu0 %v1912
        %2182 = vmatpush.bf16.msra.mxu0 %v1911
        %2183 = vmatpush.bf16.msra.mxu0 %v1910
        %2184 = vmatpush.bf16.msra.mxu0 %v1909
        %2185 = vmatpush.bf16.msra.mxu0 %v1908
        %2186 = vmatpush.bf16.msra.mxu0 %v1907
        %2187 = vmatpush.bf16.msra.mxu0 %v1906
        %2188 = vmatpush.bf16.msra.mxu0 %v1905
        %2189 = vmatmul.bf16.gmra.mxu0 %v1092
        %v2190 = vpop.f32.mrf.mxu0
        %v2191 = vadd.f32 %v2178, %v2190
        %v2192 = vpop.f32.mrf.mxu0
        %2193 = vdwg.mxu0
        %2194 = vmatpush.bf16.msra.mxu0 %v1920
        %2195 = vmatpush.bf16.msra.mxu0 %v1919
        %2196 = vmatpush.bf16.msra.mxu0 %v1918
        %2197 = vmatpush.bf16.msra.mxu0 %v1917
        %2198 = vmatpush.bf16.msra.mxu0 %v1916
        %2199 = vmatpush.bf16.msra.mxu0 %v1915
        %2200 = vmatpush.bf16.msra.mxu0 %v1914
        %2201 = vmatpush.bf16.msra.mxu0 %v1913
        %2202 = vmatmul.bf16.gmra.mxu0 %v1093
        %v2203 = vpop.f32.mrf.mxu0
        %v2204 = vadd.f32 %v2191, %v2203
        %v2205 = vpop.f32.mrf.mxu0
        %2206 = vdwg.mxu0
        %2207 = vmatpush.bf16.msra.mxu0 %v1928
        %2208 = vmatpush.bf16.msra.mxu0 %v1927
        %2209 = vmatpush.bf16.msra.mxu0 %v1926
        %2210 = vmatpush.bf16.msra.mxu0 %v1925
        %2211 = vmatpush.bf16.msra.mxu0 %v1924
        %2212 = vmatpush.bf16.msra.mxu0 %v1923
        %2213 = vmatpush.bf16.msra.mxu0 %v1922
        %2214 = vmatpush.bf16.msra.mxu0 %v1921
        %2215 = vmatmul.bf16.gmra.mxu0 %v1094
        %v2216 = vpop.f32.mrf.mxu0
        %v2217 = vadd.f32 %v2204, %v2216
        %v2218 = vpop.f32.mrf.mxu0
        %2219 = vdwg.mxu0
        %2220 = vmatpush.bf16.msra.mxu0 %v1936
        %2221 = vmatpush.bf16.msra.mxu0 %v1935
        %2222 = vmatpush.bf16.msra.mxu0 %v1934
        %2223 = vmatpush.bf16.msra.mxu0 %v1933
        %2224 = vmatpush.bf16.msra.mxu0 %v1932
        %2225 = vmatpush.bf16.msra.mxu0 %v1931
        %2226 = vmatpush.bf16.msra.mxu0 %v1930
        %2227 = vmatpush.bf16.msra.mxu0 %v1929
        %2228 = vmatmul.bf16.gmra.mxu0 %v1095
        %v2229 = vpop.f32.mrf.mxu0
        %v2230 = vadd.f32 %v2217, %v2229
        %v2231 = vpop.f32.mrf.mxu0
        %2232 = vdwg.mxu0
        %2233 = vmatpush.bf16.msra.mxu0 %v1944
        %2234 = vmatpush.bf16.msra.mxu0 %v1943
        %2235 = vmatpush.bf16.msra.mxu0 %v1942
        %2236 = vmatpush.bf16.msra.mxu0 %v1941
        %2237 = vmatpush.bf16.msra.mxu0 %v1940
        %2238 = vmatpush.bf16.msra.mxu0 %v1939
        %2239 = vmatpush.bf16.msra.mxu0 %v1938
        %2240 = vmatpush.bf16.msra.mxu0 %v1937
        %2241 = vmatmul.bf16.gmra.mxu0 %v1096
        %v2242 = vpop.f32.mrf.mxu0
        %v2243 = vadd.f32 %v2230, %v2242
        %v2244 = vpop.f32.mrf.mxu0
        %2245 = vdwg.mxu0
        %2246 = vmatpush.bf16.msra.mxu0 %v1952
        %2247 = vmatpush.bf16.msra.mxu0 %v1951
        %2248 = vmatpush.bf16.msra.mxu0 %v1950
        %2249 = vmatpush.bf16.msra.mxu0 %v1949
        %2250 = vmatpush.bf16.msra.mxu0 %v1948
        %2251 = vmatpush.bf16.msra.mxu0 %v1947
        %2252 = vmatpush.bf16.msra.mxu0 %v1946
        %2253 = vmatpush.bf16.msra.mxu0 %v1945
        %2254 = vmatmul.bf16.gmra.mxu0 %v1097
        %v2255 = vpop.f32.mrf.mxu0
        %v2256 = vadd.f32 %v2243, %v2255
        %v2257 = vpop.f32.mrf.mxu0
        %2258 = vdwg.mxu0
        %2259 = vmatpush.bf16.msra.mxu0 %v1960
        %2260 = vmatpush.bf16.msra.mxu0 %v1959
        %2261 = vmatpush.bf16.msra.mxu0 %v1958
        %2262 = vmatpush.bf16.msra.mxu0 %v1957
        %2263 = vmatpush.bf16.msra.mxu0 %v1956
        %2264 = vmatpush.bf16.msra.mxu0 %v1955
        %2265 = vmatpush.bf16.msra.mxu0 %v1954
        %2266 = vmatpush.bf16.msra.mxu0 %v1953
        %2267 = vmatmul.bf16.gmra.mxu0 %v1098
        %v2268 = vpop.f32.mrf.mxu0
        %v2269 = vadd.f32 %v2256, %v2268
        %v2270 = vpop.f32.mrf.mxu0
        %2271 = vdwg.mxu0
        %2272 = vmatpush.bf16.msra.mxu0 %v1968
        %2273 = vmatpush.bf16.msra.mxu0 %v1967
        %2274 = vmatpush.bf16.msra.mxu0 %v1966
        %2275 = vmatpush.bf16.msra.mxu0 %v1965
        %2276 = vmatpush.bf16.msra.mxu0 %v1964
        %2277 = vmatpush.bf16.msra.mxu0 %v1963
        %2278 = vmatpush.bf16.msra.mxu0 %v1962
        %2279 = vmatpush.bf16.msra.mxu0 %v1961
        %2280 = vmatmul.bf16.gmra.mxu0 %v1099
        %v2281 = vpop.f32.mrf.mxu0
        %v2282 = vadd.f32 %v2269, %v2281
        %v2283 = vpop.f32.mrf.mxu0
        %2284 = vdwg.mxu0
        %2285 = vmatpush.bf16.msra.mxu0 %v1976
        %2286 = vmatpush.bf16.msra.mxu0 %v1975
        %2287 = vmatpush.bf16.msra.mxu0 %v1974
        %2288 = vmatpush.bf16.msra.mxu0 %v1973
        %2289 = vmatpush.bf16.msra.mxu0 %v1972
        %2290 = vmatpush.bf16.msra.mxu0 %v1971
        %2291 = vmatpush.bf16.msra.mxu0 %v1970
        %2292 = vmatpush.bf16.msra.mxu0 %v1969
        %2293 = vmatmul.bf16.gmra.mxu0 %v1100
        %v2294 = vpop.f32.mrf.mxu0
        %v2295 = vadd.f32 %v2282, %v2294
        %v2296 = vpop.f32.mrf.mxu0
        %2297 = vdwg.mxu0
        %2298 = vmatpush.bf16.msra.mxu0 %v1984
        %2299 = vmatpush.bf16.msra.mxu0 %v1983
        %2300 = vmatpush.bf16.msra.mxu0 %v1982
        %2301 = vmatpush.bf16.msra.mxu0 %v1981
        %2302 = vmatpush.bf16.msra.mxu0 %v1980
        %2303 = vmatpush.bf16.msra.mxu0 %v1979
        %2304 = vmatpush.bf16.msra.mxu0 %v1978
        %2305 = vmatpush.bf16.msra.mxu0 %v1977
        %2306 = vmatmul.bf16.gmra.mxu0 %v1101
        %v2307 = vpop.f32.mrf.mxu0
        %v2308 = vadd.f32 %v2295, %v2307
        %v2309 = vpop.f32.mrf.mxu0
        %2310 = vdwg.mxu0
        %2311 = vmatpush.bf16.msra.mxu0 %v1992
        %2312 = vmatpush.bf16.msra.mxu0 %v1991
        %2313 = vmatpush.bf16.msra.mxu0 %v1990
        %2314 = vmatpush.bf16.msra.mxu0 %v1989
        %2315 = vmatpush.bf16.msra.mxu0 %v1988
        %2316 = vmatpush.bf16.msra.mxu0 %v1987
        %2317 = vmatpush.bf16.msra.mxu0 %v1986
        %2318 = vmatpush.bf16.msra.mxu0 %v1985
        %2319 = vmatmul.bf16.gmra.mxu0 %v1102
        %v2320 = vpop.f32.mrf.mxu0
        %v2321 = vadd.f32 %v2308, %v2320
        %v2322 = vpop.f32.mrf.mxu0
        %2323 = vdwg.mxu0
        %2324 = vmatpush.bf16.msra.mxu0 %v2000
        %2325 = vmatpush.bf16.msra.mxu0 %v1999
        %2326 = vmatpush.bf16.msra.mxu0 %v1998
        %2327 = vmatpush.bf16.msra.mxu0 %v1997
        %2328 = vmatpush.bf16.msra.mxu0 %v1996
        %2329 = vmatpush.bf16.msra.mxu0 %v1995
        %2330 = vmatpush.bf16.msra.mxu0 %v1994
        %2331 = vmatpush.bf16.msra.mxu0 %v1993
        %2332 = vmatmul.bf16.gmra.mxu0 %v1103
        %v2333 = vpop.f32.mrf.mxu0
        %v2334 = vadd.f32 %v2321, %v2333
        %v2335 = vpop.f32.mrf.mxu0
        %2336 = vdwg.mxu0
        %v2337 = vadd.f32 %v611, %v2334
        %2338 = vst.msk [vmem:[%s242] sm:$0xff] %vm256, %v2337
        %s2339 = sand.u32 %s159, 1
        %s2340 = scalar_lea.sflag [#allocation4], %s2339
        %s2341 = sand.u32 %s159, 1
        %s2342 = smul.addr %s2341, 8
        %s2343 = scalar_lea.vmem [#allocation3], %s2342
        // Predicated region
        $region45: #{tpu_custom_call.1} parent=43 // pred_check
          %p2344 = pneg %p169
        $region46: #{tpu_custom_call.1} parent=43 // pred_check_branch
          %2346 = sbr.rel (%p2344) target = $region48
        $region47: #{tpu_custom_call.1} parent=43 // pred_region
          %2348 = vsyncadd %s2340, 0
          %s2349 = smul.addr %s20, 8
          %s2350 = scalar_lea.hbm %s6, %s2349
          %s2352 = sshll.u32 %s2343, 4
          %s2353 = int_to_ptr.vmem [resolvable:$true] %s2352
          %s2354 = sshll.u32 %s2350, 4
          %s2355 = int_to_ptr.hbm [resolvable:$true] %s2354
          %2357 = dma.vmem_to_hbm [thread:$0]  %s2353, 128, %s2355, %s2340
        $region48: #{tpu_custom_call.1} parent=43 // pred_fallthru
          _
      $region44: #{tpu_custom_call.1} parent=5 // pred_fallthru
        _
      %p2358 = scmp.le.s32.totalorder 2, %s15
      // Predicated region
      $region49: #{tpu_custom_call.1} parent=5 // pred_check
        %p2359 = pneg %p2358
      $region50: #{tpu_custom_call.1} parent=5 // pred_check_branch
        %2361 = sbr.rel (%p2359) target = $region52
      $region51: #{tpu_custom_call.1} parent=5 // pred_region
        %s2362 = ssub.s32 %s15, 2
        // Predicated region
        $region53: #{tpu_custom_call.1} parent=51 // pred_check
          %p2363 = pneg %p175
        $region54: #{tpu_custom_call.1} parent=51 // pred_check_branch
          %2365 = sbr.rel (%p2363) target = $region56
        $region55: #{tpu_custom_call.1} parent=51 // pred_region
          %s2366 = sand.u32 %s160, 1
          %s2367 = scalar_lea.sflag [#allocation4], %s2366
          %s2368 = sand.u32 %s160, 1
          %s2369 = smul.addr %s2368, 8
          %s2370 = scalar_lea.vmem [#allocation3], %s2369
          %2372 = dma.done %s2367, 128
        $region56: #{tpu_custom_call.1} parent=51 // pred_fallthru
          _
      $region52: #{tpu_custom_call.1} parent=5 // pred_fallthru
        _
    $region6: #{tpu_custom_call.1} parent=1 // loop_footer
      %s19 = sadd.s32 1, %s15
    $region7: #{tpu_custom_call.1} parent=1 // loop_footer_branch
      %14 = sbr.rel target = $region3
    $region8: #{tpu_custom_call.1} parent=1 // loop_exit
      _
    %2373 = vsyncpa [#allocation4], 1
    %s2374 = scalar_lea.sflag [#allocation4], 1
    %2375 = vsyncpa %s2374, 1

</llo_original>
